<compile_context>
chip_gen: v5e
topology: v5e:2x2
jax: 0.10.0
libtpu: 0.0.40
codegen_flags: <defaults>
</compile_context>

<pallas_src>
import functools

import jax
import jax.numpy as jnp
from jax.experimental import pallas as pl
from jax.experimental.pallas import tpu as pltpu

_EPS = 1e-5
_INV_SQRT2 = 0.7071067811865476


def _layernorm(x, gamma, beta):
    mu = jnp.mean(x, axis=-1, keepdims=True)
    var = jnp.mean((x - mu) ** 2, axis=-1, keepdims=True)
    return (x - mu) * jax.lax.rsqrt(var + _EPS) * gamma + beta


def _disc_head_kernel(
    x_ref,      # (TB, S, K)   activations (bf16 or f32)
    wp_ref,     # (K, D)       proj_out weight (in, out), bf16
    bp_ref,     # (1, D)       proj_out bias, f32
    w1_ref,     # (D, D)       mlp linear-1 weight (in, out), f32
    b1_ref,     # (1, D)
    g1_ref,     # (1, D)       mlp LayerNorm gamma
    be1_ref,    # (1, D)       mlp LayerNorm beta
    w2_ref,     # (1, D)       mlp linear-2 weight (out=1 folded), f32
    b2_ref,     # (1, 1)       mlp linear-2 bias, SMEM scalar
    g2_ref,     # (1, D)       final LayerNorm gamma
    be2_ref,    # (1, D)       final LayerNorm beta
    o_ref,      # (TB, D)
):
    s = x_ref.shape[1]

    # Sequence mean hoisted ahead of the (affine) projection; f32 accumulate.
    x_mean = jnp.sum(x_ref[...].astype(jnp.float32), axis=1) * (1.0 / s)  # (TB, K)

    # proj_out on the MXU: bf16 operands, f32 accumulation.
    x_red = jnp.dot(x_mean.astype(wp_ref.dtype), wp_ref[...],
                    preferred_element_type=jnp.float32) + bp_ref[...]     # (TB, D)
    residual = x_red

    # mlp: Linear(D, D)  (tiny 64x64 matmul; kept in f32 for accuracy)
    h = jnp.dot(x_red, w1_ref[...], preferred_element_type=jnp.float32)
    h = h + b1_ref[...]                                                   # (TB, D)

    # mlp: LayerNorm(D)
    h = _layernorm(h, g1_ref[...], be1_ref[...])

    # mlp: GELU (exact erf form, matching nn.GELU default)
    h = 0.5 * h * (1.0 + jax.lax.erf(h * _INV_SQRT2))

    # mlp: Linear(D, 1) as elementwise mul + lane reduction; scalar bias (SMEM).
    o = jnp.sum(h * w2_ref[...], axis=-1, keepdims=True) + b2_ref[0, 0]   # (TB, 1)

    # residual add broadcasts (TB, 1) + (TB, D), then final LayerNorm.
    y = _layernorm(o + residual, g2_ref[...], be2_ref[...])
    o_ref[...] = y.astype(o_ref.dtype)


def _choose_batch_tile(b, tb_max):
    """Batch tile TB (multiple of 8, or the full padded batch) + padded batch."""
    b8 = 8 * pl.cdiv(b, 8)                 # sublane-align the batch axis
    tb = min(tb_max, b8)
    # Prefer >= 2 grid steps so ("parallel",) can shard across v7x's 2 TCs.
    if b8 // tb < 2 and b8 >= 16:
        tb = 8 * pl.cdiv(b8 // 2, 8)
    b_pad = tb * pl.cdiv(b, tb)
    return tb, b_pad


@functools.partial(jax.jit, static_argnames=("tb_max",))
def transformer_disc_head(x, wp, bp, w1, b1, g1, be1, w2t, b2, g2, be2, *,
                          tb_max=64):
    B, S, K = x.shape
    D = wp.shape[1]

    TB, B_pad = _choose_batch_tile(B, tb_max)
    if B_pad != B:
        x = jnp.pad(x, ((0, B_pad - B), (0, 0), (0, 0)))

    wp_bf = wp.astype(jnp.bfloat16)   # resident proj weight: 768 -> 384 KiB

    x_bytes = x.size * x.dtype.itemsize
    param_bytes = sum(int(a.size) * a.dtype.itemsize
                      for a in (wp_bf, bp, w1, b1, g1, be1, w2t, b2, g2, be2))
    cost = pl.CostEstimate(
        flops=2 * B_pad * (K * D + D * D + D),
        transcendentals=B_pad * D,
        bytes_accessed=int(x_bytes) + param_bytes + B_pad * D * 4,
    )

    param2d = lambda r, c: pl.BlockSpec((r, c), lambda i: (0, 0))

    out = pl.pallas_call(
        _disc_head_kernel,
        out_shape=jax.ShapeDtypeStruct((B_pad, D), jnp.float32),
        grid_spec=pltpu.PrefetchScalarGridSpec(
            num_scalar_prefetch=0,
            grid=(B_pad // TB,),
            in_specs=[
                pl.BlockSpec((TB, S, K), lambda i: (i, 0, 0)),      # x batch tile
                param2d(K, D),   # wp (bf16)
                param2d(1, D),   # bp
                param2d(D, D),   # w1
                param2d(1, D),   # b1
                param2d(1, D),   # g1
                param2d(1, D),   # be1
                param2d(1, D),   # w2t
                pl.BlockSpec(memory_space=pltpu.MemorySpace.SMEM),  # b2 scalar
                param2d(1, D),   # g2
                param2d(1, D),   # be2
            ],
            out_specs=pl.BlockSpec((TB, D), lambda i: (i, 0)),
        ),
        compiler_params=pltpu.CompilerParams(
            dimension_semantics=("parallel",),
        ),
        cost_estimate=cost,
    )(x, wp_bf, bp, w1, b1, g1, be1, w2t, b2, g2, be2)
    return out[:B]  # drop batch padding -> (B, D)


def _ref_forward(x, wp, bp, w1, b1, g1, be1, w2t, b2, g2, be2):
    """Pure-JAX f32 reference mirroring the PyTorch module exactly."""
    def ln(v, g, be):
        mu = v.mean(-1, keepdims=True)
        var = ((v - mu) ** 2).mean(-1, keepdims=True)
        return (v - mu) / jnp.sqrt(var + _EPS) * g + be

    proj = x @ wp + bp[0]                              # (B, S, D)
    xr = proj.mean(axis=-2)                            # (B, D)
    h = xr @ w1 + b1[0]
    h = ln(h, g1[0], be1[0])
    h = 0.5 * h * (1.0 + jax.lax.erf(h * _INV_SQRT2))
    o = (h * w2t[0]).sum(-1, keepdims=True) + b2[0]    # (B, 1)
    y = o + xr                                         # broadcast (B,1)+(B,D)
    return ln(y, g2[0], be2[0])


def init_params(key, in_dim=3072, hidden=64, out_ch=1):
    ks = jax.random.split(key, 4)
    scale = 0.02
    wp = scale * jax.random.normal(ks[0], (in_dim, hidden), jnp.float32)
    bp = scale * jax.random.normal(ks[1], (1, hidden), jnp.float32)
    w1 = scale * jax.random.normal(ks[2], (hidden, hidden), jnp.float32)
    b1 = jnp.zeros((1, hidden), jnp.float32)
    g1 = jnp.ones((1, hidden), jnp.float32)
    be1 = jnp.zeros((1, hidden), jnp.float32)
    # Linear(D -> 1) stored transposed as (1, D); output_channel must be 1 for
    # the module's broadcasting residual add to be well-defined.
    w2t = scale * jax.random.normal(ks[3], (out_ch, hidden), jnp.float32)
    b2 = jnp.zeros((1, 1), jnp.float32)
    g2 = jnp.ones((1, hidden), jnp.float32)
    be2 = jnp.zeros((1, hidden), jnp.float32)
    return (wp, bp, w1, b1, g1, be1, w2t, b2, g2, be2)


if __name__ == "__main__":
    key = jax.random.PRNGKey(0)
    kx, kp = jax.random.split(key)

    B, S, K, D = 2, 8, 3072, 64   # K=3072 is fixed by the module's proj_out
    # Activations arrive in bf16 (realistic FLUX case; halves the x HBM read).
    x = jax.random.normal(kx, (B, S, K), jnp.float32).astype(jnp.bfloat16)
    params = init_params(kp, in_dim=K, hidden=D, out_ch=1)

    out = jax.block_until_ready(transformer_disc_head(x, *params))
    ref = _ref_forward(x.astype(jnp.float32), *params)

    assert out.shape == (B, D), out.shape
    err = float(jnp.max(jnp.abs(out - ref)))
    # bf16 matmul operands + mean-hoist reassociation -> small deviation only.
    assert err < 3e-2, err
    print("KERNEL_OK")
</pallas_src>

<mosaic_0001>
module attributes {stable_mosaic.version = 11 : i64} {
  func.func @_disc_head_kernel(%arg0: i32, %arg1: memref<8x8x3072xbf16, #tpu.memory_space<vmem>>, %arg2: memref<3072x64xbf16, #tpu.memory_space<vmem>>, %arg3: memref<1x64xf32, #tpu.memory_space<vmem>>, %arg4: memref<64x64xf32, #tpu.memory_space<vmem>>, %arg5: memref<1x64xf32, #tpu.memory_space<vmem>>, %arg6: memref<1x64xf32, #tpu.memory_space<vmem>>, %arg7: memref<1x64xf32, #tpu.memory_space<vmem>>, %arg8: memref<1x64xf32, #tpu.memory_space<vmem>>, %arg9: memref<1x1xf32, #tpu.memory_space<smem>>, %arg10: memref<1x64xf32, #tpu.memory_space<vmem>>, %arg11: memref<1x64xf32, #tpu.memory_space<vmem>>, %arg12: memref<8x64xf32, #tpu.memory_space<vmem>>) attributes {dimension_semantics = [#tpu.dimension_semantics<parallel>], iteration_bounds = array<i64: 1>, scalar_prefetch = 0 : i64, scratch_operands = 0 : i64, tpu.core_type = #tpu.core_type<tc>, window_params = [{transform_indices = @transform_0, window_bounds = array<i64: 8, 8, 3072>}, {pipeline_mode = #tpu.pipeline_mode<synchronous>, transform_indices = @transform_1, window_bounds = array<i64: 3072, 64>}, {pipeline_mode = #tpu.pipeline_mode<synchronous>, transform_indices = @transform_2, window_bounds = array<i64: 1, 64>}, {pipeline_mode = #tpu.pipeline_mode<synchronous>, transform_indices = @transform_3, window_bounds = array<i64: 64, 64>}, {pipeline_mode = #tpu.pipeline_mode<synchronous>, transform_indices = @transform_4, window_bounds = array<i64: 1, 64>}, {pipeline_mode = #tpu.pipeline_mode<synchronous>, transform_indices = @transform_5, window_bounds = array<i64: 1, 64>}, {pipeline_mode = #tpu.pipeline_mode<synchronous>, transform_indices = @transform_6, window_bounds = array<i64: 1, 64>}, {pipeline_mode = #tpu.pipeline_mode<synchronous>, transform_indices = @transform_7, window_bounds = array<i64: 1, 64>}, {transform_indices = @transform_8, window_bounds = array<i64: 1, 1>}, {pipeline_mode = #tpu.pipeline_mode<synchronous>, transform_indices = @transform_9, window_bounds = array<i64: 1, 64>}, {pipeline_mode = #tpu.pipeline_mode<synchronous>, transform_indices = @transform_10, window_bounds = array<i64: 1, 64>}, {transform_indices = @transform_11, window_bounds = array<i64: 8, 64>}]} {
    %c0 = arith.constant 0 : index
    %c0_0 = arith.constant 0 : index
    %c0_1 = arith.constant 0 : index
    %0 = vector.load %arg1[%c0, %c0_0, %c0_1] : memref<8x8x3072xbf16, #tpu.memory_space<vmem>>, vector<8x8x3072xbf16>
    %1 = arith.extf %0 : vector<8x8x3072xbf16> to vector<8x8x3072xf32>
    %cst = arith.constant dense<0.000000e+00> : vector<8x3072xf32>
    %2 = vector.multi_reduction <add>, %1, %cst [1] : vector<8x8x3072xf32> to vector<8x3072xf32>
    %cst_2 = arith.constant 1.250000e-01 : f32
    %3 = vector.broadcast %cst_2 : f32 to vector<8x3072xf32>
    %4 = arith.mulf %2, %3 : vector<8x3072xf32>
    %5 = arith.truncf %4 : vector<8x3072xf32> to vector<8x3072xbf16>
    %c0_3 = arith.constant 0 : index
    %c0_4 = arith.constant 0 : index
    %6 = vector.load %arg2[%c0_3, %c0_4] : memref<3072x64xbf16, #tpu.memory_space<vmem>>, vector<3072x64xbf16>
    %cst_5 = arith.constant dense<0.000000e+00> : vector<8x64xf32>
    %7 = tpu.matmul %5, %6, %cst_5 {dimension_numbers = #tpu.dot_dimension_numbers<[1], [0], [0], [1], [0, 0, 1, 1], [], []>} : vector<8x3072xbf16>, vector<3072x64xbf16>, vector<8x64xf32> -> vector<8x64xf32>
    %c0_6 = arith.constant 0 : index
    %c0_7 = arith.constant 0 : index
    %8 = vector.load %arg3[%c0_6, %c0_7] : memref<1x64xf32, #tpu.memory_space<vmem>>, vector<1x64xf32>
    %9 = vector.broadcast %8 : vector<1x64xf32> to vector<8x64xf32>
    %10 = arith.addf %7, %9 : vector<8x64xf32>
    %c0_8 = arith.constant 0 : index
    %c0_9 = arith.constant 0 : index
    %11 = vector.load %arg4[%c0_8, %c0_9] : memref<64x64xf32, #tpu.memory_space<vmem>>, vector<64x64xf32>
    %cst_10 = arith.constant dense<0.000000e+00> : vector<8x64xf32>
    %12 = tpu.matmul %10, %11, %cst_10 {dimension_numbers = #tpu.dot_dimension_numbers<[1], [0], [0], [1], [0, 0, 1, 1], [], []>} : vector<8x64xf32>, vector<64x64xf32>, vector<8x64xf32> -> vector<8x64xf32>
    %c0_11 = arith.constant 0 : index
    %c0_12 = arith.constant 0 : index
    %13 = vector.load %arg5[%c0_11, %c0_12] : memref<1x64xf32, #tpu.memory_space<vmem>>, vector<1x64xf32>
    %14 = vector.broadcast %13 : vector<1x64xf32> to vector<8x64xf32>
    %15 = arith.addf %12, %14 : vector<8x64xf32>
    %c0_13 = arith.constant 0 : index
    %c0_14 = arith.constant 0 : index
    %16 = vector.load %arg6[%c0_13, %c0_14] : memref<1x64xf32, #tpu.memory_space<vmem>>, vector<1x64xf32>
    %c0_15 = arith.constant 0 : index
    %c0_16 = arith.constant 0 : index
    %17 = vector.load %arg7[%c0_15, %c0_16] : memref<1x64xf32, #tpu.memory_space<vmem>>, vector<1x64xf32>
    %cst_17 = arith.constant dense<0.000000e+00> : vector<8xf32>
    %18 = vector.multi_reduction <add>, %15, %cst_17 [1] : vector<8x64xf32> to vector<8xf32>
    %19 = vector.shape_cast %18 : vector<8xf32> to vector<8x1xf32>
    %cst_18 = arith.constant 6.400000e+01 : f32
    %20 = vector.broadcast %cst_18 : f32 to vector<8x1xf32>
    %21 = arith.divf %19, %20 : vector<8x1xf32>
    %22 = vector.broadcast %21 : vector<8x1xf32> to vector<8x64xf32>
    %23 = arith.subf %15, %22 : vector<8x64xf32>
    %24 = arith.mulf %23, %23 : vector<8x64xf32>
    %cst_19 = arith.constant dense<0.000000e+00> : vector<8xf32>
    %25 = vector.multi_reduction <add>, %24, %cst_19 [1] : vector<8x64xf32> to vector<8xf32>
    %26 = vector.shape_cast %25 : vector<8xf32> to vector<8x1xf32>
    %cst_20 = arith.constant 6.400000e+01 : f32
    %27 = vector.broadcast %cst_20 : f32 to vector<8x1xf32>
    %28 = arith.divf %26, %27 : vector<8x1xf32>
    %29 = vector.broadcast %21 : vector<8x1xf32> to vector<8x64xf32>
    %30 = arith.subf %15, %29 : vector<8x64xf32>
    %cst_21 = arith.constant 9.99999974E-6 : f32
    %31 = vector.broadcast %cst_21 : f32 to vector<8x1xf32>
    %32 = arith.addf %28, %31 : vector<8x1xf32>
    %33 = math.rsqrt %32 : vector<8x1xf32>
    %34 = vector.broadcast %33 : vector<8x1xf32> to vector<8x64xf32>
    %35 = arith.mulf %30, %34 : vector<8x64xf32>
    %36 = vector.broadcast %16 : vector<1x64xf32> to vector<8x64xf32>
    %37 = arith.mulf %35, %36 : vector<8x64xf32>
    %38 = vector.broadcast %17 : vector<1x64xf32> to vector<8x64xf32>
    %39 = arith.addf %37, %38 : vector<8x64xf32>
    %cst_22 = arith.constant 5.000000e-01 : f32
    %40 = vector.broadcast %cst_22 : f32 to vector<8x64xf32>
    %41 = arith.mulf %40, %39 : vector<8x64xf32>
    %cst_23 = arith.constant 0.707106769 : f32
    %42 = vector.broadcast %cst_23 : f32 to vector<8x64xf32>
    %43 = arith.mulf %39, %42 : vector<8x64xf32>
    %44 = math.erf %43 : vector<8x64xf32>
    %cst_24 = arith.constant 1.000000e+00 : f32
    %45 = vector.broadcast %cst_24 : f32 to vector<8x64xf32>
    %46 = arith.addf %45, %44 : vector<8x64xf32>
    %47 = arith.mulf %41, %46 : vector<8x64xf32>
    %c0_25 = arith.constant 0 : index
    %c0_26 = arith.constant 0 : index
    %48 = vector.load %arg8[%c0_25, %c0_26] : memref<1x64xf32, #tpu.memory_space<vmem>>, vector<1x64xf32>
    %49 = vector.broadcast %48 : vector<1x64xf32> to vector<8x64xf32>
    %50 = arith.mulf %47, %49 : vector<8x64xf32>
    %cst_27 = arith.constant dense<0.000000e+00> : vector<8xf32>
    %51 = vector.multi_reduction <add>, %50, %cst_27 [1] : vector<8x64xf32> to vector<8xf32>
    %52 = vector.shape_cast %51 : vector<8xf32> to vector<8x1xf32>
    %c0_28 = arith.constant 0 : index
    %c0_29 = arith.constant 0 : index
    %53 = memref.load %arg9[%c0_28, %c0_29] : memref<1x1xf32, #tpu.memory_space<smem>>
    %54 = vector.broadcast %53 : f32 to vector<8x1xf32>
    %55 = arith.addf %52, %54 : vector<8x1xf32>
    %56 = vector.broadcast %55 : vector<8x1xf32> to vector<8x64xf32>
    %57 = arith.addf %56, %10 : vector<8x64xf32>
    %c0_30 = arith.constant 0 : index
    %c0_31 = arith.constant 0 : index
    %58 = vector.load %arg10[%c0_30, %c0_31] : memref<1x64xf32, #tpu.memory_space<vmem>>, vector<1x64xf32>
    %c0_32 = arith.constant 0 : index
    %c0_33 = arith.constant 0 : index
    %59 = vector.load %arg11[%c0_32, %c0_33] : memref<1x64xf32, #tpu.memory_space<vmem>>, vector<1x64xf32>
    %cst_34 = arith.constant dense<0.000000e+00> : vector<8xf32>
    %60 = vector.multi_reduction <add>, %57, %cst_34 [1] : vector<8x64xf32> to vector<8xf32>
    %61 = vector.shape_cast %60 : vector<8xf32> to vector<8x1xf32>
    %cst_35 = arith.constant 6.400000e+01 : f32
    %62 = vector.broadcast %cst_35 : f32 to vector<8x1xf32>
    %63 = arith.divf %61, %62 : vector<8x1xf32>
    %64 = vector.broadcast %63 : vector<8x1xf32> to vector<8x64xf32>
    %65 = arith.subf %57, %64 : vector<8x64xf32>
    %66 = arith.mulf %65, %65 : vector<8x64xf32>
    %cst_36 = arith.constant dense<0.000000e+00> : vector<8xf32>
    %67 = vector.multi_reduction <add>, %66, %cst_36 [1] : vector<8x64xf32> to vector<8xf32>
    %68 = vector.shape_cast %67 : vector<8xf32> to vector<8x1xf32>
    %cst_37 = arith.constant 6.400000e+01 : f32
    %69 = vector.broadcast %cst_37 : f32 to vector<8x1xf32>
    %70 = arith.divf %68, %69 : vector<8x1xf32>
    %71 = vector.broadcast %63 : vector<8x1xf32> to vector<8x64xf32>
    %72 = arith.subf %57, %71 : vector<8x64xf32>
    %cst_38 = arith.constant 9.99999974E-6 : f32
    %73 = vector.broadcast %cst_38 : f32 to vector<8x1xf32>
    %74 = arith.addf %70, %73 : vector<8x1xf32>
    %75 = math.rsqrt %74 : vector<8x1xf32>
    %76 = vector.broadcast %75 : vector<8x1xf32> to vector<8x64xf32>
    %77 = arith.mulf %72, %76 : vector<8x64xf32>
    %78 = vector.broadcast %58 : vector<1x64xf32> to vector<8x64xf32>
    %79 = arith.mulf %77, %78 : vector<8x64xf32>
    %80 = vector.broadcast %59 : vector<1x64xf32> to vector<8x64xf32>
    %81 = arith.addf %79, %80 : vector<8x64xf32>
    %c0_39 = arith.constant 0 : index
    %c0_40 = arith.constant 0 : index
    %82 = vector.load %arg12[%c0_39, %c0_40] : memref<8x64xf32, #tpu.memory_space<vmem>>, vector<8x64xf32>
    tpu.vector_store %arg12[%c0_39, %c0_40], %81 {strides = array<i32>} : memref<8x64xf32, #tpu.memory_space<vmem>>, vector<8x64xf32>,
    return
  }
  func.func @transform_0(%arg0: i32) -> (i32, i32, i32) {
    %c0_i32 = arith.constant 0 : i32
    %c0_i32_0 = arith.constant 0 : i32
    %c0_i32_1 = arith.constant 0 : i32
    return %arg0, %c0_i32, %c0_i32_0 : i32, i32, i32
  }
  func.func @transform_1(%arg0: i32) -> (i32, i32) {
    %c0_i32 = arith.constant 0 : i32
    %c0_i32_0 = arith.constant 0 : i32
    %c0_i32_1 = arith.constant 0 : i32
    return %c0_i32, %c0_i32_0 : i32, i32
  }
  func.func @transform_2(%arg0: i32) -> (i32, i32) {
    %c0_i32 = arith.constant 0 : i32
    %c0_i32_0 = arith.constant 0 : i32
    %c0_i32_1 = arith.constant 0 : i32
    return %c0_i32, %c0_i32_0 : i32, i32
  }
  func.func @transform_3(%arg0: i32) -> (i32, i32) {
    %c0_i32 = arith.constant 0 : i32
    %c0_i32_0 = arith.constant 0 : i32
    %c0_i32_1 = arith.constant 0 : i32
    return %c0_i32, %c0_i32_0 : i32, i32
  }
  func.func @transform_4(%arg0: i32) -> (i32, i32) {
    %c0_i32 = arith.constant 0 : i32
    %c0_i32_0 = arith.constant 0 : i32
    %c0_i32_1 = arith.constant 0 : i32
    return %c0_i32, %c0_i32_0 : i32, i32
  }
  func.func @transform_5(%arg0: i32) -> (i32, i32) {
    %c0_i32 = arith.constant 0 : i32
    %c0_i32_0 = arith.constant 0 : i32
    %c0_i32_1 = arith.constant 0 : i32
    return %c0_i32, %c0_i32_0 : i32, i32
  }
  func.func @transform_6(%arg0: i32) -> (i32, i32) {
    %c0_i32 = arith.constant 0 : i32
    %c0_i32_0 = arith.constant 0 : i32
    %c0_i32_1 = arith.constant 0 : i32
    return %c0_i32, %c0_i32_0 : i32, i32
  }
  func.func @transform_7(%arg0: i32) -> (i32, i32) {
    %c0_i32 = arith.constant 0 : i32
    %c0_i32_0 = arith.constant 0 : i32
    %c0_i32_1 = arith.constant 0 : i32
    return %c0_i32, %c0_i32_0 : i32, i32
  }
  func.func @transform_8(%arg0: i32) -> (i32, i32) {
    %c0_i32 = arith.constant 0 : i32
    %c0_i32_0 = arith.constant 0 : i32
    %c0_i32_1 = arith.constant 0 : i32
    return %c0_i32, %c0_i32_0 : i32, i32
  }
  func.func @transform_9(%arg0: i32) -> (i32, i32) {
    %c0_i32 = arith.constant 0 : i32
    %c0_i32_0 = arith.constant 0 : i32
    %c0_i32_1 = arith.constant 0 : i32
    return %c0_i32, %c0_i32_0 : i32, i32
  }
  func.func @transform_10(%arg0: i32) -> (i32, i32) {
    %c0_i32 = arith.constant 0 : i32
    %c0_i32_0 = arith.constant 0 : i32
    %c0_i32_1 = arith.constant 0 : i32
    return %c0_i32, %c0_i32_0 : i32, i32
  }
  func.func @transform_11(%arg0: i32) -> (i32, i32) {
    %c0_i32 = arith.constant 0 : i32
    %c0_i32_0 = arith.constant 0 : i32
    return %arg0, %c0_i32 : i32, i32
  }
}

</mosaic_0001>

<llo_original>
// kernel: transformer_disc_head.1
$region0: #{transformer_disc_head.1}
  #allocation0 [shape = 'u32[]', space=smem, size = 0x4, offset = 0x4, fixed_abs, tag = 'smem constant byte address 0x4 - core index']
  #allocation1 [shape = 'u32[72,128]{1,0:T(1,128)}', space=vmem, size = 0x9000, scoped, tag = 'internal scratch']
  #allocation2 [shape = 'f32[1,1]{1,0:T(1,128)S(6)}', space=smem, size = 0x200, scoped, tag = 'scoped memory for transformer_disc_head.1']
  %s0 = inlined_call_operand.vmem [shape: bf16[8,8,3072], index: 0, kind: input, shape index: {}]
  %s1 = inlined_call_operand.vmem [shape: bf16[3072,64], index: 1, kind: input, shape index: {}]
  %s2 = inlined_call_operand.vmem [shape: f32[1,64], index: 2, kind: input, shape index: {}]
  %s3 = inlined_call_operand.vmem [shape: f32[64,64], index: 3, kind: input, shape index: {}]
  %s4 = inlined_call_operand.vmem [shape: f32[1,64], index: 4, kind: input, shape index: {}]
  %s5 = inlined_call_operand.vmem [shape: f32[1,64], index: 5, kind: input, shape index: {}]
  %s6 = inlined_call_operand.vmem [shape: f32[1,64], index: 6, kind: input, shape index: {}]
  %s7 = inlined_call_operand.vmem [shape: f32[1,64], index: 7, kind: input, shape index: {}]
  %s8 = inlined_call_operand.<no memory space> [shape: f32[1,1], index: 8, kind: input, shape index: {}]
  %s9 = inlined_call_operand.vmem [shape: f32[1,64], index: 9, kind: input, shape index: {}]
  %s10 = inlined_call_operand.vmem [shape: f32[1,64], index: 10, kind: input, shape index: {}]
  %s11 = inlined_call_operand.vmem [shape: f32[8,64], index: 11, kind: output, shape index: {}]
  %s12 = sld [smem:[#allocation0]]
  $region54: #{transformer_disc_head.1} parent=0
    _
  %s14 = ssub.s32 1, %s12
  %s15 = scalar_select 0, %s14, %s12
  %16 = sst [smem:[#allocation2]] %s8
  // Predicated region
  $region2: #{transformer_disc_head.1} parent=0 // pred_check
    _
  $region3: #{transformer_disc_head.1} parent=0 // pred_check_branch
    %18 = sbr.rel (0) target = $region5
  $region4: #{transformer_disc_head.1} parent=0 // pred_region
    _
  $region5: #{transformer_disc_head.1} parent=0 // pred_fallthru
    _
  // Predicated region
  $region6: #{transformer_disc_head.1} parent=0 // pred_check
    _
  $region7: #{transformer_disc_head.1} parent=0 // pred_check_branch
    %20 = sbr.rel (0) target = $region9
  $region8: #{transformer_disc_head.1} parent=0 // pred_region
    _
  $region9: #{transformer_disc_head.1} parent=0 // pred_fallthru
    _
  // Predicated region
  $region10: #{transformer_disc_head.1} parent=0 // pred_check
    _
  $region11: #{transformer_disc_head.1} parent=0 // pred_check_branch
    %22 = sbr.rel (0) target = $region13
  $region12: #{transformer_disc_head.1} parent=0 // pred_region
    _
  $region13: #{transformer_disc_head.1} parent=0 // pred_fallthru
    _
  // Predicated region
  $region14: #{transformer_disc_head.1} parent=0 // pred_check
    _
  $region15: #{transformer_disc_head.1} parent=0 // pred_check_branch
    %24 = sbr.rel (0) target = $region17
  $region16: #{transformer_disc_head.1} parent=0 // pred_region
    _
  $region17: #{transformer_disc_head.1} parent=0 // pred_fallthru
    _
  // Predicated region
  $region18: #{transformer_disc_head.1} parent=0 // pred_check
    _
  $region19: #{transformer_disc_head.1} parent=0 // pred_check_branch
    %26 = sbr.rel (0) target = $region21
  $region20: #{transformer_disc_head.1} parent=0 // pred_region
    _
  $region21: #{transformer_disc_head.1} parent=0 // pred_fallthru
    _
  // Predicated region
  $region22: #{transformer_disc_head.1} parent=0 // pred_check
    _
  $region23: #{transformer_disc_head.1} parent=0 // pred_check_branch
    %28 = sbr.rel (0) target = $region25
  $region24: #{transformer_disc_head.1} parent=0 // pred_region
    _
  $region25: #{transformer_disc_head.1} parent=0 // pred_fallthru
    _
  // Predicated region
  $region26: #{transformer_disc_head.1} parent=0 // pred_check
    _
  $region27: #{transformer_disc_head.1} parent=0 // pred_check_branch
    %30 = sbr.rel (0) target = $region29
  $region28: #{transformer_disc_head.1} parent=0 // pred_region
    _
  $region29: #{transformer_disc_head.1} parent=0 // pred_fallthru
    _
  // Predicated region
  $region30: #{transformer_disc_head.1} parent=0 // pred_check
    _
  $region31: #{transformer_disc_head.1} parent=0 // pred_check_branch
    %32 = sbr.rel (0) target = $region33
  $region32: #{transformer_disc_head.1} parent=0 // pred_region
    _
  $region33: #{transformer_disc_head.1} parent=0 // pred_fallthru
    _
  // Predicated region
  $region34: #{transformer_disc_head.1} parent=0 // pred_check
    _
  $region35: #{transformer_disc_head.1} parent=0 // pred_check_branch
    %34 = sbr.rel (0) target = $region37
  $region36: #{transformer_disc_head.1} parent=0 // pred_region
    _
  $region37: #{transformer_disc_head.1} parent=0 // pred_fallthru
    _
  // Predicated region
  $region38: #{transformer_disc_head.1} parent=0 // pred_check
    _
  $region39: #{transformer_disc_head.1} parent=0 // pred_check_branch
    %36 = sbr.rel (0) target = $region41
  $region40: #{transformer_disc_head.1} parent=0 // pred_region
    _
  $region41: #{transformer_disc_head.1} parent=0 // pred_fallthru
    _
  // Predicated region
  $region42: #{transformer_disc_head.1} parent=0 // pred_check
    _
  $region43: #{transformer_disc_head.1} parent=0 // pred_check_branch
    %38 = sbr.rel (0) target = $region45
  $region44: #{transformer_disc_head.1} parent=0 // pred_region
    _
  $region45: #{transformer_disc_head.1} parent=0 // pred_fallthru
    _
  %v39 = vld [vmem:[%s0] sm:$0xff]
  %v40 = vld [vmem:[%s0 + $0x8] sm:$0xff]
  %v41 = vld [vmem:[%s0 + $0x10] sm:$0xff]
  %v42 = vld [vmem:[%s0 + $0x18] sm:$0xff]
  %v43 = vld [vmem:[%s0 + $0x20] sm:$0xff]
  %v44 = vld [vmem:[%s0 + $0x28] sm:$0xff]
  %v45 = vld [vmem:[%s0 + $0x30] sm:$0xff]
  %v46 = vld [vmem:[%s0 + $0x38] sm:$0xff]
  %v47 = vld [vmem:[%s0 + $0x40] sm:$0xff]
  %v48 = vld [vmem:[%s0 + $0x48] sm:$0xff]
  %v49 = vld [vmem:[%s0 + $0x50] sm:$0xff]
  %v50 = vld [vmem:[%s0 + $0x58] sm:$0xff]
  %v51 = vld [vmem:[%s0 + $0x60] sm:$0xff]
  %v52 = vld [vmem:[%s0 + $0x68] sm:$0xff]
  %v53 = vld [vmem:[%s0 + $0x70] sm:$0xff]
  %v54 = vld [vmem:[%s0 + $0x78] sm:$0xff]
  %v55 = vld [vmem:[%s0 + $0x80] sm:$0xff]
  %v56 = vld [vmem:[%s0 + $0x88] sm:$0xff]
  %v57 = vld [vmem:[%s0 + $0x90] sm:$0xff]
  %v58 = vld [vmem:[%s0 + $0x98] sm:$0xff]
  %v59 = vld [vmem:[%s0 + $0xa0] sm:$0xff]
  %v60 = vld [vmem:[%s0 + $0xa8] sm:$0xff]
  %v61 = vld [vmem:[%s0 + $0xb0] sm:$0xff]
  %v62 = vld [vmem:[%s0 + $0xb8] sm:$0xff]
  %v63 = vld [vmem:[%s0 + $0xc0] sm:$0xff]
  %v64 = vld [vmem:[%s0 + $0xc8] sm:$0xff]
  %v65 = vld [vmem:[%s0 + $0xd0] sm:$0xff]
  %v66 = vld [vmem:[%s0 + $0xd8] sm:$0xff]
  %v67 = vld [vmem:[%s0 + $0xe0] sm:$0xff]
  %v68 = vld [vmem:[%s0 + $0xe8] sm:$0xff]
  %v69 = vld [vmem:[%s0 + $0xf0] sm:$0xff]
  %v70 = vld [vmem:[%s0 + $0xf8] sm:$0xff]
  %v71 = vld [vmem:[%s0 + $0x100] sm:$0xff]
  %v72 = vld [vmem:[%s0 + $0x108] sm:$0xff]
  %v73 = vld [vmem:[%s0 + $0x110] sm:$0xff]
  %v74 = vld [vmem:[%s0 + $0x118] sm:$0xff]
  %v75 = vld [vmem:[%s0 + $0x120] sm:$0xff]
  %v76 = vld [vmem:[%s0 + $0x128] sm:$0xff]
  %v77 = vld [vmem:[%s0 + $0x130] sm:$0xff]
  %v78 = vld [vmem:[%s0 + $0x138] sm:$0xff]
  %v79 = vld [vmem:[%s0 + $0x140] sm:$0xff]
  %v80 = vld [vmem:[%s0 + $0x148] sm:$0xff]
  %v81 = vld [vmem:[%s0 + $0x150] sm:$0xff]
  %v82 = vld [vmem:[%s0 + $0x158] sm:$0xff]
  %v83 = vld [vmem:[%s0 + $0x160] sm:$0xff]
  %v84 = vld [vmem:[%s0 + $0x168] sm:$0xff]
  %v85 = vld [vmem:[%s0 + $0x170] sm:$0xff]
  %v86 = vld [vmem:[%s0 + $0x178] sm:$0xff]
  %v87 = vld [vmem:[%s0 + $0x180] sm:$0xff]
  %v88 = vld [vmem:[%s0 + $0x188] sm:$0xff]
  %v89 = vld [vmem:[%s0 + $0x190] sm:$0xff]
  %v90 = vld [vmem:[%s0 + $0x198] sm:$0xff]
  %v91 = vld [vmem:[%s0 + $0x1a0] sm:$0xff]
  %v92 = vld [vmem:[%s0 + $0x1a8] sm:$0xff]
  %v93 = vld [vmem:[%s0 + $0x1b0] sm:$0xff]
  %v94 = vld [vmem:[%s0 + $0x1b8] sm:$0xff]
  %v95 = vld [vmem:[%s0 + $0x1c0] sm:$0xff]
  %v96 = vld [vmem:[%s0 + $0x1c8] sm:$0xff]
  %v97 = vld [vmem:[%s0 + $0x1d0] sm:$0xff]
  %v98 = vld [vmem:[%s0 + $0x1d8] sm:$0xff]
  %v99 = vld [vmem:[%s0 + $0x1e0] sm:$0xff]
  %v100 = vld [vmem:[%s0 + $0x1e8] sm:$0xff]
  %v101 = vld [vmem:[%s0 + $0x1f0] sm:$0xff]
  %v102 = vld [vmem:[%s0 + $0x1f8] sm:$0xff]
  %v103 = vld [vmem:[%s0 + $0x200] sm:$0xff]
  %v104 = vld [vmem:[%s0 + $0x208] sm:$0xff]
  %v105 = vld [vmem:[%s0 + $0x210] sm:$0xff]
  %v106 = vld [vmem:[%s0 + $0x218] sm:$0xff]
  %v107 = vld [vmem:[%s0 + $0x220] sm:$0xff]
  %v108 = vld [vmem:[%s0 + $0x228] sm:$0xff]
  %v109 = vld [vmem:[%s0 + $0x230] sm:$0xff]
  %v110 = vld [vmem:[%s0 + $0x238] sm:$0xff]
  %v111 = vld [vmem:[%s0 + $0x240] sm:$0xff]
  %v112 = vld [vmem:[%s0 + $0x248] sm:$0xff]
  %v113 = vld [vmem:[%s0 + $0x250] sm:$0xff]
  %v114 = vld [vmem:[%s0 + $0x258] sm:$0xff]
  %v115 = vld [vmem:[%s0 + $0x260] sm:$0xff]
  %v116 = vld [vmem:[%s0 + $0x268] sm:$0xff]
  %v117 = vld [vmem:[%s0 + $0x270] sm:$0xff]
  %v118 = vld [vmem:[%s0 + $0x278] sm:$0xff]
  %v119 = vld [vmem:[%s0 + $0x280] sm:$0xff]
  %v120 = vld [vmem:[%s0 + $0x288] sm:$0xff]
  %v121 = vld [vmem:[%s0 + $0x290] sm:$0xff]
  %v122 = vld [vmem:[%s0 + $0x298] sm:$0xff]
  %v123 = vld [vmem:[%s0 + $0x2a0] sm:$0xff]
  %v124 = vld [vmem:[%s0 + $0x2a8] sm:$0xff]
  %v125 = vld [vmem:[%s0 + $0x2b0] sm:$0xff]
  %v126 = vld [vmem:[%s0 + $0x2b8] sm:$0xff]
  %v127 = vld [vmem:[%s0 + $0x2c0] sm:$0xff]
  %v128 = vld [vmem:[%s0 + $0x2c8] sm:$0xff]
  %v129 = vld [vmem:[%s0 + $0x2d0] sm:$0xff]
  %v130 = vld [vmem:[%s0 + $0x2d8] sm:$0xff]
  %v131 = vld [vmem:[%s0 + $0x2e0] sm:$0xff]
  %v132 = vld [vmem:[%s0 + $0x2e8] sm:$0xff]
  %v133 = vld [vmem:[%s0 + $0x2f0] sm:$0xff]
  %v134 = vld [vmem:[%s0 + $0x2f8] sm:$0xff]
  %v135 = vunpack.c.l.bf16 %v39
  %v136 = vunpack.c.h.bf16 %v39
  %v137 = vunpack.c.l.bf16 %v40
  %v138 = vunpack.c.h.bf16 %v40
  %v139 = vunpack.c.l.bf16 %v41
  %v140 = vunpack.c.h.bf16 %v41
  %v141 = vunpack.c.l.bf16 %v42
  %v142 = vunpack.c.h.bf16 %v42
  %v143 = vunpack.c.l.bf16 %v43
  %v144 = vunpack.c.h.bf16 %v43
  %v145 = vunpack.c.l.bf16 %v44
  %v146 = vunpack.c.h.bf16 %v44
  %v147 = vunpack.c.l.bf16 %v45
  %v148 = vunpack.c.h.bf16 %v45
  %v149 = vunpack.c.l.bf16 %v46
  %v150 = vunpack.c.h.bf16 %v46
  %v151 = vunpack.c.l.bf16 %v47
  %v152 = vunpack.c.h.bf16 %v47
  %v153 = vunpack.c.l.bf16 %v48
  %v154 = vunpack.c.h.bf16 %v48
  %v155 = vunpack.c.l.bf16 %v49
  %v156 = vunpack.c.h.bf16 %v49
  %v157 = vunpack.c.l.bf16 %v50
  %v158 = vunpack.c.h.bf16 %v50
  %v159 = vunpack.c.l.bf16 %v51
  %v160 = vunpack.c.h.bf16 %v51
  %v161 = vunpack.c.l.bf16 %v52
  %v162 = vunpack.c.h.bf16 %v52
  %v163 = vunpack.c.l.bf16 %v53
  %v164 = vunpack.c.h.bf16 %v53
  %v165 = vunpack.c.l.bf16 %v54
  %v166 = vunpack.c.h.bf16 %v54
  %v167 = vunpack.c.l.bf16 %v55
  %v168 = vunpack.c.h.bf16 %v55
  %v169 = vunpack.c.l.bf16 %v56
  %v170 = vunpack.c.h.bf16 %v56
  %v171 = vunpack.c.l.bf16 %v57
  %v172 = vunpack.c.h.bf16 %v57
  %v173 = vunpack.c.l.bf16 %v58
  %v174 = vunpack.c.h.bf16 %v58
  %v175 = vunpack.c.l.bf16 %v59
  %v176 = vunpack.c.h.bf16 %v59
  %v177 = vunpack.c.l.bf16 %v60
  %v178 = vunpack.c.h.bf16 %v60
  %v179 = vunpack.c.l.bf16 %v61
  %v180 = vunpack.c.h.bf16 %v61
  %v181 = vunpack.c.l.bf16 %v62
  %v182 = vunpack.c.h.bf16 %v62
  %v183 = vunpack.c.l.bf16 %v63
  %v184 = vunpack.c.h.bf16 %v63
  %v185 = vunpack.c.l.bf16 %v64
  %v186 = vunpack.c.h.bf16 %v64
  %v187 = vunpack.c.l.bf16 %v65
  %v188 = vunpack.c.h.bf16 %v65
  %v189 = vunpack.c.l.bf16 %v66
  %v190 = vunpack.c.h.bf16 %v66
  %v191 = vunpack.c.l.bf16 %v67
  %v192 = vunpack.c.h.bf16 %v67
  %v193 = vunpack.c.l.bf16 %v68
  %v194 = vunpack.c.h.bf16 %v68
  %v195 = vunpack.c.l.bf16 %v69
  %v196 = vunpack.c.h.bf16 %v69
  %v197 = vunpack.c.l.bf16 %v70
  %v198 = vunpack.c.h.bf16 %v70
  %v199 = vunpack.c.l.bf16 %v71
  %v200 = vunpack.c.h.bf16 %v71
  %v201 = vunpack.c.l.bf16 %v72
  %v202 = vunpack.c.h.bf16 %v72
  %v203 = vunpack.c.l.bf16 %v73
  %v204 = vunpack.c.h.bf16 %v73
  %v205 = vunpack.c.l.bf16 %v74
  %v206 = vunpack.c.h.bf16 %v74
  %v207 = vunpack.c.l.bf16 %v75
  %v208 = vunpack.c.h.bf16 %v75
  %v209 = vunpack.c.l.bf16 %v76
  %v210 = vunpack.c.h.bf16 %v76
  %v211 = vunpack.c.l.bf16 %v77
  %v212 = vunpack.c.h.bf16 %v77
  %v213 = vunpack.c.l.bf16 %v78
  %v214 = vunpack.c.h.bf16 %v78
  %v215 = vunpack.c.l.bf16 %v79
  %v216 = vunpack.c.h.bf16 %v79
  %v217 = vunpack.c.l.bf16 %v80
  %v218 = vunpack.c.h.bf16 %v80
  %v219 = vunpack.c.l.bf16 %v81
  %v220 = vunpack.c.h.bf16 %v81
  %v221 = vunpack.c.l.bf16 %v82
  %v222 = vunpack.c.h.bf16 %v82
  %v223 = vunpack.c.l.bf16 %v83
  %v224 = vunpack.c.h.bf16 %v83
  %v225 = vunpack.c.l.bf16 %v84
  %v226 = vunpack.c.h.bf16 %v84
  %v227 = vunpack.c.l.bf16 %v85
  %v228 = vunpack.c.h.bf16 %v85
  %v229 = vunpack.c.l.bf16 %v86
  %v230 = vunpack.c.h.bf16 %v86
  %v231 = vunpack.c.l.bf16 %v87
  %v232 = vunpack.c.h.bf16 %v87
  %v233 = vunpack.c.l.bf16 %v88
  %v234 = vunpack.c.h.bf16 %v88
  %v235 = vunpack.c.l.bf16 %v89
  %v236 = vunpack.c.h.bf16 %v89
  %v237 = vunpack.c.l.bf16 %v90
  %v238 = vunpack.c.h.bf16 %v90
  %v239 = vunpack.c.l.bf16 %v91
  %v240 = vunpack.c.h.bf16 %v91
  %v241 = vunpack.c.l.bf16 %v92
  %v242 = vunpack.c.h.bf16 %v92
  %v243 = vunpack.c.l.bf16 %v93
  %v244 = vunpack.c.h.bf16 %v93
  %v245 = vunpack.c.l.bf16 %v94
  %v246 = vunpack.c.h.bf16 %v94
  %v247 = vunpack.c.l.bf16 %v95
  %v248 = vunpack.c.h.bf16 %v95
  %v249 = vunpack.c.l.bf16 %v96
  %v250 = vunpack.c.h.bf16 %v96
  %v251 = vunpack.c.l.bf16 %v97
  %v252 = vunpack.c.h.bf16 %v97
  %v253 = vunpack.c.l.bf16 %v98
  %v254 = vunpack.c.h.bf16 %v98
  %v255 = vunpack.c.l.bf16 %v99
  %v256 = vunpack.c.h.bf16 %v99
  %v257 = vunpack.c.l.bf16 %v100
  %v258 = vunpack.c.h.bf16 %v100
  %v259 = vunpack.c.l.bf16 %v101
  %v260 = vunpack.c.h.bf16 %v101
  %v261 = vunpack.c.l.bf16 %v102
  %v262 = vunpack.c.h.bf16 %v102
  %v263 = vunpack.c.l.bf16 %v103
  %v264 = vunpack.c.h.bf16 %v103
  %v265 = vunpack.c.l.bf16 %v104
  %v266 = vunpack.c.h.bf16 %v104
  %v267 = vunpack.c.l.bf16 %v105
  %v268 = vunpack.c.h.bf16 %v105
  %v269 = vunpack.c.l.bf16 %v106
  %v270 = vunpack.c.h.bf16 %v106
  %v271 = vunpack.c.l.bf16 %v107
  %v272 = vunpack.c.h.bf16 %v107
  %v273 = vunpack.c.l.bf16 %v108
  %v274 = vunpack.c.h.bf16 %v108
  %v275 = vunpack.c.l.bf16 %v109
  %v276 = vunpack.c.h.bf16 %v109
  %v277 = vunpack.c.l.bf16 %v110
  %v278 = vunpack.c.h.bf16 %v110
  %v279 = vunpack.c.l.bf16 %v111
  %v280 = vunpack.c.h.bf16 %v111
  %v281 = vunpack.c.l.bf16 %v112
  %v282 = vunpack.c.h.bf16 %v112
  %v283 = vunpack.c.l.bf16 %v113
  %v284 = vunpack.c.h.bf16 %v113
  %v285 = vunpack.c.l.bf16 %v114
  %v286 = vunpack.c.h.bf16 %v114
  %v287 = vunpack.c.l.bf16 %v115
  %v288 = vunpack.c.h.bf16 %v115
  %v289 = vunpack.c.l.bf16 %v116
  %v290 = vunpack.c.h.bf16 %v116
  %v291 = vunpack.c.l.bf16 %v117
  %v292 = vunpack.c.h.bf16 %v117
  %v293 = vunpack.c.l.bf16 %v118
  %v294 = vunpack.c.h.bf16 %v118
  %v295 = vunpack.c.l.bf16 %v119
  %v296 = vunpack.c.h.bf16 %v119
  %v297 = vunpack.c.l.bf16 %v120
  %v298 = vunpack.c.h.bf16 %v120
  %v299 = vunpack.c.l.bf16 %v121
  %v300 = vunpack.c.h.bf16 %v121
  %v301 = vunpack.c.l.bf16 %v122
  %v302 = vunpack.c.h.bf16 %v122
  %v303 = vunpack.c.l.bf16 %v123
  %v304 = vunpack.c.h.bf16 %v123
  %v305 = vunpack.c.l.bf16 %v124
  %v306 = vunpack.c.h.bf16 %v124
  %v307 = vunpack.c.l.bf16 %v125
  %v308 = vunpack.c.h.bf16 %v125
  %v309 = vunpack.c.l.bf16 %v126
  %v310 = vunpack.c.h.bf16 %v126
  %v311 = vunpack.c.l.bf16 %v127
  %v312 = vunpack.c.h.bf16 %v127
  %v313 = vunpack.c.l.bf16 %v128
  %v314 = vunpack.c.h.bf16 %v128
  %v315 = vunpack.c.l.bf16 %v129
  %v316 = vunpack.c.h.bf16 %v129
  %v317 = vunpack.c.l.bf16 %v130
  %v318 = vunpack.c.h.bf16 %v130
  %v319 = vunpack.c.l.bf16 %v131
  %v320 = vunpack.c.h.bf16 %v131
  %v321 = vunpack.c.l.bf16 %v132
  %v322 = vunpack.c.h.bf16 %v132
  %v323 = vunpack.c.l.bf16 %v133
  %v324 = vunpack.c.h.bf16 %v133
  %v325 = vunpack.c.l.bf16 %v134
  %v326 = vunpack.c.h.bf16 %v134
  %v327 = vrot.slane %v135, 4
  %v328 = vadd.f32 %v135, %v327
  %v329 = vrot.slane %v328, 2
  %v330 = vadd.f32 %v328, %v329
  %v331 = vrot.slane %v330, 1
  %v332 = vadd.f32 %v330, %v331
  %v333 = vrot.slane %v136, 4
  %v334 = vadd.f32 %v136, %v333
  %v335 = vrot.slane %v334, 2
  %v336 = vadd.f32 %v334, %v335
  %v337 = vrot.slane %v336, 1
  %v338 = vadd.f32 %v336, %v337
  %v339 = vrot.slane %v137, 4
  %v340 = vadd.f32 %v137, %v339
  %v341 = vrot.slane %v340, 2
  %v342 = vadd.f32 %v340, %v341
  %v343 = vrot.slane %v342, 1
  %v344 = vadd.f32 %v342, %v343
  %v345 = vrot.slane %v138, 4
  %v346 = vadd.f32 %v138, %v345
  %v347 = vrot.slane %v346, 2
  %v348 = vadd.f32 %v346, %v347
  %v349 = vrot.slane %v348, 1
  %v350 = vadd.f32 %v348, %v349
  %v351 = vrot.slane %v139, 4
  %v352 = vadd.f32 %v139, %v351
  %v353 = vrot.slane %v352, 2
  %v354 = vadd.f32 %v352, %v353
  %v355 = vrot.slane %v354, 1
  %v356 = vadd.f32 %v354, %v355
  %v357 = vrot.slane %v140, 4
  %v358 = vadd.f32 %v140, %v357
  %v359 = vrot.slane %v358, 2
  %v360 = vadd.f32 %v358, %v359
  %v361 = vrot.slane %v360, 1
  %v362 = vadd.f32 %v360, %v361
  %v363 = vrot.slane %v141, 4
  %v364 = vadd.f32 %v141, %v363
  %v365 = vrot.slane %v364, 2
  %v366 = vadd.f32 %v364, %v365
  %v367 = vrot.slane %v366, 1
  %v368 = vadd.f32 %v366, %v367
  %v369 = vrot.slane %v142, 4
  %v370 = vadd.f32 %v142, %v369
  %v371 = vrot.slane %v370, 2
  %v372 = vadd.f32 %v370, %v371
  %v373 = vrot.slane %v372, 1
  %v374 = vadd.f32 %v372, %v373
  %v375 = vrot.slane %v143, 4
  %v376 = vadd.f32 %v143, %v375
  %v377 = vrot.slane %v376, 2
  %v378 = vadd.f32 %v376, %v377
  %v379 = vrot.slane %v378, 1
  %v380 = vadd.f32 %v378, %v379
  %v381 = vrot.slane %v144, 4
  %v382 = vadd.f32 %v144, %v381
  %v383 = vrot.slane %v382, 2
  %v384 = vadd.f32 %v382, %v383
  %v385 = vrot.slane %v384, 1
  %v386 = vadd.f32 %v384, %v385
  %v387 = vrot.slane %v145, 4
  %v388 = vadd.f32 %v145, %v387
  %v389 = vrot.slane %v388, 2
  %v390 = vadd.f32 %v388, %v389
  %v391 = vrot.slane %v390, 1
  %v392 = vadd.f32 %v390, %v391
  %v393 = vrot.slane %v146, 4
  %v394 = vadd.f32 %v146, %v393
  %v395 = vrot.slane %v394, 2
  %v396 = vadd.f32 %v394, %v395
  %v397 = vrot.slane %v396, 1
  %v398 = vadd.f32 %v396, %v397
  %v399 = vrot.slane %v147, 4
  %v400 = vadd.f32 %v147, %v399
  %v401 = vrot.slane %v400, 2
  %v402 = vadd.f32 %v400, %v401
  %v403 = vrot.slane %v402, 1
  %v404 = vadd.f32 %v402, %v403
  %v405 = vrot.slane %v148, 4
  %v406 = vadd.f32 %v148, %v405
  %v407 = vrot.slane %v406, 2
  %v408 = vadd.f32 %v406, %v407
  %v409 = vrot.slane %v408, 1
  %v410 = vadd.f32 %v408, %v409
  %v411 = vrot.slane %v149, 4
  %v412 = vadd.f32 %v149, %v411
  %v413 = vrot.slane %v412, 2
  %v414 = vadd.f32 %v412, %v413
  %v415 = vrot.slane %v414, 1
  %v416 = vadd.f32 %v414, %v415
  %v417 = vrot.slane %v150, 4
  %v418 = vadd.f32 %v150, %v417
  %v419 = vrot.slane %v418, 2
  %v420 = vadd.f32 %v418, %v419
  %v421 = vrot.slane %v420, 1
  %v422 = vadd.f32 %v420, %v421
  %v423 = vrot.slane %v151, 4
  %v424 = vadd.f32 %v151, %v423
  %v425 = vrot.slane %v424, 2
  %v426 = vadd.f32 %v424, %v425
  %v427 = vrot.slane %v426, 1
  %v428 = vadd.f32 %v426, %v427
  %v429 = vrot.slane %v152, 4
  %v430 = vadd.f32 %v152, %v429
  %v431 = vrot.slane %v430, 2
  %v432 = vadd.f32 %v430, %v431
  %v433 = vrot.slane %v432, 1
  %v434 = vadd.f32 %v432, %v433
  %v435 = vrot.slane %v153, 4
  %v436 = vadd.f32 %v153, %v435
  %v437 = vrot.slane %v436, 2
  %v438 = vadd.f32 %v436, %v437
  %v439 = vrot.slane %v438, 1
  %v440 = vadd.f32 %v438, %v439
  %v441 = vrot.slane %v154, 4
  %v442 = vadd.f32 %v154, %v441
  %v443 = vrot.slane %v442, 2
  %v444 = vadd.f32 %v442, %v443
  %v445 = vrot.slane %v444, 1
  %v446 = vadd.f32 %v444, %v445
  %v447 = vrot.slane %v155, 4
  %v448 = vadd.f32 %v155, %v447
  %v449 = vrot.slane %v448, 2
  %v450 = vadd.f32 %v448, %v449
  %v451 = vrot.slane %v450, 1
  %v452 = vadd.f32 %v450, %v451
  %v453 = vrot.slane %v156, 4
  %v454 = vadd.f32 %v156, %v453
  %v455 = vrot.slane %v454, 2
  %v456 = vadd.f32 %v454, %v455
  %v457 = vrot.slane %v456, 1
  %v458 = vadd.f32 %v456, %v457
  %v459 = vrot.slane %v157, 4
  %v460 = vadd.f32 %v157, %v459
  %v461 = vrot.slane %v460, 2
  %v462 = vadd.f32 %v460, %v461
  %v463 = vrot.slane %v462, 1
  %v464 = vadd.f32 %v462, %v463
  %v465 = vrot.slane %v158, 4
  %v466 = vadd.f32 %v158, %v465
  %v467 = vrot.slane %v466, 2
  %v468 = vadd.f32 %v466, %v467
  %v469 = vrot.slane %v468, 1
  %v470 = vadd.f32 %v468, %v469
  %v471 = vrot.slane %v159, 4
  %v472 = vadd.f32 %v159, %v471
  %v473 = vrot.slane %v472, 2
  %v474 = vadd.f32 %v472, %v473
  %v475 = vrot.slane %v474, 1
  %v476 = vadd.f32 %v474, %v475
  %v477 = vrot.slane %v160, 4
  %v478 = vadd.f32 %v160, %v477
  %v479 = vrot.slane %v478, 2
  %v480 = vadd.f32 %v478, %v479
  %v481 = vrot.slane %v480, 1
  %v482 = vadd.f32 %v480, %v481
  %v483 = vrot.slane %v161, 4
  %v484 = vadd.f32 %v161, %v483
  %v485 = vrot.slane %v484, 2
  %v486 = vadd.f32 %v484, %v485
  %v487 = vrot.slane %v486, 1
  %v488 = vadd.f32 %v486, %v487
  %v489 = vrot.slane %v162, 4
  %v490 = vadd.f32 %v162, %v489
  %v491 = vrot.slane %v490, 2
  %v492 = vadd.f32 %v490, %v491
  %v493 = vrot.slane %v492, 1
  %v494 = vadd.f32 %v492, %v493
  %v495 = vrot.slane %v163, 4
  %v496 = vadd.f32 %v163, %v495
  %v497 = vrot.slane %v496, 2
  %v498 = vadd.f32 %v496, %v497
  %v499 = vrot.slane %v498, 1
  %v500 = vadd.f32 %v498, %v499
  %v501 = vrot.slane %v164, 4
  %v502 = vadd.f32 %v164, %v501
  %v503 = vrot.slane %v502, 2
  %v504 = vadd.f32 %v502, %v503
  %v505 = vrot.slane %v504, 1
  %v506 = vadd.f32 %v504, %v505
  %v507 = vrot.slane %v165, 4
  %v508 = vadd.f32 %v165, %v507
  %v509 = vrot.slane %v508, 2
  %v510 = vadd.f32 %v508, %v509
  %v511 = vrot.slane %v510, 1
  %v512 = vadd.f32 %v510, %v511
  %v513 = vrot.slane %v166, 4
  %v514 = vadd.f32 %v166, %v513
  %v515 = vrot.slane %v514, 2
  %v516 = vadd.f32 %v514, %v515
  %v517 = vrot.slane %v516, 1
  %v518 = vadd.f32 %v516, %v517
  %v519 = vrot.slane %v167, 4
  %v520 = vadd.f32 %v167, %v519
  %v521 = vrot.slane %v520, 2
  %v522 = vadd.f32 %v520, %v521
  %v523 = vrot.slane %v522, 1
  %v524 = vadd.f32 %v522, %v523
  %v525 = vrot.slane %v168, 4
  %v526 = vadd.f32 %v168, %v525
  %v527 = vrot.slane %v526, 2
  %v528 = vadd.f32 %v526, %v527
  %v529 = vrot.slane %v528, 1
  %v530 = vadd.f32 %v528, %v529
  %v531 = vrot.slane %v169, 4
  %v532 = vadd.f32 %v169, %v531
  %v533 = vrot.slane %v532, 2
  %v534 = vadd.f32 %v532, %v533
  %v535 = vrot.slane %v534, 1
  %v536 = vadd.f32 %v534, %v535
  %v537 = vrot.slane %v170, 4
  %v538 = vadd.f32 %v170, %v537
  %v539 = vrot.slane %v538, 2
  %v540 = vadd.f32 %v538, %v539
  %v541 = vrot.slane %v540, 1
  %v542 = vadd.f32 %v540, %v541
  %v543 = vrot.slane %v171, 4
  %v544 = vadd.f32 %v171, %v543
  %v545 = vrot.slane %v544, 2
  %v546 = vadd.f32 %v544, %v545
  %v547 = vrot.slane %v546, 1
  %v548 = vadd.f32 %v546, %v547
  %v549 = vrot.slane %v172, 4
  %v550 = vadd.f32 %v172, %v549
  %v551 = vrot.slane %v550, 2
  %v552 = vadd.f32 %v550, %v551
  %v553 = vrot.slane %v552, 1
  %v554 = vadd.f32 %v552, %v553
  %v555 = vrot.slane %v173, 4
  %v556 = vadd.f32 %v173, %v555
  %v557 = vrot.slane %v556, 2
  %v558 = vadd.f32 %v556, %v557
  %v559 = vrot.slane %v558, 1
  %v560 = vadd.f32 %v558, %v559
  %v561 = vrot.slane %v174, 4
  %v562 = vadd.f32 %v174, %v561
  %v563 = vrot.slane %v562, 2
  %v564 = vadd.f32 %v562, %v563
  %v565 = vrot.slane %v564, 1
  %v566 = vadd.f32 %v564, %v565
  %v567 = vrot.slane %v175, 4
  %v568 = vadd.f32 %v175, %v567
  %v569 = vrot.slane %v568, 2
  %v570 = vadd.f32 %v568, %v569
  %v571 = vrot.slane %v570, 1
  %v572 = vadd.f32 %v570, %v571
  %v573 = vrot.slane %v176, 4
  %v574 = vadd.f32 %v176, %v573
  %v575 = vrot.slane %v574, 2
  %v576 = vadd.f32 %v574, %v575
  %v577 = vrot.slane %v576, 1
  %v578 = vadd.f32 %v576, %v577
  %v579 = vrot.slane %v177, 4
  %v580 = vadd.f32 %v177, %v579
  %v581 = vrot.slane %v580, 2
  %v582 = vadd.f32 %v580, %v581
  %v583 = vrot.slane %v582, 1
  %v584 = vadd.f32 %v582, %v583
  %v585 = vrot.slane %v178, 4
  %v586 = vadd.f32 %v178, %v585
  %v587 = vrot.slane %v586, 2
  %v588 = vadd.f32 %v586, %v587
  %v589 = vrot.slane %v588, 1
  %v590 = vadd.f32 %v588, %v589
  %v591 = vrot.slane %v179, 4
  %v592 = vadd.f32 %v179, %v591
  %v593 = vrot.slane %v592, 2
  %v594 = vadd.f32 %v592, %v593
  %v595 = vrot.slane %v594, 1
  %v596 = vadd.f32 %v594, %v595
  %v597 = vrot.slane %v180, 4
  %v598 = vadd.f32 %v180, %v597
  %v599 = vrot.slane %v598, 2
  %v600 = vadd.f32 %v598, %v599
  %v601 = vrot.slane %v600, 1
  %v602 = vadd.f32 %v600, %v601
  %v603 = vrot.slane %v181, 4
  %v604 = vadd.f32 %v181, %v603
  %v605 = vrot.slane %v604, 2
  %v606 = vadd.f32 %v604, %v605
  %v607 = vrot.slane %v606, 1
  %v608 = vadd.f32 %v606, %v607
  %v609 = vrot.slane %v182, 4
  %v610 = vadd.f32 %v182, %v609
  %v611 = vrot.slane %v610, 2
  %v612 = vadd.f32 %v610, %v611
  %v613 = vrot.slane %v612, 1
  %v614 = vadd.f32 %v612, %v613
  %v615 = vrot.slane %v183, 4
  %v616 = vadd.f32 %v183, %v615
  %v617 = vrot.slane %v616, 2
  %v618 = vadd.f32 %v616, %v617
  %v619 = vrot.slane %v618, 1
  %v620 = vadd.f32 %v618, %v619
  %v621 = vrot.slane %v184, 4
  %v622 = vadd.f32 %v184, %v621
  %v623 = vrot.slane %v622, 2
  %v624 = vadd.f32 %v622, %v623
  %v625 = vrot.slane %v624, 1
  %v626 = vadd.f32 %v624, %v625
  %v627 = vrot.slane %v185, 4
  %v628 = vadd.f32 %v185, %v627
  %v629 = vrot.slane %v628, 2
  %v630 = vadd.f32 %v628, %v629
  %v631 = vrot.slane %v630, 1
  %v632 = vadd.f32 %v630, %v631
  %v633 = vrot.slane %v186, 4
  %v634 = vadd.f32 %v186, %v633
  %v635 = vrot.slane %v634, 2
  %v636 = vadd.f32 %v634, %v635
  %v637 = vrot.slane %v636, 1
  %v638 = vadd.f32 %v636, %v637
  %v639 = vrot.slane %v187, 4
  %v640 = vadd.f32 %v187, %v639
  %v641 = vrot.slane %v640, 2
  %v642 = vadd.f32 %v640, %v641
  %v643 = vrot.slane %v642, 1
  %v644 = vadd.f32 %v642, %v643
  %v645 = vrot.slane %v188, 4
  %v646 = vadd.f32 %v188, %v645
  %v647 = vrot.slane %v646, 2
  %v648 = vadd.f32 %v646, %v647
  %v649 = vrot.slane %v648, 1
  %v650 = vadd.f32 %v648, %v649
  %v651 = vrot.slane %v189, 4
  %v652 = vadd.f32 %v189, %v651
  %v653 = vrot.slane %v652, 2
  %v654 = vadd.f32 %v652, %v653
  %v655 = vrot.slane %v654, 1
  %v656 = vadd.f32 %v654, %v655
  %v657 = vrot.slane %v190, 4
  %v658 = vadd.f32 %v190, %v657
  %v659 = vrot.slane %v658, 2
  %v660 = vadd.f32 %v658, %v659
  %v661 = vrot.slane %v660, 1
  %v662 = vadd.f32 %v660, %v661
  %v663 = vrot.slane %v191, 4
  %v664 = vadd.f32 %v191, %v663
  %v665 = vrot.slane %v664, 2
  %v666 = vadd.f32 %v664, %v665
  %v667 = vrot.slane %v666, 1
  %v668 = vadd.f32 %v666, %v667
  %v669 = vrot.slane %v192, 4
  %v670 = vadd.f32 %v192, %v669
  %v671 = vrot.slane %v670, 2
  %v672 = vadd.f32 %v670, %v671
  %v673 = vrot.slane %v672, 1
  %v674 = vadd.f32 %v672, %v673
  %v675 = vrot.slane %v193, 4
  %v676 = vadd.f32 %v193, %v675
  %v677 = vrot.slane %v676, 2
  %v678 = vadd.f32 %v676, %v677
  %v679 = vrot.slane %v678, 1
  %v680 = vadd.f32 %v678, %v679
  %v681 = vrot.slane %v194, 4
  %v682 = vadd.f32 %v194, %v681
  %v683 = vrot.slane %v682, 2
  %v684 = vadd.f32 %v682, %v683
  %v685 = vrot.slane %v684, 1
  %v686 = vadd.f32 %v684, %v685
  %v687 = vrot.slane %v195, 4
  %v688 = vadd.f32 %v195, %v687
  %v689 = vrot.slane %v688, 2
  %v690 = vadd.f32 %v688, %v689
  %v691 = vrot.slane %v690, 1
  %v692 = vadd.f32 %v690, %v691
  %v693 = vrot.slane %v196, 4
  %v694 = vadd.f32 %v196, %v693
  %v695 = vrot.slane %v694, 2
  %v696 = vadd.f32 %v694, %v695
  %v697 = vrot.slane %v696, 1
  %v698 = vadd.f32 %v696, %v697
  %v699 = vrot.slane %v197, 4
  %v700 = vadd.f32 %v197, %v699
  %v701 = vrot.slane %v700, 2
  %v702 = vadd.f32 %v700, %v701
  %v703 = vrot.slane %v702, 1
  %v704 = vadd.f32 %v702, %v703
  %v705 = vrot.slane %v198, 4
  %v706 = vadd.f32 %v198, %v705
  %v707 = vrot.slane %v706, 2
  %v708 = vadd.f32 %v706, %v707
  %v709 = vrot.slane %v708, 1
  %v710 = vadd.f32 %v708, %v709
  %v711 = vrot.slane %v199, 4
  %v712 = vadd.f32 %v199, %v711
  %v713 = vrot.slane %v712, 2
  %v714 = vadd.f32 %v712, %v713
  %v715 = vrot.slane %v714, 1
  %v716 = vadd.f32 %v714, %v715
  %v717 = vrot.slane %v200, 4
  %v718 = vadd.f32 %v200, %v717
  %v719 = vrot.slane %v718, 2
  %v720 = vadd.f32 %v718, %v719
  %v721 = vrot.slane %v720, 1
  %v722 = vadd.f32 %v720, %v721
  %v723 = vrot.slane %v201, 4
  %v724 = vadd.f32 %v201, %v723
  %v725 = vrot.slane %v724, 2
  %v726 = vadd.f32 %v724, %v725
  %v727 = vrot.slane %v726, 1
  %v728 = vadd.f32 %v726, %v727
  %v729 = vrot.slane %v202, 4
  %v730 = vadd.f32 %v202, %v729
  %v731 = vrot.slane %v730, 2
  %v732 = vadd.f32 %v730, %v731
  %v733 = vrot.slane %v732, 1
  %v734 = vadd.f32 %v732, %v733
  %v735 = vrot.slane %v203, 4
  %v736 = vadd.f32 %v203, %v735
  %v737 = vrot.slane %v736, 2
  %v738 = vadd.f32 %v736, %v737
  %v739 = vrot.slane %v738, 1
  %v740 = vadd.f32 %v738, %v739
  %v741 = vrot.slane %v204, 4
  %v742 = vadd.f32 %v204, %v741
  %v743 = vrot.slane %v742, 2
  %v744 = vadd.f32 %v742, %v743
  %v745 = vrot.slane %v744, 1
  %v746 = vadd.f32 %v744, %v745
  %v747 = vrot.slane %v205, 4
  %v748 = vadd.f32 %v205, %v747
  %v749 = vrot.slane %v748, 2
  %v750 = vadd.f32 %v748, %v749
  %v751 = vrot.slane %v750, 1
  %v752 = vadd.f32 %v750, %v751
  %v753 = vrot.slane %v206, 4
  %v754 = vadd.f32 %v206, %v753
  %v755 = vrot.slane %v754, 2
  %v756 = vadd.f32 %v754, %v755
  %v757 = vrot.slane %v756, 1
  %v758 = vadd.f32 %v756, %v757
  %v759 = vrot.slane %v207, 4
  %v760 = vadd.f32 %v207, %v759
  %v761 = vrot.slane %v760, 2
  %v762 = vadd.f32 %v760, %v761
  %v763 = vrot.slane %v762, 1
  %v764 = vadd.f32 %v762, %v763
  %v765 = vrot.slane %v208, 4
  %v766 = vadd.f32 %v208, %v765
  %v767 = vrot.slane %v766, 2
  %v768 = vadd.f32 %v766, %v767
  %v769 = vrot.slane %v768, 1
  %v770 = vadd.f32 %v768, %v769
  %v771 = vrot.slane %v209, 4
  %v772 = vadd.f32 %v209, %v771
  %v773 = vrot.slane %v772, 2
  %v774 = vadd.f32 %v772, %v773
  %v775 = vrot.slane %v774, 1
  %v776 = vadd.f32 %v774, %v775
  %v777 = vrot.slane %v210, 4
  %v778 = vadd.f32 %v210, %v777
  %v779 = vrot.slane %v778, 2
  %v780 = vadd.f32 %v778, %v779
  %v781 = vrot.slane %v780, 1
  %v782 = vadd.f32 %v780, %v781
  %v783 = vrot.slane %v211, 4
  %v784 = vadd.f32 %v211, %v783
  %v785 = vrot.slane %v784, 2
  %v786 = vadd.f32 %v784, %v785
  %v787 = vrot.slane %v786, 1
  %v788 = vadd.f32 %v786, %v787
  %v789 = vrot.slane %v212, 4
  %v790 = vadd.f32 %v212, %v789
  %v791 = vrot.slane %v790, 2
  %v792 = vadd.f32 %v790, %v791
  %v793 = vrot.slane %v792, 1
  %v794 = vadd.f32 %v792, %v793
  %v795 = vrot.slane %v213, 4
  %v796 = vadd.f32 %v213, %v795
  %v797 = vrot.slane %v796, 2
  %v798 = vadd.f32 %v796, %v797
  %v799 = vrot.slane %v798, 1
  %v800 = vadd.f32 %v798, %v799
  %v801 = vrot.slane %v214, 4
  %v802 = vadd.f32 %v214, %v801
  %v803 = vrot.slane %v802, 2
  %v804 = vadd.f32 %v802, %v803
  %v805 = vrot.slane %v804, 1
  %v806 = vadd.f32 %v804, %v805
  %v807 = vrot.slane %v215, 4
  %v808 = vadd.f32 %v215, %v807
  %v809 = vrot.slane %v808, 2
  %v810 = vadd.f32 %v808, %v809
  %v811 = vrot.slane %v810, 1
  %v812 = vadd.f32 %v810, %v811
  %v813 = vrot.slane %v216, 4
  %v814 = vadd.f32 %v216, %v813
  %v815 = vrot.slane %v814, 2
  %v816 = vadd.f32 %v814, %v815
  %v817 = vrot.slane %v816, 1
  %v818 = vadd.f32 %v816, %v817
  %v819 = vrot.slane %v217, 4
  %v820 = vadd.f32 %v217, %v819
  %v821 = vrot.slane %v820, 2
  %v822 = vadd.f32 %v820, %v821
  %v823 = vrot.slane %v822, 1
  %v824 = vadd.f32 %v822, %v823
  %v825 = vrot.slane %v218, 4
  %v826 = vadd.f32 %v218, %v825
  %v827 = vrot.slane %v826, 2
  %v828 = vadd.f32 %v826, %v827
  %v829 = vrot.slane %v828, 1
  %v830 = vadd.f32 %v828, %v829
  %v831 = vrot.slane %v219, 4
  %v832 = vadd.f32 %v219, %v831
  %v833 = vrot.slane %v832, 2
  %v834 = vadd.f32 %v832, %v833
  %v835 = vrot.slane %v834, 1
  %v836 = vadd.f32 %v834, %v835
  %v837 = vrot.slane %v220, 4
  %v838 = vadd.f32 %v220, %v837
  %v839 = vrot.slane %v838, 2
  %v840 = vadd.f32 %v838, %v839
  %v841 = vrot.slane %v840, 1
  %v842 = vadd.f32 %v840, %v841
  %v843 = vrot.slane %v221, 4
  %v844 = vadd.f32 %v221, %v843
  %v845 = vrot.slane %v844, 2
  %v846 = vadd.f32 %v844, %v845
  %v847 = vrot.slane %v846, 1
  %v848 = vadd.f32 %v846, %v847
  %v849 = vrot.slane %v222, 4
  %v850 = vadd.f32 %v222, %v849
  %v851 = vrot.slane %v850, 2
  %v852 = vadd.f32 %v850, %v851
  %v853 = vrot.slane %v852, 1
  %v854 = vadd.f32 %v852, %v853
  %v855 = vrot.slane %v223, 4
  %v856 = vadd.f32 %v223, %v855
  %v857 = vrot.slane %v856, 2
  %v858 = vadd.f32 %v856, %v857
  %v859 = vrot.slane %v858, 1
  %v860 = vadd.f32 %v858, %v859
  %v861 = vrot.slane %v224, 4
  %v862 = vadd.f32 %v224, %v861
  %v863 = vrot.slane %v862, 2
  %v864 = vadd.f32 %v862, %v863
  %v865 = vrot.slane %v864, 1
  %v866 = vadd.f32 %v864, %v865
  %v867 = vrot.slane %v225, 4
  %v868 = vadd.f32 %v225, %v867
  %v869 = vrot.slane %v868, 2
  %v870 = vadd.f32 %v868, %v869
  %v871 = vrot.slane %v870, 1
  %v872 = vadd.f32 %v870, %v871
  %v873 = vrot.slane %v226, 4
  %v874 = vadd.f32 %v226, %v873
  %v875 = vrot.slane %v874, 2
  %v876 = vadd.f32 %v874, %v875
  %v877 = vrot.slane %v876, 1
  %v878 = vadd.f32 %v876, %v877
  %v879 = vrot.slane %v227, 4
  %v880 = vadd.f32 %v227, %v879
  %v881 = vrot.slane %v880, 2
  %v882 = vadd.f32 %v880, %v881
  %v883 = vrot.slane %v882, 1
  %v884 = vadd.f32 %v882, %v883
  %v885 = vrot.slane %v228, 4
  %v886 = vadd.f32 %v228, %v885
  %v887 = vrot.slane %v886, 2
  %v888 = vadd.f32 %v886, %v887
  %v889 = vrot.slane %v888, 1
  %v890 = vadd.f32 %v888, %v889
  %v891 = vrot.slane %v229, 4
  %v892 = vadd.f32 %v229, %v891
  %v893 = vrot.slane %v892, 2
  %v894 = vadd.f32 %v892, %v893
  %v895 = vrot.slane %v894, 1
  %v896 = vadd.f32 %v894, %v895
  %v897 = vrot.slane %v230, 4
  %v898 = vadd.f32 %v230, %v897
  %v899 = vrot.slane %v898, 2
  %v900 = vadd.f32 %v898, %v899
  %v901 = vrot.slane %v900, 1
  %v902 = vadd.f32 %v900, %v901
  %v903 = vrot.slane %v231, 4
  %v904 = vadd.f32 %v231, %v903
  %v905 = vrot.slane %v904, 2
  %v906 = vadd.f32 %v904, %v905
  %v907 = vrot.slane %v906, 1
  %v908 = vadd.f32 %v906, %v907
  %v909 = vrot.slane %v232, 4
  %v910 = vadd.f32 %v232, %v909
  %v911 = vrot.slane %v910, 2
  %v912 = vadd.f32 %v910, %v911
  %v913 = vrot.slane %v912, 1
  %v914 = vadd.f32 %v912, %v913
  %v915 = vrot.slane %v233, 4
  %v916 = vadd.f32 %v233, %v915
  %v917 = vrot.slane %v916, 2
  %v918 = vadd.f32 %v916, %v917
  %v919 = vrot.slane %v918, 1
  %v920 = vadd.f32 %v918, %v919
  %v921 = vrot.slane %v234, 4
  %v922 = vadd.f32 %v234, %v921
  %v923 = vrot.slane %v922, 2
  %v924 = vadd.f32 %v922, %v923
  %v925 = vrot.slane %v924, 1
  %v926 = vadd.f32 %v924, %v925
  %v927 = vrot.slane %v235, 4
  %v928 = vadd.f32 %v235, %v927
  %v929 = vrot.slane %v928, 2
  %v930 = vadd.f32 %v928, %v929
  %v931 = vrot.slane %v930, 1
  %v932 = vadd.f32 %v930, %v931
  %v933 = vrot.slane %v236, 4
  %v934 = vadd.f32 %v236, %v933
  %v935 = vrot.slane %v934, 2
  %v936 = vadd.f32 %v934, %v935
  %v937 = vrot.slane %v936, 1
  %v938 = vadd.f32 %v936, %v937
  %v939 = vrot.slane %v237, 4
  %v940 = vadd.f32 %v237, %v939
  %v941 = vrot.slane %v940, 2
  %v942 = vadd.f32 %v940, %v941
  %v943 = vrot.slane %v942, 1
  %v944 = vadd.f32 %v942, %v943
  %v945 = vrot.slane %v238, 4
  %v946 = vadd.f32 %v238, %v945
  %v947 = vrot.slane %v946, 2
  %v948 = vadd.f32 %v946, %v947
  %v949 = vrot.slane %v948, 1
  %v950 = vadd.f32 %v948, %v949
  %v951 = vrot.slane %v239, 4
  %v952 = vadd.f32 %v239, %v951
  %v953 = vrot.slane %v952, 2
  %v954 = vadd.f32 %v952, %v953
  %v955 = vrot.slane %v954, 1
  %v956 = vadd.f32 %v954, %v955
  %v957 = vrot.slane %v240, 4
  %v958 = vadd.f32 %v240, %v957
  %v959 = vrot.slane %v958, 2
  %v960 = vadd.f32 %v958, %v959
  %v961 = vrot.slane %v960, 1
  %v962 = vadd.f32 %v960, %v961
  %v963 = vrot.slane %v241, 4
  %v964 = vadd.f32 %v241, %v963
  %v965 = vrot.slane %v964, 2
  %v966 = vadd.f32 %v964, %v965
  %v967 = vrot.slane %v966, 1
  %v968 = vadd.f32 %v966, %v967
  %v969 = vrot.slane %v242, 4
  %v970 = vadd.f32 %v242, %v969
  %v971 = vrot.slane %v970, 2
  %v972 = vadd.f32 %v970, %v971
  %v973 = vrot.slane %v972, 1
  %v974 = vadd.f32 %v972, %v973
  %v975 = vrot.slane %v243, 4
  %v976 = vadd.f32 %v243, %v975
  %v977 = vrot.slane %v976, 2
  %v978 = vadd.f32 %v976, %v977
  %v979 = vrot.slane %v978, 1
  %v980 = vadd.f32 %v978, %v979
  %v981 = vrot.slane %v244, 4
  %v982 = vadd.f32 %v244, %v981
  %v983 = vrot.slane %v982, 2
  %v984 = vadd.f32 %v982, %v983
  %v985 = vrot.slane %v984, 1
  %v986 = vadd.f32 %v984, %v985
  %v987 = vrot.slane %v245, 4
  %v988 = vadd.f32 %v245, %v987
  %v989 = vrot.slane %v988, 2
  %v990 = vadd.f32 %v988, %v989
  %v991 = vrot.slane %v990, 1
  %v992 = vadd.f32 %v990, %v991
  %v993 = vrot.slane %v246, 4
  %v994 = vadd.f32 %v246, %v993
  %v995 = vrot.slane %v994, 2
  %v996 = vadd.f32 %v994, %v995
  %v997 = vrot.slane %v996, 1
  %v998 = vadd.f32 %v996, %v997
  %v999 = vrot.slane %v247, 4
  %v1000 = vadd.f32 %v247, %v999
  %v1001 = vrot.slane %v1000, 2
  %v1002 = vadd.f32 %v1000, %v1001
  %v1003 = vrot.slane %v1002, 1
  %v1004 = vadd.f32 %v1002, %v1003
  %v1005 = vrot.slane %v248, 4
  %v1006 = vadd.f32 %v248, %v1005
  %v1007 = vrot.slane %v1006, 2
  %v1008 = vadd.f32 %v1006, %v1007
  %v1009 = vrot.slane %v1008, 1
  %v1010 = vadd.f32 %v1008, %v1009
  %v1011 = vrot.slane %v249, 4
  %v1012 = vadd.f32 %v249, %v1011
  %v1013 = vrot.slane %v1012, 2
  %v1014 = vadd.f32 %v1012, %v1013
  %v1015 = vrot.slane %v1014, 1
  %v1016 = vadd.f32 %v1014, %v1015
  %v1017 = vrot.slane %v250, 4
  %v1018 = vadd.f32 %v250, %v1017
  %v1019 = vrot.slane %v1018, 2
  %v1020 = vadd.f32 %v1018, %v1019
  %v1021 = vrot.slane %v1020, 1
  %v1022 = vadd.f32 %v1020, %v1021
  %v1023 = vrot.slane %v251, 4
  %v1024 = vadd.f32 %v251, %v1023
  %v1025 = vrot.slane %v1024, 2
  %v1026 = vadd.f32 %v1024, %v1025
  %v1027 = vrot.slane %v1026, 1
  %v1028 = vadd.f32 %v1026, %v1027
  %v1029 = vrot.slane %v252, 4
  %v1030 = vadd.f32 %v252, %v1029
  %v1031 = vrot.slane %v1030, 2
  %v1032 = vadd.f32 %v1030, %v1031
  %v1033 = vrot.slane %v1032, 1
  %v1034 = vadd.f32 %v1032, %v1033
  %v1035 = vrot.slane %v253, 4
  %v1036 = vadd.f32 %v253, %v1035
  %v1037 = vrot.slane %v1036, 2
  %v1038 = vadd.f32 %v1036, %v1037
  %v1039 = vrot.slane %v1038, 1
  %v1040 = vadd.f32 %v1038, %v1039
  %v1041 = vrot.slane %v254, 4
  %v1042 = vadd.f32 %v254, %v1041
  %v1043 = vrot.slane %v1042, 2
  %v1044 = vadd.f32 %v1042, %v1043
  %v1045 = vrot.slane %v1044, 1
  %v1046 = vadd.f32 %v1044, %v1045
  %v1047 = vrot.slane %v255, 4
  %v1048 = vadd.f32 %v255, %v1047
  %v1049 = vrot.slane %v1048, 2
  %v1050 = vadd.f32 %v1048, %v1049
  %v1051 = vrot.slane %v1050, 1
  %v1052 = vadd.f32 %v1050, %v1051
  %v1053 = vrot.slane %v256, 4
  %v1054 = vadd.f32 %v256, %v1053
  %v1055 = vrot.slane %v1054, 2
  %v1056 = vadd.f32 %v1054, %v1055
  %v1057 = vrot.slane %v1056, 1
  %v1058 = vadd.f32 %v1056, %v1057
  %v1059 = vrot.slane %v257, 4
  %v1060 = vadd.f32 %v257, %v1059
  %v1061 = vrot.slane %v1060, 2
  %v1062 = vadd.f32 %v1060, %v1061
  %v1063 = vrot.slane %v1062, 1
  %v1064 = vadd.f32 %v1062, %v1063
  %v1065 = vrot.slane %v258, 4
  %v1066 = vadd.f32 %v258, %v1065
  %v1067 = vrot.slane %v1066, 2
  %v1068 = vadd.f32 %v1066, %v1067
  %v1069 = vrot.slane %v1068, 1
  %v1070 = vadd.f32 %v1068, %v1069
  %v1071 = vrot.slane %v259, 4
  %v1072 = vadd.f32 %v259, %v1071
  %v1073 = vrot.slane %v1072, 2
  %v1074 = vadd.f32 %v1072, %v1073
  %v1075 = vrot.slane %v1074, 1
  %v1076 = vadd.f32 %v1074, %v1075
  %v1077 = vrot.slane %v260, 4
  %v1078 = vadd.f32 %v260, %v1077
  %v1079 = vrot.slane %v1078, 2
  %v1080 = vadd.f32 %v1078, %v1079
  %v1081 = vrot.slane %v1080, 1
  %v1082 = vadd.f32 %v1080, %v1081
  %v1083 = vrot.slane %v261, 4
  %v1084 = vadd.f32 %v261, %v1083
  %v1085 = vrot.slane %v1084, 2
  %v1086 = vadd.f32 %v1084, %v1085
  %v1087 = vrot.slane %v1086, 1
  %v1088 = vadd.f32 %v1086, %v1087
  %v1089 = vrot.slane %v262, 4
  %v1090 = vadd.f32 %v262, %v1089
  %v1091 = vrot.slane %v1090, 2
  %v1092 = vadd.f32 %v1090, %v1091
  %v1093 = vrot.slane %v1092, 1
  %v1094 = vadd.f32 %v1092, %v1093
  %v1095 = vrot.slane %v263, 4
  %v1096 = vadd.f32 %v263, %v1095
  %v1097 = vrot.slane %v1096, 2
  %v1098 = vadd.f32 %v1096, %v1097
  %v1099 = vrot.slane %v1098, 1
  %v1100 = vadd.f32 %v1098, %v1099
  %v1101 = vrot.slane %v264, 4
  %v1102 = vadd.f32 %v264, %v1101
  %v1103 = vrot.slane %v1102, 2
  %v1104 = vadd.f32 %v1102, %v1103
  %v1105 = vrot.slane %v1104, 1
  %v1106 = vadd.f32 %v1104, %v1105
  %v1107 = vrot.slane %v265, 4
  %v1108 = vadd.f32 %v265, %v1107
  %v1109 = vrot.slane %v1108, 2
  %v1110 = vadd.f32 %v1108, %v1109
  %v1111 = vrot.slane %v1110, 1
  %v1112 = vadd.f32 %v1110, %v1111
  %v1113 = vrot.slane %v266, 4
  %v1114 = vadd.f32 %v266, %v1113
  %v1115 = vrot.slane %v1114, 2
  %v1116 = vadd.f32 %v1114, %v1115
  %v1117 = vrot.slane %v1116, 1
  %v1118 = vadd.f32 %v1116, %v1117
  %v1119 = vrot.slane %v267, 4
  %v1120 = vadd.f32 %v267, %v1119
  %v1121 = vrot.slane %v1120, 2
  %v1122 = vadd.f32 %v1120, %v1121
  %v1123 = vrot.slane %v1122, 1
  %v1124 = vadd.f32 %v1122, %v1123
  %v1125 = vrot.slane %v268, 4
  %v1126 = vadd.f32 %v268, %v1125
  %v1127 = vrot.slane %v1126, 2
  %v1128 = vadd.f32 %v1126, %v1127
  %v1129 = vrot.slane %v1128, 1
  %v1130 = vadd.f32 %v1128, %v1129
  %v1131 = vrot.slane %v269, 4
  %v1132 = vadd.f32 %v269, %v1131
  %v1133 = vrot.slane %v1132, 2
  %v1134 = vadd.f32 %v1132, %v1133
  %v1135 = vrot.slane %v1134, 1
  %v1136 = vadd.f32 %v1134, %v1135
  %v1137 = vrot.slane %v270, 4
  %v1138 = vadd.f32 %v270, %v1137
  %v1139 = vrot.slane %v1138, 2
  %v1140 = vadd.f32 %v1138, %v1139
  %v1141 = vrot.slane %v1140, 1
  %v1142 = vadd.f32 %v1140, %v1141
  %v1143 = vrot.slane %v271, 4
  %v1144 = vadd.f32 %v271, %v1143
  %v1145 = vrot.slane %v1144, 2
  %v1146 = vadd.f32 %v1144, %v1145
  %v1147 = vrot.slane %v1146, 1
  %v1148 = vadd.f32 %v1146, %v1147
  %v1149 = vrot.slane %v272, 4
  %v1150 = vadd.f32 %v272, %v1149
  %v1151 = vrot.slane %v1150, 2
  %v1152 = vadd.f32 %v1150, %v1151
  %v1153 = vrot.slane %v1152, 1
  %v1154 = vadd.f32 %v1152, %v1153
  %v1155 = vrot.slane %v273, 4
  %v1156 = vadd.f32 %v273, %v1155
  %v1157 = vrot.slane %v1156, 2
  %v1158 = vadd.f32 %v1156, %v1157
  %v1159 = vrot.slane %v1158, 1
  %v1160 = vadd.f32 %v1158, %v1159
  %v1161 = vrot.slane %v274, 4
  %v1162 = vadd.f32 %v274, %v1161
  %v1163 = vrot.slane %v1162, 2
  %v1164 = vadd.f32 %v1162, %v1163
  %v1165 = vrot.slane %v1164, 1
  %v1166 = vadd.f32 %v1164, %v1165
  %v1167 = vrot.slane %v275, 4
  %v1168 = vadd.f32 %v275, %v1167
  %v1169 = vrot.slane %v1168, 2
  %v1170 = vadd.f32 %v1168, %v1169
  %v1171 = vrot.slane %v1170, 1
  %v1172 = vadd.f32 %v1170, %v1171
  %v1173 = vrot.slane %v276, 4
  %v1174 = vadd.f32 %v276, %v1173
  %v1175 = vrot.slane %v1174, 2
  %v1176 = vadd.f32 %v1174, %v1175
  %v1177 = vrot.slane %v1176, 1
  %v1178 = vadd.f32 %v1176, %v1177
  %v1179 = vrot.slane %v277, 4
  %v1180 = vadd.f32 %v277, %v1179
  %v1181 = vrot.slane %v1180, 2
  %v1182 = vadd.f32 %v1180, %v1181
  %v1183 = vrot.slane %v1182, 1
  %v1184 = vadd.f32 %v1182, %v1183
  %v1185 = vrot.slane %v278, 4
  %v1186 = vadd.f32 %v278, %v1185
  %v1187 = vrot.slane %v1186, 2
  %v1188 = vadd.f32 %v1186, %v1187
  %v1189 = vrot.slane %v1188, 1
  %v1190 = vadd.f32 %v1188, %v1189
  %v1191 = vrot.slane %v279, 4
  %v1192 = vadd.f32 %v279, %v1191
  %v1193 = vrot.slane %v1192, 2
  %v1194 = vadd.f32 %v1192, %v1193
  %v1195 = vrot.slane %v1194, 1
  %v1196 = vadd.f32 %v1194, %v1195
  %v1197 = vrot.slane %v280, 4
  %v1198 = vadd.f32 %v280, %v1197
  %v1199 = vrot.slane %v1198, 2
  %v1200 = vadd.f32 %v1198, %v1199
  %v1201 = vrot.slane %v1200, 1
  %v1202 = vadd.f32 %v1200, %v1201
  %v1203 = vrot.slane %v281, 4
  %v1204 = vadd.f32 %v281, %v1203
  %v1205 = vrot.slane %v1204, 2
  %v1206 = vadd.f32 %v1204, %v1205
  %v1207 = vrot.slane %v1206, 1
  %v1208 = vadd.f32 %v1206, %v1207
  %v1209 = vrot.slane %v282, 4
  %v1210 = vadd.f32 %v282, %v1209
  %v1211 = vrot.slane %v1210, 2
  %v1212 = vadd.f32 %v1210, %v1211
  %v1213 = vrot.slane %v1212, 1
  %v1214 = vadd.f32 %v1212, %v1213
  %v1215 = vrot.slane %v283, 4
  %v1216 = vadd.f32 %v283, %v1215
  %v1217 = vrot.slane %v1216, 2
  %v1218 = vadd.f32 %v1216, %v1217
  %v1219 = vrot.slane %v1218, 1
  %v1220 = vadd.f32 %v1218, %v1219
  %v1221 = vrot.slane %v284, 4
  %v1222 = vadd.f32 %v284, %v1221
  %v1223 = vrot.slane %v1222, 2
  %v1224 = vadd.f32 %v1222, %v1223
  %v1225 = vrot.slane %v1224, 1
  %v1226 = vadd.f32 %v1224, %v1225
  %v1227 = vrot.slane %v285, 4
  %v1228 = vadd.f32 %v285, %v1227
  %v1229 = vrot.slane %v1228, 2
  %v1230 = vadd.f32 %v1228, %v1229
  %v1231 = vrot.slane %v1230, 1
  %v1232 = vadd.f32 %v1230, %v1231
  %v1233 = vrot.slane %v286, 4
  %v1234 = vadd.f32 %v286, %v1233
  %v1235 = vrot.slane %v1234, 2
  %v1236 = vadd.f32 %v1234, %v1235
  %v1237 = vrot.slane %v1236, 1
  %v1238 = vadd.f32 %v1236, %v1237
  %v1239 = vrot.slane %v287, 4
  %v1240 = vadd.f32 %v287, %v1239
  %v1241 = vrot.slane %v1240, 2
  %v1242 = vadd.f32 %v1240, %v1241
  %v1243 = vrot.slane %v1242, 1
  %v1244 = vadd.f32 %v1242, %v1243
  %v1245 = vrot.slane %v288, 4
  %v1246 = vadd.f32 %v288, %v1245
  %v1247 = vrot.slane %v1246, 2
  %v1248 = vadd.f32 %v1246, %v1247
  %v1249 = vrot.slane %v1248, 1
  %v1250 = vadd.f32 %v1248, %v1249
  %v1251 = vrot.slane %v289, 4
  %v1252 = vadd.f32 %v289, %v1251
  %v1253 = vrot.slane %v1252, 2
  %v1254 = vadd.f32 %v1252, %v1253
  %v1255 = vrot.slane %v1254, 1
  %v1256 = vadd.f32 %v1254, %v1255
  %v1257 = vrot.slane %v290, 4
  %v1258 = vadd.f32 %v290, %v1257
  %v1259 = vrot.slane %v1258, 2
  %v1260 = vadd.f32 %v1258, %v1259
  %v1261 = vrot.slane %v1260, 1
  %v1262 = vadd.f32 %v1260, %v1261
  %v1263 = vrot.slane %v291, 4
  %v1264 = vadd.f32 %v291, %v1263
  %v1265 = vrot.slane %v1264, 2
  %v1266 = vadd.f32 %v1264, %v1265
  %v1267 = vrot.slane %v1266, 1
  %v1268 = vadd.f32 %v1266, %v1267
  %v1269 = vrot.slane %v292, 4
  %v1270 = vadd.f32 %v292, %v1269
  %v1271 = vrot.slane %v1270, 2
  %v1272 = vadd.f32 %v1270, %v1271
  %v1273 = vrot.slane %v1272, 1
  %v1274 = vadd.f32 %v1272, %v1273
  %v1275 = vrot.slane %v293, 4
  %v1276 = vadd.f32 %v293, %v1275
  %v1277 = vrot.slane %v1276, 2
  %v1278 = vadd.f32 %v1276, %v1277
  %v1279 = vrot.slane %v1278, 1
  %v1280 = vadd.f32 %v1278, %v1279
  %v1281 = vrot.slane %v294, 4
  %v1282 = vadd.f32 %v294, %v1281
  %v1283 = vrot.slane %v1282, 2
  %v1284 = vadd.f32 %v1282, %v1283
  %v1285 = vrot.slane %v1284, 1
  %v1286 = vadd.f32 %v1284, %v1285
  %v1287 = vrot.slane %v295, 4
  %v1288 = vadd.f32 %v295, %v1287
  %v1289 = vrot.slane %v1288, 2
  %v1290 = vadd.f32 %v1288, %v1289
  %v1291 = vrot.slane %v1290, 1
  %v1292 = vadd.f32 %v1290, %v1291
  %v1293 = vrot.slane %v296, 4
  %v1294 = vadd.f32 %v296, %v1293
  %v1295 = vrot.slane %v1294, 2
  %v1296 = vadd.f32 %v1294, %v1295
  %v1297 = vrot.slane %v1296, 1
  %v1298 = vadd.f32 %v1296, %v1297
  %v1299 = vrot.slane %v297, 4
  %v1300 = vadd.f32 %v297, %v1299
  %v1301 = vrot.slane %v1300, 2
  %v1302 = vadd.f32 %v1300, %v1301
  %v1303 = vrot.slane %v1302, 1
  %v1304 = vadd.f32 %v1302, %v1303
  %v1305 = vrot.slane %v298, 4
  %v1306 = vadd.f32 %v298, %v1305
  %v1307 = vrot.slane %v1306, 2
  %v1308 = vadd.f32 %v1306, %v1307
  %v1309 = vrot.slane %v1308, 1
  %v1310 = vadd.f32 %v1308, %v1309
  %v1311 = vrot.slane %v299, 4
  %v1312 = vadd.f32 %v299, %v1311
  %v1313 = vrot.slane %v1312, 2
  %v1314 = vadd.f32 %v1312, %v1313
  %v1315 = vrot.slane %v1314, 1
  %v1316 = vadd.f32 %v1314, %v1315
  %v1317 = vrot.slane %v300, 4
  %v1318 = vadd.f32 %v300, %v1317
  %v1319 = vrot.slane %v1318, 2
  %v1320 = vadd.f32 %v1318, %v1319
  %v1321 = vrot.slane %v1320, 1
  %v1322 = vadd.f32 %v1320, %v1321
  %v1323 = vrot.slane %v301, 4
  %v1324 = vadd.f32 %v301, %v1323
  %v1325 = vrot.slane %v1324, 2
  %v1326 = vadd.f32 %v1324, %v1325
  %v1327 = vrot.slane %v1326, 1
  %v1328 = vadd.f32 %v1326, %v1327
  %v1329 = vrot.slane %v302, 4
  %v1330 = vadd.f32 %v302, %v1329
  %v1331 = vrot.slane %v1330, 2
  %v1332 = vadd.f32 %v1330, %v1331
  %v1333 = vrot.slane %v1332, 1
  %v1334 = vadd.f32 %v1332, %v1333
  %v1335 = vrot.slane %v303, 4
  %v1336 = vadd.f32 %v303, %v1335
  %v1337 = vrot.slane %v1336, 2
  %v1338 = vadd.f32 %v1336, %v1337
  %v1339 = vrot.slane %v1338, 1
  %v1340 = vadd.f32 %v1338, %v1339
  %v1341 = vrot.slane %v304, 4
  %v1342 = vadd.f32 %v304, %v1341
  %v1343 = vrot.slane %v1342, 2
  %v1344 = vadd.f32 %v1342, %v1343
  %v1345 = vrot.slane %v1344, 1
  %v1346 = vadd.f32 %v1344, %v1345
  %v1347 = vrot.slane %v305, 4
  %v1348 = vadd.f32 %v305, %v1347
  %v1349 = vrot.slane %v1348, 2
  %v1350 = vadd.f32 %v1348, %v1349
  %v1351 = vrot.slane %v1350, 1
  %v1352 = vadd.f32 %v1350, %v1351
  %v1353 = vrot.slane %v306, 4
  %v1354 = vadd.f32 %v306, %v1353
  %v1355 = vrot.slane %v1354, 2
  %v1356 = vadd.f32 %v1354, %v1355
  %v1357 = vrot.slane %v1356, 1
  %v1358 = vadd.f32 %v1356, %v1357
  %v1359 = vrot.slane %v307, 4
  %v1360 = vadd.f32 %v307, %v1359
  %v1361 = vrot.slane %v1360, 2
  %v1362 = vadd.f32 %v1360, %v1361
  %v1363 = vrot.slane %v1362, 1
  %v1364 = vadd.f32 %v1362, %v1363
  %v1365 = vrot.slane %v308, 4
  %v1366 = vadd.f32 %v308, %v1365
  %v1367 = vrot.slane %v1366, 2
  %v1368 = vadd.f32 %v1366, %v1367
  %v1369 = vrot.slane %v1368, 1
  %v1370 = vadd.f32 %v1368, %v1369
  %v1371 = vrot.slane %v309, 4
  %v1372 = vadd.f32 %v309, %v1371
  %v1373 = vrot.slane %v1372, 2
  %v1374 = vadd.f32 %v1372, %v1373
  %v1375 = vrot.slane %v1374, 1
  %v1376 = vadd.f32 %v1374, %v1375
  %v1377 = vrot.slane %v310, 4
  %v1378 = vadd.f32 %v310, %v1377
  %v1379 = vrot.slane %v1378, 2
  %v1380 = vadd.f32 %v1378, %v1379
  %v1381 = vrot.slane %v1380, 1
  %v1382 = vadd.f32 %v1380, %v1381
  %v1383 = vrot.slane %v311, 4
  %v1384 = vadd.f32 %v311, %v1383
  %v1385 = vrot.slane %v1384, 2
  %v1386 = vadd.f32 %v1384, %v1385
  %v1387 = vrot.slane %v1386, 1
  %v1388 = vadd.f32 %v1386, %v1387
  %v1389 = vrot.slane %v312, 4
  %v1390 = vadd.f32 %v312, %v1389
  %v1391 = vrot.slane %v1390, 2
  %v1392 = vadd.f32 %v1390, %v1391
  %v1393 = vrot.slane %v1392, 1
  %v1394 = vadd.f32 %v1392, %v1393
  %v1395 = vrot.slane %v313, 4
  %v1396 = vadd.f32 %v313, %v1395
  %v1397 = vrot.slane %v1396, 2
  %v1398 = vadd.f32 %v1396, %v1397
  %v1399 = vrot.slane %v1398, 1
  %v1400 = vadd.f32 %v1398, %v1399
  %v1401 = vrot.slane %v314, 4
  %v1402 = vadd.f32 %v314, %v1401
  %v1403 = vrot.slane %v1402, 2
  %v1404 = vadd.f32 %v1402, %v1403
  %v1405 = vrot.slane %v1404, 1
  %v1406 = vadd.f32 %v1404, %v1405
  %v1407 = vrot.slane %v315, 4
  %v1408 = vadd.f32 %v315, %v1407
  %v1409 = vrot.slane %v1408, 2
  %v1410 = vadd.f32 %v1408, %v1409
  %v1411 = vrot.slane %v1410, 1
  %v1412 = vadd.f32 %v1410, %v1411
  %v1413 = vrot.slane %v316, 4
  %v1414 = vadd.f32 %v316, %v1413
  %v1415 = vrot.slane %v1414, 2
  %v1416 = vadd.f32 %v1414, %v1415
  %v1417 = vrot.slane %v1416, 1
  %v1418 = vadd.f32 %v1416, %v1417
  %v1419 = vrot.slane %v317, 4
  %v1420 = vadd.f32 %v317, %v1419
  %v1421 = vrot.slane %v1420, 2
  %v1422 = vadd.f32 %v1420, %v1421
  %v1423 = vrot.slane %v1422, 1
  %v1424 = vadd.f32 %v1422, %v1423
  %v1425 = vrot.slane %v318, 4
  %v1426 = vadd.f32 %v318, %v1425
  %v1427 = vrot.slane %v1426, 2
  %v1428 = vadd.f32 %v1426, %v1427
  %v1429 = vrot.slane %v1428, 1
  %v1430 = vadd.f32 %v1428, %v1429
  %v1431 = vrot.slane %v319, 4
  %v1432 = vadd.f32 %v319, %v1431
  %v1433 = vrot.slane %v1432, 2
  %v1434 = vadd.f32 %v1432, %v1433
  %v1435 = vrot.slane %v1434, 1
  %v1436 = vadd.f32 %v1434, %v1435
  %v1437 = vrot.slane %v320, 4
  %v1438 = vadd.f32 %v320, %v1437
  %v1439 = vrot.slane %v1438, 2
  %v1440 = vadd.f32 %v1438, %v1439
  %v1441 = vrot.slane %v1440, 1
  %v1442 = vadd.f32 %v1440, %v1441
  %v1443 = vrot.slane %v321, 4
  %v1444 = vadd.f32 %v321, %v1443
  %v1445 = vrot.slane %v1444, 2
  %v1446 = vadd.f32 %v1444, %v1445
  %v1447 = vrot.slane %v1446, 1
  %v1448 = vadd.f32 %v1446, %v1447
  %v1449 = vrot.slane %v322, 4
  %v1450 = vadd.f32 %v322, %v1449
  %v1451 = vrot.slane %v1450, 2
  %v1452 = vadd.f32 %v1450, %v1451
  %v1453 = vrot.slane %v1452, 1
  %v1454 = vadd.f32 %v1452, %v1453
  %v1455 = vrot.slane %v323, 4
  %v1456 = vadd.f32 %v323, %v1455
  %v1457 = vrot.slane %v1456, 2
  %v1458 = vadd.f32 %v1456, %v1457
  %v1459 = vrot.slane %v1458, 1
  %v1460 = vadd.f32 %v1458, %v1459
  %v1461 = vrot.slane %v324, 4
  %v1462 = vadd.f32 %v324, %v1461
  %v1463 = vrot.slane %v1462, 2
  %v1464 = vadd.f32 %v1462, %v1463
  %v1465 = vrot.slane %v1464, 1
  %v1466 = vadd.f32 %v1464, %v1465
  %v1467 = vrot.slane %v325, 4
  %v1468 = vadd.f32 %v325, %v1467
  %v1469 = vrot.slane %v1468, 2
  %v1470 = vadd.f32 %v1468, %v1469
  %v1471 = vrot.slane %v1470, 1
  %v1472 = vadd.f32 %v1470, %v1471
  %v1473 = vrot.slane %v326, 4
  %v1474 = vadd.f32 %v326, %v1473
  %v1475 = vrot.slane %v1474, 2
  %v1476 = vadd.f32 %v1474, %v1475
  %v1477 = vrot.slane %v1476, 1
  %v1478 = vadd.f32 %v1476, %v1477
  %v1479 = vmul.f32 %v332, 0.125
  %v1480 = vmul.f32 %v338, 0.125
  %v1481 = vmul.f32 %v344, 0.125
  %v1482 = vmul.f32 %v350, 0.125
  %v1483 = vmul.f32 %v356, 0.125
  %v1484 = vmul.f32 %v362, 0.125
  %v1485 = vmul.f32 %v368, 0.125
  %v1486 = vmul.f32 %v374, 0.125
  %v1487 = vmul.f32 %v380, 0.125
  %v1488 = vmul.f32 %v386, 0.125
  %v1489 = vmul.f32 %v392, 0.125
  %v1490 = vmul.f32 %v398, 0.125
  %v1491 = vmul.f32 %v404, 0.125
  %v1492 = vmul.f32 %v410, 0.125
  %v1493 = vmul.f32 %v416, 0.125
  %v1494 = vmul.f32 %v422, 0.125
  %v1495 = vmul.f32 %v428, 0.125
  %v1496 = vmul.f32 %v434, 0.125
  %v1497 = vmul.f32 %v440, 0.125
  %v1498 = vmul.f32 %v446, 0.125
  %v1499 = vmul.f32 %v452, 0.125
  %v1500 = vmul.f32 %v458, 0.125
  %v1501 = vmul.f32 %v464, 0.125
  %v1502 = vmul.f32 %v470, 0.125
  %v1503 = vmul.f32 %v476, 0.125
  %v1504 = vmul.f32 %v482, 0.125
  %v1505 = vmul.f32 %v488, 0.125
  %v1506 = vmul.f32 %v494, 0.125
  %v1507 = vmul.f32 %v500, 0.125
  %v1508 = vmul.f32 %v506, 0.125
  %v1509 = vmul.f32 %v512, 0.125
  %v1510 = vmul.f32 %v518, 0.125
  %v1511 = vmul.f32 %v524, 0.125
  %v1512 = vmul.f32 %v530, 0.125
  %v1513 = vmul.f32 %v536, 0.125
  %v1514 = vmul.f32 %v542, 0.125
  %v1515 = vmul.f32 %v548, 0.125
  %v1516 = vmul.f32 %v554, 0.125
  %v1517 = vmul.f32 %v560, 0.125
  %v1518 = vmul.f32 %v566, 0.125
  %v1519 = vmul.f32 %v572, 0.125
  %v1520 = vmul.f32 %v578, 0.125
  %v1521 = vmul.f32 %v584, 0.125
  %v1522 = vmul.f32 %v590, 0.125
  %v1523 = vmul.f32 %v596, 0.125
  %v1524 = vmul.f32 %v602, 0.125
  %v1525 = vmul.f32 %v608, 0.125
  %v1526 = vmul.f32 %v614, 0.125
  %v1527 = vmul.f32 %v620, 0.125
  %v1528 = vmul.f32 %v626, 0.125
  %v1529 = vmul.f32 %v632, 0.125
  %v1530 = vmul.f32 %v638, 0.125
  %v1531 = vmul.f32 %v644, 0.125
  %v1532 = vmul.f32 %v650, 0.125
  %v1533 = vmul.f32 %v656, 0.125
  %v1534 = vmul.f32 %v662, 0.125
  %v1535 = vmul.f32 %v668, 0.125
  %v1536 = vmul.f32 %v674, 0.125
  %v1537 = vmul.f32 %v680, 0.125
  %v1538 = vmul.f32 %v686, 0.125
  %v1539 = vmul.f32 %v692, 0.125
  %v1540 = vmul.f32 %v698, 0.125
  %v1541 = vmul.f32 %v704, 0.125
  %v1542 = vmul.f32 %v710, 0.125
  %v1543 = vmul.f32 %v716, 0.125
  %v1544 = vmul.f32 %v722, 0.125
  %v1545 = vmul.f32 %v728, 0.125
  %v1546 = vmul.f32 %v734, 0.125
  %v1547 = vmul.f32 %v740, 0.125
  %v1548 = vmul.f32 %v746, 0.125
  %v1549 = vmul.f32 %v752, 0.125
  %v1550 = vmul.f32 %v758, 0.125
  %v1551 = vmul.f32 %v764, 0.125
  %v1552 = vmul.f32 %v770, 0.125
  %v1553 = vmul.f32 %v776, 0.125
  %v1554 = vmul.f32 %v782, 0.125
  %v1555 = vmul.f32 %v788, 0.125
  %v1556 = vmul.f32 %v794, 0.125
  %v1557 = vmul.f32 %v800, 0.125
  %v1558 = vmul.f32 %v806, 0.125
  %v1559 = vmul.f32 %v812, 0.125
  %v1560 = vmul.f32 %v818, 0.125
  %v1561 = vmul.f32 %v824, 0.125
  %v1562 = vmul.f32 %v830, 0.125
  %v1563 = vmul.f32 %v836, 0.125
  %v1564 = vmul.f32 %v842, 0.125
  %v1565 = vmul.f32 %v848, 0.125
  %v1566 = vmul.f32 %v854, 0.125
  %v1567 = vmul.f32 %v860, 0.125
  %v1568 = vmul.f32 %v866, 0.125
  %v1569 = vmul.f32 %v872, 0.125
  %v1570 = vmul.f32 %v878, 0.125
  %v1571 = vmul.f32 %v884, 0.125
  %v1572 = vmul.f32 %v890, 0.125
  %v1573 = vmul.f32 %v896, 0.125
  %v1574 = vmul.f32 %v902, 0.125
  %v1575 = vmul.f32 %v908, 0.125
  %v1576 = vmul.f32 %v914, 0.125
  %v1577 = vmul.f32 %v920, 0.125
  %v1578 = vmul.f32 %v926, 0.125
  %v1579 = vmul.f32 %v932, 0.125
  %v1580 = vmul.f32 %v938, 0.125
  %v1581 = vmul.f32 %v944, 0.125
  %v1582 = vmul.f32 %v950, 0.125
  %v1583 = vmul.f32 %v956, 0.125
  %v1584 = vmul.f32 %v962, 0.125
  %v1585 = vmul.f32 %v968, 0.125
  %v1586 = vmul.f32 %v974, 0.125
  %v1587 = vmul.f32 %v980, 0.125
  %v1588 = vmul.f32 %v986, 0.125
  %v1589 = vmul.f32 %v992, 0.125
  %v1590 = vmul.f32 %v998, 0.125
  %v1591 = vmul.f32 %v1004, 0.125
  %v1592 = vmul.f32 %v1010, 0.125
  %v1593 = vmul.f32 %v1016, 0.125
  %v1594 = vmul.f32 %v1022, 0.125
  %v1595 = vmul.f32 %v1028, 0.125
  %v1596 = vmul.f32 %v1034, 0.125
  %v1597 = vmul.f32 %v1040, 0.125
  %v1598 = vmul.f32 %v1046, 0.125
  %v1599 = vmul.f32 %v1052, 0.125
  %v1600 = vmul.f32 %v1058, 0.125
  %v1601 = vmul.f32 %v1064, 0.125
  %v1602 = vmul.f32 %v1070, 0.125
  %v1603 = vmul.f32 %v1076, 0.125
  %v1604 = vmul.f32 %v1082, 0.125
  %v1605 = vmul.f32 %v1088, 0.125
  %v1606 = vmul.f32 %v1094, 0.125
  %v1607 = vmul.f32 %v1100, 0.125
  %v1608 = vmul.f32 %v1106, 0.125
  %v1609 = vmul.f32 %v1112, 0.125
  %v1610 = vmul.f32 %v1118, 0.125
  %v1611 = vmul.f32 %v1124, 0.125
  %v1612 = vmul.f32 %v1130, 0.125
  %v1613 = vmul.f32 %v1136, 0.125
  %v1614 = vmul.f32 %v1142, 0.125
  %v1615 = vmul.f32 %v1148, 0.125
  %v1616 = vmul.f32 %v1154, 0.125
  %v1617 = vmul.f32 %v1160, 0.125
  %v1618 = vmul.f32 %v1166, 0.125
  %v1619 = vmul.f32 %v1172, 0.125
  %v1620 = vmul.f32 %v1178, 0.125
  %v1621 = vmul.f32 %v1184, 0.125
  %v1622 = vmul.f32 %v1190, 0.125
  %v1623 = vmul.f32 %v1196, 0.125
  %v1624 = vmul.f32 %v1202, 0.125
  %v1625 = vmul.f32 %v1208, 0.125
  %v1626 = vmul.f32 %v1214, 0.125
  %v1627 = vmul.f32 %v1220, 0.125
  %v1628 = vmul.f32 %v1226, 0.125
  %v1629 = vmul.f32 %v1232, 0.125
  %v1630 = vmul.f32 %v1238, 0.125
  %v1631 = vmul.f32 %v1244, 0.125
  %v1632 = vmul.f32 %v1250, 0.125
  %v1633 = vmul.f32 %v1256, 0.125
  %v1634 = vmul.f32 %v1262, 0.125
  %v1635 = vmul.f32 %v1268, 0.125
  %v1636 = vmul.f32 %v1274, 0.125
  %v1637 = vmul.f32 %v1280, 0.125
  %v1638 = vmul.f32 %v1286, 0.125
  %v1639 = vmul.f32 %v1292, 0.125
  %v1640 = vmul.f32 %v1298, 0.125
  %v1641 = vmul.f32 %v1304, 0.125
  %v1642 = vmul.f32 %v1310, 0.125
  %v1643 = vmul.f32 %v1316, 0.125
  %v1644 = vmul.f32 %v1322, 0.125
  %v1645 = vmul.f32 %v1328, 0.125
  %v1646 = vmul.f32 %v1334, 0.125
  %v1647 = vmul.f32 %v1340, 0.125
  %v1648 = vmul.f32 %v1346, 0.125
  %v1649 = vmul.f32 %v1352, 0.125
  %v1650 = vmul.f32 %v1358, 0.125
  %v1651 = vmul.f32 %v1364, 0.125
  %v1652 = vmul.f32 %v1370, 0.125
  %v1653 = vmul.f32 %v1376, 0.125
  %v1654 = vmul.f32 %v1382, 0.125
  %v1655 = vmul.f32 %v1388, 0.125
  %v1656 = vmul.f32 %v1394, 0.125
  %v1657 = vmul.f32 %v1400, 0.125
  %v1658 = vmul.f32 %v1406, 0.125
  %v1659 = vmul.f32 %v1412, 0.125
  %v1660 = vmul.f32 %v1418, 0.125
  %v1661 = vmul.f32 %v1424, 0.125
  %v1662 = vmul.f32 %v1430, 0.125
  %v1663 = vmul.f32 %v1436, 0.125
  %v1664 = vmul.f32 %v1442, 0.125
  %v1665 = vmul.f32 %v1448, 0.125
  %v1666 = vmul.f32 %v1454, 0.125
  %v1667 = vmul.f32 %v1460, 0.125
  %v1668 = vmul.f32 %v1466, 0.125
  %v1669 = vmul.f32 %v1472, 0.125
  %v1670 = vmul.f32 %v1478, 0.125
  %v1671 = vpack.c.bf16 %v1479, %v1479
  %v1672 = vpack.c.bf16 %v1480, %v1480
  %v1673 = vpack.c.bf16 %v1481, %v1481
  %v1674 = vpack.c.bf16 %v1482, %v1482
  %v1675 = vpack.c.bf16 %v1483, %v1483
  %v1676 = vpack.c.bf16 %v1484, %v1484
  %v1677 = vpack.c.bf16 %v1485, %v1485
  %v1678 = vpack.c.bf16 %v1486, %v1486
  %v1679 = vpack.c.bf16 %v1487, %v1487
  %v1680 = vpack.c.bf16 %v1488, %v1488
  %v1681 = vpack.c.bf16 %v1489, %v1489
  %v1682 = vpack.c.bf16 %v1490, %v1490
  %v1683 = vpack.c.bf16 %v1491, %v1491
  %v1684 = vpack.c.bf16 %v1492, %v1492
  %v1685 = vpack.c.bf16 %v1493, %v1493
  %v1686 = vpack.c.bf16 %v1494, %v1494
  %v1687 = vpack.c.bf16 %v1495, %v1495
  %v1688 = vpack.c.bf16 %v1496, %v1496
  %v1689 = vpack.c.bf16 %v1497, %v1497
  %v1690 = vpack.c.bf16 %v1498, %v1498
  %v1691 = vpack.c.bf16 %v1499, %v1499
  %v1692 = vpack.c.bf16 %v1500, %v1500
  %v1693 = vpack.c.bf16 %v1501, %v1501
  %v1694 = vpack.c.bf16 %v1502, %v1502
  %v1695 = vpack.c.bf16 %v1503, %v1503
  %v1696 = vpack.c.bf16 %v1504, %v1504
  %v1697 = vpack.c.bf16 %v1505, %v1505
  %v1698 = vpack.c.bf16 %v1506, %v1506
  %v1699 = vpack.c.bf16 %v1507, %v1507
  %v1700 = vpack.c.bf16 %v1508, %v1508
  %v1701 = vpack.c.bf16 %v1509, %v1509
  %v1702 = vpack.c.bf16 %v1510, %v1510
  %v1703 = vpack.c.bf16 %v1511, %v1511
  %v1704 = vpack.c.bf16 %v1512, %v1512
  %v1705 = vpack.c.bf16 %v1513, %v1513
  %v1706 = vpack.c.bf16 %v1514, %v1514
  %v1707 = vpack.c.bf16 %v1515, %v1515
  %v1708 = vpack.c.bf16 %v1516, %v1516
  %v1709 = vpack.c.bf16 %v1517, %v1517
  %v1710 = vpack.c.bf16 %v1518, %v1518
  %v1711 = vpack.c.bf16 %v1519, %v1519
  %v1712 = vpack.c.bf16 %v1520, %v1520
  %v1713 = vpack.c.bf16 %v1521, %v1521
  %v1714 = vpack.c.bf16 %v1522, %v1522
  %v1715 = vpack.c.bf16 %v1523, %v1523
  %v1716 = vpack.c.bf16 %v1524, %v1524
  %v1717 = vpack.c.bf16 %v1525, %v1525
  %v1718 = vpack.c.bf16 %v1526, %v1526
  %v1719 = vpack.c.bf16 %v1527, %v1527
  %v1720 = vpack.c.bf16 %v1528, %v1528
  %v1721 = vpack.c.bf16 %v1529, %v1529
  %v1722 = vpack.c.bf16 %v1530, %v1530
  %v1723 = vpack.c.bf16 %v1531, %v1531
  %v1724 = vpack.c.bf16 %v1532, %v1532
  %v1725 = vpack.c.bf16 %v1533, %v1533
  %v1726 = vpack.c.bf16 %v1534, %v1534
  %v1727 = vpack.c.bf16 %v1535, %v1535
  %v1728 = vpack.c.bf16 %v1536, %v1536
  %v1729 = vpack.c.bf16 %v1537, %v1537
  %v1730 = vpack.c.bf16 %v1538, %v1538
  %v1731 = vpack.c.bf16 %v1539, %v1539
  %v1732 = vpack.c.bf16 %v1540, %v1540
  %v1733 = vpack.c.bf16 %v1541, %v1541
  %v1734 = vpack.c.bf16 %v1542, %v1542
  %v1735 = vpack.c.bf16 %v1543, %v1543
  %v1736 = vpack.c.bf16 %v1544, %v1544
  %v1737 = vpack.c.bf16 %v1545, %v1545
  %v1738 = vpack.c.bf16 %v1546, %v1546
  %v1739 = vpack.c.bf16 %v1547, %v1547
  %v1740 = vpack.c.bf16 %v1548, %v1548
  %v1741 = vpack.c.bf16 %v1549, %v1549
  %v1742 = vpack.c.bf16 %v1550, %v1550
  %v1743 = vpack.c.bf16 %v1551, %v1551
  %v1744 = vpack.c.bf16 %v1552, %v1552
  %v1745 = vpack.c.bf16 %v1553, %v1553
  %v1746 = vpack.c.bf16 %v1554, %v1554
  %v1747 = vpack.c.bf16 %v1555, %v1555
  %v1748 = vpack.c.bf16 %v1556, %v1556
  %v1749 = vpack.c.bf16 %v1557, %v1557
  %v1750 = vpack.c.bf16 %v1558, %v1558
  %v1751 = vpack.c.bf16 %v1559, %v1559
  %v1752 = vpack.c.bf16 %v1560, %v1560
  %v1753 = vpack.c.bf16 %v1561, %v1561
  %v1754 = vpack.c.bf16 %v1562, %v1562
  %v1755 = vpack.c.bf16 %v1563, %v1563
  %v1756 = vpack.c.bf16 %v1564, %v1564
  %v1757 = vpack.c.bf16 %v1565, %v1565
  %v1758 = vpack.c.bf16 %v1566, %v1566
  %v1759 = vpack.c.bf16 %v1567, %v1567
  %v1760 = vpack.c.bf16 %v1568, %v1568
  %v1761 = vpack.c.bf16 %v1569, %v1569
  %v1762 = vpack.c.bf16 %v1570, %v1570
  %v1763 = vpack.c.bf16 %v1571, %v1571
  %v1764 = vpack.c.bf16 %v1572, %v1572
  %v1765 = vpack.c.bf16 %v1573, %v1573
  %v1766 = vpack.c.bf16 %v1574, %v1574
  %v1767 = vpack.c.bf16 %v1575, %v1575
  %v1768 = vpack.c.bf16 %v1576, %v1576
  %v1769 = vpack.c.bf16 %v1577, %v1577
  %v1770 = vpack.c.bf16 %v1578, %v1578
  %v1771 = vpack.c.bf16 %v1579, %v1579
  %v1772 = vpack.c.bf16 %v1580, %v1580
  %v1773 = vpack.c.bf16 %v1581, %v1581
  %v1774 = vpack.c.bf16 %v1582, %v1582
  %v1775 = vpack.c.bf16 %v1583, %v1583
  %v1776 = vpack.c.bf16 %v1584, %v1584
  %v1777 = vpack.c.bf16 %v1585, %v1585
  %v1778 = vpack.c.bf16 %v1586, %v1586
  %v1779 = vpack.c.bf16 %v1587, %v1587
  %v1780 = vpack.c.bf16 %v1588, %v1588
  %v1781 = vpack.c.bf16 %v1589, %v1589
  %v1782 = vpack.c.bf16 %v1590, %v1590
  %v1783 = vpack.c.bf16 %v1591, %v1591
  %v1784 = vpack.c.bf16 %v1592, %v1592
  %v1785 = vpack.c.bf16 %v1593, %v1593
  %v1786 = vpack.c.bf16 %v1594, %v1594
  %v1787 = vpack.c.bf16 %v1595, %v1595
  %v1788 = vpack.c.bf16 %v1596, %v1596
  %v1789 = vpack.c.bf16 %v1597, %v1597
  %v1790 = vpack.c.bf16 %v1598, %v1598
  %v1791 = vpack.c.bf16 %v1599, %v1599
  %v1792 = vpack.c.bf16 %v1600, %v1600
  %v1793 = vpack.c.bf16 %v1601, %v1601
  %v1794 = vpack.c.bf16 %v1602, %v1602
  %v1795 = vpack.c.bf16 %v1603, %v1603
  %v1796 = vpack.c.bf16 %v1604, %v1604
  %v1797 = vpack.c.bf16 %v1605, %v1605
  %v1798 = vpack.c.bf16 %v1606, %v1606
  %v1799 = vpack.c.bf16 %v1607, %v1607
  %v1800 = vpack.c.bf16 %v1608, %v1608
  %v1801 = vpack.c.bf16 %v1609, %v1609
  %v1802 = vpack.c.bf16 %v1610, %v1610
  %v1803 = vpack.c.bf16 %v1611, %v1611
  %v1804 = vpack.c.bf16 %v1612, %v1612
  %v1805 = vpack.c.bf16 %v1613, %v1613
  %v1806 = vpack.c.bf16 %v1614, %v1614
  %v1807 = vpack.c.bf16 %v1615, %v1615
  %v1808 = vpack.c.bf16 %v1616, %v1616
  %v1809 = vpack.c.bf16 %v1617, %v1617
  %v1810 = vpack.c.bf16 %v1618, %v1618
  %v1811 = vpack.c.bf16 %v1619, %v1619
  %v1812 = vpack.c.bf16 %v1620, %v1620
  %v1813 = vpack.c.bf16 %v1621, %v1621
  %v1814 = vpack.c.bf16 %v1622, %v1622
  %v1815 = vpack.c.bf16 %v1623, %v1623
  %v1816 = vpack.c.bf16 %v1624, %v1624
  %v1817 = vpack.c.bf16 %v1625, %v1625
  %v1818 = vpack.c.bf16 %v1626, %v1626
  %v1819 = vpack.c.bf16 %v1627, %v1627
  %v1820 = vpack.c.bf16 %v1628, %v1628
  %v1821 = vpack.c.bf16 %v1629, %v1629
  %v1822 = vpack.c.bf16 %v1630, %v1630
  %v1823 = vpack.c.bf16 %v1631, %v1631
  %v1824 = vpack.c.bf16 %v1632, %v1632
  %v1825 = vpack.c.bf16 %v1633, %v1633
  %v1826 = vpack.c.bf16 %v1634, %v1634
  %v1827 = vpack.c.bf16 %v1635, %v1635
  %v1828 = vpack.c.bf16 %v1636, %v1636
  %v1829 = vpack.c.bf16 %v1637, %v1637
  %v1830 = vpack.c.bf16 %v1638, %v1638
  %v1831 = vpack.c.bf16 %v1639, %v1639
  %v1832 = vpack.c.bf16 %v1640, %v1640
  %v1833 = vpack.c.bf16 %v1641, %v1641
  %v1834 = vpack.c.bf16 %v1642, %v1642
  %v1835 = vpack.c.bf16 %v1643, %v1643
  %v1836 = vpack.c.bf16 %v1644, %v1644
  %v1837 = vpack.c.bf16 %v1645, %v1645
  %v1838 = vpack.c.bf16 %v1646, %v1646
  %v1839 = vpack.c.bf16 %v1647, %v1647
  %v1840 = vpack.c.bf16 %v1648, %v1648
  %v1841 = vpack.c.bf16 %v1649, %v1649
  %v1842 = vpack.c.bf16 %v1650, %v1650
  %v1843 = vpack.c.bf16 %v1651, %v1651
  %v1844 = vpack.c.bf16 %v1652, %v1652
  %v1845 = vpack.c.bf16 %v1653, %v1653
  %v1846 = vpack.c.bf16 %v1654, %v1654
  %v1847 = vpack.c.bf16 %v1655, %v1655
  %v1848 = vpack.c.bf16 %v1656, %v1656
  %v1849 = vpack.c.bf16 %v1657, %v1657
  %v1850 = vpack.c.bf16 %v1658, %v1658
  %v1851 = vpack.c.bf16 %v1659, %v1659
  %v1852 = vpack.c.bf16 %v1660, %v1660
  %v1853 = vpack.c.bf16 %v1661, %v1661
  %v1854 = vpack.c.bf16 %v1662, %v1662
  %v1855 = vpack.c.bf16 %v1663, %v1663
  %v1856 = vpack.c.bf16 %v1664, %v1664
  %v1857 = vpack.c.bf16 %v1665, %v1665
  %v1858 = vpack.c.bf16 %v1666, %v1666
  %v1859 = vpack.c.bf16 %v1667, %v1667
  %v1860 = vpack.c.bf16 %v1668, %v1668
  %v1861 = vpack.c.bf16 %v1669, %v1669
  %v1862 = vpack.c.bf16 %v1670, %v1670
  %v1863 = vld [vmem:[%s1] sm:$0xf]
  %v1864 = vld [vmem:[%s1 + $0x4] sm:$0xf]
  %v1865 = vld [vmem:[%s1 + $0x8] sm:$0xf]
  %v1866 = vld [vmem:[%s1 + $0xc] sm:$0xf]
  %v1867 = vld [vmem:[%s1 + $0x10] sm:$0xf]
  %v1868 = vld [vmem:[%s1 + $0x14] sm:$0xf]
  %v1869 = vld [vmem:[%s1 + $0x18] sm:$0xf]
  %v1870 = vld [vmem:[%s1 + $0x1c] sm:$0xf]
  %v1871 = vld [vmem:[%s1 + $0x20] sm:$0xf]
  %v1872 = vld [vmem:[%s1 + $0x24] sm:$0xf]
  %v1873 = vld [vmem:[%s1 + $0x28] sm:$0xf]
  %v1874 = vld [vmem:[%s1 + $0x2c] sm:$0xf]
  %v1875 = vld [vmem:[%s1 + $0x30] sm:$0xf]
  %v1876 = vld [vmem:[%s1 + $0x34] sm:$0xf]
  %v1877 = vld [vmem:[%s1 + $0x38] sm:$0xf]
  %v1878 = vld [vmem:[%s1 + $0x3c] sm:$0xf]
  %v1879 = vld [vmem:[%s1 + $0x40] sm:$0xf]
  %v1880 = vld [vmem:[%s1 + $0x44] sm:$0xf]
  %v1881 = vld [vmem:[%s1 + $0x48] sm:$0xf]
  %v1882 = vld [vmem:[%s1 + $0x4c] sm:$0xf]
  %v1883 = vld [vmem:[%s1 + $0x50] sm:$0xf]
  %v1884 = vld [vmem:[%s1 + $0x54] sm:$0xf]
  %v1885 = vld [vmem:[%s1 + $0x58] sm:$0xf]
  %v1886 = vld [vmem:[%s1 + $0x5c] sm:$0xf]
  %v1887 = vld [vmem:[%s1 + $0x60] sm:$0xf]
  %v1888 = vld [vmem:[%s1 + $0x64] sm:$0xf]
  %v1889 = vld [vmem:[%s1 + $0x68] sm:$0xf]
  %v1890 = vld [vmem:[%s1 + $0x6c] sm:$0xf]
  %v1891 = vld [vmem:[%s1 + $0x70] sm:$0xf]
  %v1892 = vld [vmem:[%s1 + $0x74] sm:$0xf]
  %v1893 = vld [vmem:[%s1 + $0x78] sm:$0xf]
  %v1894 = vld [vmem:[%s1 + $0x7c] sm:$0xf]
  %v1895 = vld [vmem:[%s1 + $0x80] sm:$0xf]
  %v1896 = vld [vmem:[%s1 + $0x84] sm:$0xf]
  %v1897 = vld [vmem:[%s1 + $0x88] sm:$0xf]
  %v1898 = vld [vmem:[%s1 + $0x8c] sm:$0xf]
  %v1899 = vld [vmem:[%s1 + $0x90] sm:$0xf]
  %v1900 = vld [vmem:[%s1 + $0x94] sm:$0xf]
  %v1901 = vld [vmem:[%s1 + $0x98] sm:$0xf]
  %v1902 = vld [vmem:[%s1 + $0x9c] sm:$0xf]
  %v1903 = vld [vmem:[%s1 + $0xa0] sm:$0xf]
  %v1904 = vld [vmem:[%s1 + $0xa4] sm:$0xf]
  %v1905 = vld [vmem:[%s1 + $0xa8] sm:$0xf]
  %v1906 = vld [vmem:[%s1 + $0xac] sm:$0xf]
  %v1907 = vld [vmem:[%s1 + $0xb0] sm:$0xf]
  %v1908 = vld [vmem:[%s1 + $0xb4] sm:$0xf]
  %v1909 = vld [vmem:[%s1 + $0xb8] sm:$0xf]
  %v1910 = vld [vmem:[%s1 + $0xbc] sm:$0xf]
  %v1911 = vld [vmem:[%s1 + $0xc0] sm:$0xf]
  %v1912 = vld [vmem:[%s1 + $0xc4] sm:$0xf]
  %v1913 = vld [vmem:[%s1 + $0xc8] sm:$0xf]
  %v1914 = vld [vmem:[%s1 + $0xcc] sm:$0xf]
  %v1915 = vld [vmem:[%s1 + $0xd0] sm:$0xf]
  %v1916 = vld [vmem:[%s1 + $0xd4] sm:$0xf]
  %v1917 = vld [vmem:[%s1 + $0xd8] sm:$0xf]
  %v1918 = vld [vmem:[%s1 + $0xdc] sm:$0xf]
  %v1919 = vld [vmem:[%s1 + $0xe0] sm:$0xf]
  %v1920 = vld [vmem:[%s1 + $0xe4] sm:$0xf]
  %v1921 = vld [vmem:[%s1 + $0xe8] sm:$0xf]
  %v1922 = vld [vmem:[%s1 + $0xec] sm:$0xf]
  %v1923 = vld [vmem:[%s1 + $0xf0] sm:$0xf]
  %v1924 = vld [vmem:[%s1 + $0xf4] sm:$0xf]
  %v1925 = vld [vmem:[%s1 + $0xf8] sm:$0xf]
  %v1926 = vld [vmem:[%s1 + $0xfc] sm:$0xf]
  %v1927 = vld [vmem:[%s1 + $0x100] sm:$0xf]
  %v1928 = vld [vmem:[%s1 + $0x104] sm:$0xf]
  %v1929 = vld [vmem:[%s1 + $0x108] sm:$0xf]
  %v1930 = vld [vmem:[%s1 + $0x10c] sm:$0xf]
  %v1931 = vld [vmem:[%s1 + $0x110] sm:$0xf]
  %v1932 = vld [vmem:[%s1 + $0x114] sm:$0xf]
  %v1933 = vld [vmem:[%s1 + $0x118] sm:$0xf]
  %v1934 = vld [vmem:[%s1 + $0x11c] sm:$0xf]
  %v1935 = vld [vmem:[%s1 + $0x120] sm:$0xf]
  %v1936 = vld [vmem:[%s1 + $0x124] sm:$0xf]
  %v1937 = vld [vmem:[%s1 + $0x128] sm:$0xf]
  %v1938 = vld [vmem:[%s1 + $0x12c] sm:$0xf]
  %v1939 = vld [vmem:[%s1 + $0x130] sm:$0xf]
  %v1940 = vld [vmem:[%s1 + $0x134] sm:$0xf]
  %v1941 = vld [vmem:[%s1 + $0x138] sm:$0xf]
  %v1942 = vld [vmem:[%s1 + $0x13c] sm:$0xf]
  %v1943 = vld [vmem:[%s1 + $0x140] sm:$0xf]
  %v1944 = vld [vmem:[%s1 + $0x144] sm:$0xf]
  %v1945 = vld [vmem:[%s1 + $0x148] sm:$0xf]
  %v1946 = vld [vmem:[%s1 + $0x14c] sm:$0xf]
  %v1947 = vld [vmem:[%s1 + $0x150] sm:$0xf]
  %v1948 = vld [vmem:[%s1 + $0x154] sm:$0xf]
  %v1949 = vld [vmem:[%s1 + $0x158] sm:$0xf]
  %v1950 = vld [vmem:[%s1 + $0x15c] sm:$0xf]
  %v1951 = vld [vmem:[%s1 + $0x160] sm:$0xf]
  %v1952 = vld [vmem:[%s1 + $0x164] sm:$0xf]
  %v1953 = vld [vmem:[%s1 + $0x168] sm:$0xf]
  %v1954 = vld [vmem:[%s1 + $0x16c] sm:$0xf]
  %v1955 = vld [vmem:[%s1 + $0x170] sm:$0xf]
  %v1956 = vld [vmem:[%s1 + $0x174] sm:$0xf]
  %v1957 = vld [vmem:[%s1 + $0x178] sm:$0xf]
  %v1958 = vld [vmem:[%s1 + $0x17c] sm:$0xf]
  %v1959 = vld [vmem:[%s1 + $0x180] sm:$0xf]
  %v1960 = vld [vmem:[%s1 + $0x184] sm:$0xf]
  %v1961 = vld [vmem:[%s1 + $0x188] sm:$0xf]
  %v1962 = vld [vmem:[%s1 + $0x18c] sm:$0xf]
  %v1963 = vld [vmem:[%s1 + $0x190] sm:$0xf]
  %v1964 = vld [vmem:[%s1 + $0x194] sm:$0xf]
  %v1965 = vld [vmem:[%s1 + $0x198] sm:$0xf]
  %v1966 = vld [vmem:[%s1 + $0x19c] sm:$0xf]
  %v1967 = vld [vmem:[%s1 + $0x1a0] sm:$0xf]
  %v1968 = vld [vmem:[%s1 + $0x1a4] sm:$0xf]
  %v1969 = vld [vmem:[%s1 + $0x1a8] sm:$0xf]
  %v1970 = vld [vmem:[%s1 + $0x1ac] sm:$0xf]
  %v1971 = vld [vmem:[%s1 + $0x1b0] sm:$0xf]
  %v1972 = vld [vmem:[%s1 + $0x1b4] sm:$0xf]
  %v1973 = vld [vmem:[%s1 + $0x1b8] sm:$0xf]
  %v1974 = vld [vmem:[%s1 + $0x1bc] sm:$0xf]
  %v1975 = vld [vmem:[%s1 + $0x1c0] sm:$0xf]
  %v1976 = vld [vmem:[%s1 + $0x1c4] sm:$0xf]
  %v1977 = vld [vmem:[%s1 + $0x1c8] sm:$0xf]
  %v1978 = vld [vmem:[%s1 + $0x1cc] sm:$0xf]
  %v1979 = vld [vmem:[%s1 + $0x1d0] sm:$0xf]
  %v1980 = vld [vmem:[%s1 + $0x1d4] sm:$0xf]
  %v1981 = vld [vmem:[%s1 + $0x1d8] sm:$0xf]
  %v1982 = vld [vmem:[%s1 + $0x1dc] sm:$0xf]
  %v1983 = vld [vmem:[%s1 + $0x1e0] sm:$0xf]
  %v1984 = vld [vmem:[%s1 + $0x1e4] sm:$0xf]
  %v1985 = vld [vmem:[%s1 + $0x1e8] sm:$0xf]
  %v1986 = vld [vmem:[%s1 + $0x1ec] sm:$0xf]
  %v1987 = vld [vmem:[%s1 + $0x1f0] sm:$0xf]
  %v1988 = vld [vmem:[%s1 + $0x1f4] sm:$0xf]
  %v1989 = vld [vmem:[%s1 + $0x1f8] sm:$0xf]
  %v1990 = vld [vmem:[%s1 + $0x1fc] sm:$0xf]
  %v1991 = vld [vmem:[%s1 + $0x200] sm:$0xf]
  %v1992 = vld [vmem:[%s1 + $0x204] sm:$0xf]
  %v1993 = vld [vmem:[%s1 + $0x208] sm:$0xf]
  %v1994 = vld [vmem:[%s1 + $0x20c] sm:$0xf]
  %v1995 = vld [vmem:[%s1 + $0x210] sm:$0xf]
  %v1996 = vld [vmem:[%s1 + $0x214] sm:$0xf]
  %v1997 = vld [vmem:[%s1 + $0x218] sm:$0xf]
  %v1998 = vld [vmem:[%s1 + $0x21c] sm:$0xf]
  %v1999 = vld [vmem:[%s1 + $0x220] sm:$0xf]
  %v2000 = vld [vmem:[%s1 + $0x224] sm:$0xf]
  %v2001 = vld [vmem:[%s1 + $0x228] sm:$0xf]
  %v2002 = vld [vmem:[%s1 + $0x22c] sm:$0xf]
  %v2003 = vld [vmem:[%s1 + $0x230] sm:$0xf]
  %v2004 = vld [vmem:[%s1 + $0x234] sm:$0xf]
  %v2005 = vld [vmem:[%s1 + $0x238] sm:$0xf]
  %v2006 = vld [vmem:[%s1 + $0x23c] sm:$0xf]
  %v2007 = vld [vmem:[%s1 + $0x240] sm:$0xf]
  %v2008 = vld [vmem:[%s1 + $0x244] sm:$0xf]
  %v2009 = vld [vmem:[%s1 + $0x248] sm:$0xf]
  %v2010 = vld [vmem:[%s1 + $0x24c] sm:$0xf]
  %v2011 = vld [vmem:[%s1 + $0x250] sm:$0xf]
  %v2012 = vld [vmem:[%s1 + $0x254] sm:$0xf]
  %v2013 = vld [vmem:[%s1 + $0x258] sm:$0xf]
  %v2014 = vld [vmem:[%s1 + $0x25c] sm:$0xf]
  %v2015 = vld [vmem:[%s1 + $0x260] sm:$0xf]
  %v2016 = vld [vmem:[%s1 + $0x264] sm:$0xf]
  %v2017 = vld [vmem:[%s1 + $0x268] sm:$0xf]
  %v2018 = vld [vmem:[%s1 + $0x26c] sm:$0xf]
  %v2019 = vld [vmem:[%s1 + $0x270] sm:$0xf]
  %v2020 = vld [vmem:[%s1 + $0x274] sm:$0xf]
  %v2021 = vld [vmem:[%s1 + $0x278] sm:$0xf]
  %v2022 = vld [vmem:[%s1 + $0x27c] sm:$0xf]
  %v2023 = vld [vmem:[%s1 + $0x280] sm:$0xf]
  %v2024 = vld [vmem:[%s1 + $0x284] sm:$0xf]
  %v2025 = vld [vmem:[%s1 + $0x288] sm:$0xf]
  %v2026 = vld [vmem:[%s1 + $0x28c] sm:$0xf]
  %v2027 = vld [vmem:[%s1 + $0x290] sm:$0xf]
  %v2028 = vld [vmem:[%s1 + $0x294] sm:$0xf]
  %v2029 = vld [vmem:[%s1 + $0x298] sm:$0xf]
  %v2030 = vld [vmem:[%s1 + $0x29c] sm:$0xf]
  %v2031 = vld [vmem:[%s1 + $0x2a0] sm:$0xf]
  %v2032 = vld [vmem:[%s1 + $0x2a4] sm:$0xf]
  %v2033 = vld [vmem:[%s1 + $0x2a8] sm:$0xf]
  %v2034 = vld [vmem:[%s1 + $0x2ac] sm:$0xf]
  %v2035 = vld [vmem:[%s1 + $0x2b0] sm:$0xf]
  %v2036 = vld [vmem:[%s1 + $0x2b4] sm:$0xf]
  %v2037 = vld [vmem:[%s1 + $0x2b8] sm:$0xf]
  %v2038 = vld [vmem:[%s1 + $0x2bc] sm:$0xf]
  %v2039 = vld [vmem:[%s1 + $0x2c0] sm:$0xf]
  %v2040 = vld [vmem:[%s1 + $0x2c4] sm:$0xf]
  %v2041 = vld [vmem:[%s1 + $0x2c8] sm:$0xf]
  %v2042 = vld [vmem:[%s1 + $0x2cc] sm:$0xf]
  %v2043 = vld [vmem:[%s1 + $0x2d0] sm:$0xf]
  %v2044 = vld [vmem:[%s1 + $0x2d4] sm:$0xf]
  %v2045 = vld [vmem:[%s1 + $0x2d8] sm:$0xf]
  %v2046 = vld [vmem:[%s1 + $0x2dc] sm:$0xf]
  %v2047 = vld [vmem:[%s1 + $0x2e0] sm:$0xf]
  %v2048 = vld [vmem:[%s1 + $0x2e4] sm:$0xf]
  %v2049 = vld [vmem:[%s1 + $0x2e8] sm:$0xf]
  %v2050 = vld [vmem:[%s1 + $0x2ec] sm:$0xf]
  %v2051 = vld [vmem:[%s1 + $0x2f0] sm:$0xf]
  %v2052 = vld [vmem:[%s1 + $0x2f4] sm:$0xf]
  %v2053 = vld [vmem:[%s1 + $0x2f8] sm:$0xf]
  %v2054 = vld [vmem:[%s1 + $0x2fc] sm:$0xf]
  %v2055 = vld [vmem:[%s1 + $0x300] sm:$0xf]
  %v2056 = vld [vmem:[%s1 + $0x304] sm:$0xf]
  %v2057 = vld [vmem:[%s1 + $0x308] sm:$0xf]
  %v2058 = vld [vmem:[%s1 + $0x30c] sm:$0xf]
  %v2059 = vld [vmem:[%s1 + $0x310] sm:$0xf]
  %v2060 = vld [vmem:[%s1 + $0x314] sm:$0xf]
  %v2061 = vld [vmem:[%s1 + $0x318] sm:$0xf]
  %v2062 = vld [vmem:[%s1 + $0x31c] sm:$0xf]
  %v2063 = vld [vmem:[%s1 + $0x320] sm:$0xf]
  %v2064 = vld [vmem:[%s1 + $0x324] sm:$0xf]
  %v2065 = vld [vmem:[%s1 + $0x328] sm:$0xf]
  %v2066 = vld [vmem:[%s1 + $0x32c] sm:$0xf]
  %v2067 = vld [vmem:[%s1 + $0x330] sm:$0xf]
  %v2068 = vld [vmem:[%s1 + $0x334] sm:$0xf]
  %v2069 = vld [vmem:[%s1 + $0x338] sm:$0xf]
  %v2070 = vld [vmem:[%s1 + $0x33c] sm:$0xf]
  %v2071 = vld [vmem:[%s1 + $0x340] sm:$0xf]
  %v2072 = vld [vmem:[%s1 + $0x344] sm:$0xf]
  %v2073 = vld [vmem:[%s1 + $0x348] sm:$0xf]
  %v2074 = vld [vmem:[%s1 + $0x34c] sm:$0xf]
  %v2075 = vld [vmem:[%s1 + $0x350] sm:$0xf]
  %v2076 = vld [vmem:[%s1 + $0x354] sm:$0xf]
  %v2077 = vld [vmem:[%s1 + $0x358] sm:$0xf]
  %v2078 = vld [vmem:[%s1 + $0x35c] sm:$0xf]
  %v2079 = vld [vmem:[%s1 + $0x360] sm:$0xf]
  %v2080 = vld [vmem:[%s1 + $0x364] sm:$0xf]
  %v2081 = vld [vmem:[%s1 + $0x368] sm:$0xf]
  %v2082 = vld [vmem:[%s1 + $0x36c] sm:$0xf]
  %v2083 = vld [vmem:[%s1 + $0x370] sm:$0xf]
  %v2084 = vld [vmem:[%s1 + $0x374] sm:$0xf]
  %v2085 = vld [vmem:[%s1 + $0x378] sm:$0xf]
  %v2086 = vld [vmem:[%s1 + $0x37c] sm:$0xf]
  %v2087 = vld [vmem:[%s1 + $0x380] sm:$0xf]
  %v2088 = vld [vmem:[%s1 + $0x384] sm:$0xf]
  %v2089 = vld [vmem:[%s1 + $0x388] sm:$0xf]
  %v2090 = vld [vmem:[%s1 + $0x38c] sm:$0xf]
  %v2091 = vld [vmem:[%s1 + $0x390] sm:$0xf]
  %v2092 = vld [vmem:[%s1 + $0x394] sm:$0xf]
  %v2093 = vld [vmem:[%s1 + $0x398] sm:$0xf]
  %v2094 = vld [vmem:[%s1 + $0x39c] sm:$0xf]
  %v2095 = vld [vmem:[%s1 + $0x3a0] sm:$0xf]
  %v2096 = vld [vmem:[%s1 + $0x3a4] sm:$0xf]
  %v2097 = vld [vmem:[%s1 + $0x3a8] sm:$0xf]
  %v2098 = vld [vmem:[%s1 + $0x3ac] sm:$0xf]
  %v2099 = vld [vmem:[%s1 + $0x3b0] sm:$0xf]
  %v2100 = vld [vmem:[%s1 + $0x3b4] sm:$0xf]
  %v2101 = vld [vmem:[%s1 + $0x3b8] sm:$0xf]
  %v2102 = vld [vmem:[%s1 + $0x3bc] sm:$0xf]
  %v2103 = vld [vmem:[%s1 + $0x3c0] sm:$0xf]
  %v2104 = vld [vmem:[%s1 + $0x3c4] sm:$0xf]
  %v2105 = vld [vmem:[%s1 + $0x3c8] sm:$0xf]
  %v2106 = vld [vmem:[%s1 + $0x3cc] sm:$0xf]
  %v2107 = vld [vmem:[%s1 + $0x3d0] sm:$0xf]
  %v2108 = vld [vmem:[%s1 + $0x3d4] sm:$0xf]
  %v2109 = vld [vmem:[%s1 + $0x3d8] sm:$0xf]
  %v2110 = vld [vmem:[%s1 + $0x3dc] sm:$0xf]
  %v2111 = vld [vmem:[%s1 + $0x3e0] sm:$0xf]
  %v2112 = vld [vmem:[%s1 + $0x3e4] sm:$0xf]
  %v2113 = vld [vmem:[%s1 + $0x3e8] sm:$0xf]
  %v2114 = vld [vmem:[%s1 + $0x3ec] sm:$0xf]
  %v2115 = vld [vmem:[%s1 + $0x3f0] sm:$0xf]
  %v2116 = vld [vmem:[%s1 + $0x3f4] sm:$0xf]
  %v2117 = vld [vmem:[%s1 + $0x3f8] sm:$0xf]
  %v2118 = vld [vmem:[%s1 + $0x3fc] sm:$0xf]
  %v2119 = vld [vmem:[%s1 + $0x400] sm:$0xf]
  %v2120 = vld [vmem:[%s1 + $0x404] sm:$0xf]
  %v2121 = vld [vmem:[%s1 + $0x408] sm:$0xf]
  %v2122 = vld [vmem:[%s1 + $0x40c] sm:$0xf]
  %v2123 = vld [vmem:[%s1 + $0x410] sm:$0xf]
  %v2124 = vld [vmem:[%s1 + $0x414] sm:$0xf]
  %v2125 = vld [vmem:[%s1 + $0x418] sm:$0xf]
  %v2126 = vld [vmem:[%s1 + $0x41c] sm:$0xf]
  %v2127 = vld [vmem:[%s1 + $0x420] sm:$0xf]
  %v2128 = vld [vmem:[%s1 + $0x424] sm:$0xf]
  %v2129 = vld [vmem:[%s1 + $0x428] sm:$0xf]
  %v2130 = vld [vmem:[%s1 + $0x42c] sm:$0xf]
  %v2131 = vld [vmem:[%s1 + $0x430] sm:$0xf]
  %v2132 = vld [vmem:[%s1 + $0x434] sm:$0xf]
  %v2133 = vld [vmem:[%s1 + $0x438] sm:$0xf]
  %v2134 = vld [vmem:[%s1 + $0x43c] sm:$0xf]
  %v2135 = vld [vmem:[%s1 + $0x440] sm:$0xf]
  %v2136 = vld [vmem:[%s1 + $0x444] sm:$0xf]
  %v2137 = vld [vmem:[%s1 + $0x448] sm:$0xf]
  %v2138 = vld [vmem:[%s1 + $0x44c] sm:$0xf]
  %v2139 = vld [vmem:[%s1 + $0x450] sm:$0xf]
  %v2140 = vld [vmem:[%s1 + $0x454] sm:$0xf]
  %v2141 = vld [vmem:[%s1 + $0x458] sm:$0xf]
  %v2142 = vld [vmem:[%s1 + $0x45c] sm:$0xf]
  %v2143 = vld [vmem:[%s1 + $0x460] sm:$0xf]
  %v2144 = vld [vmem:[%s1 + $0x464] sm:$0xf]
  %v2145 = vld [vmem:[%s1 + $0x468] sm:$0xf]
  %v2146 = vld [vmem:[%s1 + $0x46c] sm:$0xf]
  %v2147 = vld [vmem:[%s1 + $0x470] sm:$0xf]
  %v2148 = vld [vmem:[%s1 + $0x474] sm:$0xf]
  %v2149 = vld [vmem:[%s1 + $0x478] sm:$0xf]
  %v2150 = vld [vmem:[%s1 + $0x47c] sm:$0xf]
  %v2151 = vld [vmem:[%s1 + $0x480] sm:$0xf]
  %v2152 = vld [vmem:[%s1 + $0x484] sm:$0xf]
  %v2153 = vld [vmem:[%s1 + $0x488] sm:$0xf]
  %v2154 = vld [vmem:[%s1 + $0x48c] sm:$0xf]
  %v2155 = vld [vmem:[%s1 + $0x490] sm:$0xf]
  %v2156 = vld [vmem:[%s1 + $0x494] sm:$0xf]
  %v2157 = vld [vmem:[%s1 + $0x498] sm:$0xf]
  %v2158 = vld [vmem:[%s1 + $0x49c] sm:$0xf]
  %v2159 = vld [vmem:[%s1 + $0x4a0] sm:$0xf]
  %v2160 = vld [vmem:[%s1 + $0x4a4] sm:$0xf]
  %v2161 = vld [vmem:[%s1 + $0x4a8] sm:$0xf]
  %v2162 = vld [vmem:[%s1 + $0x4ac] sm:$0xf]
  %v2163 = vld [vmem:[%s1 + $0x4b0] sm:$0xf]
  %v2164 = vld [vmem:[%s1 + $0x4b4] sm:$0xf]
  %v2165 = vld [vmem:[%s1 + $0x4b8] sm:$0xf]
  %v2166 = vld [vmem:[%s1 + $0x4bc] sm:$0xf]
  %v2167 = vld [vmem:[%s1 + $0x4c0] sm:$0xf]
  %v2168 = vld [vmem:[%s1 + $0x4c4] sm:$0xf]
  %v2169 = vld [vmem:[%s1 + $0x4c8] sm:$0xf]
  %v2170 = vld [vmem:[%s1 + $0x4cc] sm:$0xf]
  %v2171 = vld [vmem:[%s1 + $0x4d0] sm:$0xf]
  %v2172 = vld [vmem:[%s1 + $0x4d4] sm:$0xf]
  %v2173 = vld [vmem:[%s1 + $0x4d8] sm:$0xf]
  %v2174 = vld [vmem:[%s1 + $0x4dc] sm:$0xf]
  %v2175 = vld [vmem:[%s1 + $0x4e0] sm:$0xf]
  %v2176 = vld [vmem:[%s1 + $0x4e4] sm:$0xf]
  %v2177 = vld [vmem:[%s1 + $0x4e8] sm:$0xf]
  %v2178 = vld [vmem:[%s1 + $0x4ec] sm:$0xf]
  %v2179 = vld [vmem:[%s1 + $0x4f0] sm:$0xf]
  %v2180 = vld [vmem:[%s1 + $0x4f4] sm:$0xf]
  %v2181 = vld [vmem:[%s1 + $0x4f8] sm:$0xf]
  %v2182 = vld [vmem:[%s1 + $0x4fc] sm:$0xf]
  %v2183 = vld [vmem:[%s1 + $0x500] sm:$0xf]
  %v2184 = vld [vmem:[%s1 + $0x504] sm:$0xf]
  %v2185 = vld [vmem:[%s1 + $0x508] sm:$0xf]
  %v2186 = vld [vmem:[%s1 + $0x50c] sm:$0xf]
  %v2187 = vld [vmem:[%s1 + $0x510] sm:$0xf]
  %v2188 = vld [vmem:[%s1 + $0x514] sm:$0xf]
  %v2189 = vld [vmem:[%s1 + $0x518] sm:$0xf]
  %v2190 = vld [vmem:[%s1 + $0x51c] sm:$0xf]
  %v2191 = vld [vmem:[%s1 + $0x520] sm:$0xf]
  %v2192 = vld [vmem:[%s1 + $0x524] sm:$0xf]
  %v2193 = vld [vmem:[%s1 + $0x528] sm:$0xf]
  %v2194 = vld [vmem:[%s1 + $0x52c] sm:$0xf]
  %v2195 = vld [vmem:[%s1 + $0x530] sm:$0xf]
  %v2196 = vld [vmem:[%s1 + $0x534] sm:$0xf]
  %v2197 = vld [vmem:[%s1 + $0x538] sm:$0xf]
  %v2198 = vld [vmem:[%s1 + $0x53c] sm:$0xf]
  %v2199 = vld [vmem:[%s1 + $0x540] sm:$0xf]
  %v2200 = vld [vmem:[%s1 + $0x544] sm:$0xf]
  %v2201 = vld [vmem:[%s1 + $0x548] sm:$0xf]
  %v2202 = vld [vmem:[%s1 + $0x54c] sm:$0xf]
  %v2203 = vld [vmem:[%s1 + $0x550] sm:$0xf]
  %v2204 = vld [vmem:[%s1 + $0x554] sm:$0xf]
  %v2205 = vld [vmem:[%s1 + $0x558] sm:$0xf]
  %v2206 = vld [vmem:[%s1 + $0x55c] sm:$0xf]
  %v2207 = vld [vmem:[%s1 + $0x560] sm:$0xf]
  %v2208 = vld [vmem:[%s1 + $0x564] sm:$0xf]
  %v2209 = vld [vmem:[%s1 + $0x568] sm:$0xf]
  %v2210 = vld [vmem:[%s1 + $0x56c] sm:$0xf]
  %v2211 = vld [vmem:[%s1 + $0x570] sm:$0xf]
  %v2212 = vld [vmem:[%s1 + $0x574] sm:$0xf]
  %v2213 = vld [vmem:[%s1 + $0x578] sm:$0xf]
  %v2214 = vld [vmem:[%s1 + $0x57c] sm:$0xf]
  %v2215 = vld [vmem:[%s1 + $0x580] sm:$0xf]
  %v2216 = vld [vmem:[%s1 + $0x584] sm:$0xf]
  %v2217 = vld [vmem:[%s1 + $0x588] sm:$0xf]
  %v2218 = vld [vmem:[%s1 + $0x58c] sm:$0xf]
  %v2219 = vld [vmem:[%s1 + $0x590] sm:$0xf]
  %v2220 = vld [vmem:[%s1 + $0x594] sm:$0xf]
  %v2221 = vld [vmem:[%s1 + $0x598] sm:$0xf]
  %v2222 = vld [vmem:[%s1 + $0x59c] sm:$0xf]
  %v2223 = vld [vmem:[%s1 + $0x5a0] sm:$0xf]
  %v2224 = vld [vmem:[%s1 + $0x5a4] sm:$0xf]
  %v2225 = vld [vmem:[%s1 + $0x5a8] sm:$0xf]
  %v2226 = vld [vmem:[%s1 + $0x5ac] sm:$0xf]
  %v2227 = vld [vmem:[%s1 + $0x5b0] sm:$0xf]
  %v2228 = vld [vmem:[%s1 + $0x5b4] sm:$0xf]
  %v2229 = vld [vmem:[%s1 + $0x5b8] sm:$0xf]
  %v2230 = vld [vmem:[%s1 + $0x5bc] sm:$0xf]
  %v2231 = vld [vmem:[%s1 + $0x5c0] sm:$0xf]
  %v2232 = vld [vmem:[%s1 + $0x5c4] sm:$0xf]
  %v2233 = vld [vmem:[%s1 + $0x5c8] sm:$0xf]
  %v2234 = vld [vmem:[%s1 + $0x5cc] sm:$0xf]
  %v2235 = vld [vmem:[%s1 + $0x5d0] sm:$0xf]
  %v2236 = vld [vmem:[%s1 + $0x5d4] sm:$0xf]
  %v2237 = vld [vmem:[%s1 + $0x5d8] sm:$0xf]
  %v2238 = vld [vmem:[%s1 + $0x5dc] sm:$0xf]
  %v2239 = vld [vmem:[%s1 + $0x5e0] sm:$0xf]
  %v2240 = vld [vmem:[%s1 + $0x5e4] sm:$0xf]
  %v2241 = vld [vmem:[%s1 + $0x5e8] sm:$0xf]
  %v2242 = vld [vmem:[%s1 + $0x5ec] sm:$0xf]
  %v2243 = vld [vmem:[%s1 + $0x5f0] sm:$0xf]
  %v2244 = vld [vmem:[%s1 + $0x5f4] sm:$0xf]
  %v2245 = vld [vmem:[%s1 + $0x5f8] sm:$0xf]
  %v2246 = vld [vmem:[%s1 + $0x5fc] sm:$0xf]
  %v2247 = vld [vmem:[%s2] sm:$0x1]
  %v2249 = vperm.slane %v2247, 0
  %v2443 = vunpack.c.l.b16 %v1671
  %v2444 = vunpack.c.l.b16 %v1672
  %v2445 = vunpack.c.l.b16 %v1673
  %v2446 = vunpack.c.l.b16 %v1674
  %v2447 = vunpack.c.l.b16 %v1675
  %v2448 = vunpack.c.l.b16 %v1676
  %v2449 = vunpack.c.l.b16 %v1677
  %v2450 = vunpack.c.l.b16 %v1678
  %v2451 = vunpack.c.l.b16 %v1679
  %v2452 = vunpack.c.l.b16 %v1680
  %v2453 = vunpack.c.l.b16 %v1681
  %v2454 = vunpack.c.l.b16 %v1682
  %v2455 = vunpack.c.l.b16 %v1683
  %v2456 = vunpack.c.l.b16 %v1684
  %v2457 = vunpack.c.l.b16 %v1685
  %v2458 = vunpack.c.l.b16 %v1686
  %v2459 = vunpack.c.l.b16 %v1687
  %v2460 = vunpack.c.l.b16 %v1688
  %v2461 = vunpack.c.l.b16 %v1689
  %v2462 = vunpack.c.l.b16 %v1690
  %v2463 = vunpack.c.l.b16 %v1691
  %v2464 = vunpack.c.l.b16 %v1692
  %v2465 = vunpack.c.l.b16 %v1693
  %v2466 = vunpack.c.l.b16 %v1694
  %v2467 = vunpack.c.l.b16 %v1695
  %v2468 = vunpack.c.l.b16 %v1696
  %v2469 = vunpack.c.l.b16 %v1697
  %v2470 = vunpack.c.l.b16 %v1698
  %v2471 = vunpack.c.l.b16 %v1699
  %v2472 = vunpack.c.l.b16 %v1700
  %v2473 = vunpack.c.l.b16 %v1701
  %v2474 = vunpack.c.l.b16 %v1702
  %v2475 = vunpack.c.l.b16 %v1703
  %v2476 = vunpack.c.l.b16 %v1704
  %v2477 = vunpack.c.l.b16 %v1705
  %v2478 = vunpack.c.l.b16 %v1706
  %v2479 = vunpack.c.l.b16 %v1707
  %v2480 = vunpack.c.l.b16 %v1708
  %v2481 = vunpack.c.l.b16 %v1709
  %v2482 = vunpack.c.l.b16 %v1710
  %v2483 = vunpack.c.l.b16 %v1711
  %v2484 = vunpack.c.l.b16 %v1712
  %v2485 = vunpack.c.l.b16 %v1713
  %v2486 = vunpack.c.l.b16 %v1714
  %v2487 = vunpack.c.l.b16 %v1715
  %v2488 = vunpack.c.l.b16 %v1716
  %v2489 = vunpack.c.l.b16 %v1717
  %v2490 = vunpack.c.l.b16 %v1718
  %v2491 = vunpack.c.l.b16 %v1719
  %v2492 = vunpack.c.l.b16 %v1720
  %v2493 = vunpack.c.l.b16 %v1721
  %v2494 = vunpack.c.l.b16 %v1722
  %v2495 = vunpack.c.l.b16 %v1723
  %v2496 = vunpack.c.l.b16 %v1724
  %v2497 = vunpack.c.l.b16 %v1725
  %v2498 = vunpack.c.l.b16 %v1726
  %v2499 = vunpack.c.l.b16 %v1727
  %v2500 = vunpack.c.l.b16 %v1728
  %v2501 = vunpack.c.l.b16 %v1729
  %v2502 = vunpack.c.l.b16 %v1730
  %v2503 = vunpack.c.l.b16 %v1731
  %v2504 = vunpack.c.l.b16 %v1732
  %v2505 = vunpack.c.l.b16 %v1733
  %v2506 = vunpack.c.l.b16 %v1734
  %v2507 = vunpack.c.l.b16 %v1735
  %v2508 = vunpack.c.l.b16 %v1736
  %v2509 = vunpack.c.l.b16 %v1737
  %v2510 = vunpack.c.l.b16 %v1738
  %v2511 = vunpack.c.l.b16 %v1739
  %v2512 = vunpack.c.l.b16 %v1740
  %v2513 = vunpack.c.l.b16 %v1741
  %v2514 = vunpack.c.l.b16 %v1742
  %v2515 = vunpack.c.l.b16 %v1743
  %v2516 = vunpack.c.l.b16 %v1744
  %v2517 = vunpack.c.l.b16 %v1745
  %v2518 = vunpack.c.l.b16 %v1746
  %v2519 = vunpack.c.l.b16 %v1747
  %v2520 = vunpack.c.l.b16 %v1748
  %v2521 = vunpack.c.l.b16 %v1749
  %v2522 = vunpack.c.l.b16 %v1750
  %v2523 = vunpack.c.l.b16 %v1751
  %v2524 = vunpack.c.l.b16 %v1752
  %v2525 = vunpack.c.l.b16 %v1753
  %v2526 = vunpack.c.l.b16 %v1754
  %v2527 = vunpack.c.l.b16 %v1755
  %v2528 = vunpack.c.l.b16 %v1756
  %v2529 = vunpack.c.l.b16 %v1757
  %v2530 = vunpack.c.l.b16 %v1758
  %v2531 = vunpack.c.l.b16 %v1759
  %v2532 = vunpack.c.l.b16 %v1760
  %v2533 = vunpack.c.l.b16 %v1761
  %v2534 = vunpack.c.l.b16 %v1762
  %v2535 = vunpack.c.l.b16 %v1763
  %v2536 = vunpack.c.l.b16 %v1764
  %v2537 = vunpack.c.l.b16 %v1765
  %v2538 = vunpack.c.l.b16 %v1766
  %v2539 = vunpack.c.l.b16 %v1767
  %v2540 = vunpack.c.l.b16 %v1768
  %v2541 = vunpack.c.l.b16 %v1769
  %v2542 = vunpack.c.l.b16 %v1770
  %v2543 = vunpack.c.l.b16 %v1771
  %v2544 = vunpack.c.l.b16 %v1772
  %v2545 = vunpack.c.l.b16 %v1773
  %v2546 = vunpack.c.l.b16 %v1774
  %v2547 = vunpack.c.l.b16 %v1775
  %v2548 = vunpack.c.l.b16 %v1776
  %v2549 = vunpack.c.l.b16 %v1777
  %v2550 = vunpack.c.l.b16 %v1778
  %v2551 = vunpack.c.l.b16 %v1779
  %v2552 = vunpack.c.l.b16 %v1780
  %v2553 = vunpack.c.l.b16 %v1781
  %v2554 = vunpack.c.l.b16 %v1782
  %v2555 = vunpack.c.l.b16 %v1783
  %v2556 = vunpack.c.l.b16 %v1784
  %v2557 = vunpack.c.l.b16 %v1785
  %v2558 = vunpack.c.l.b16 %v1786
  %v2559 = vunpack.c.l.b16 %v1787
  %v2560 = vunpack.c.l.b16 %v1788
  %v2561 = vunpack.c.l.b16 %v1789
  %v2562 = vunpack.c.l.b16 %v1790
  %v2563 = vunpack.c.l.b16 %v1791
  %v2564 = vunpack.c.l.b16 %v1792
  %v2565 = vunpack.c.l.b16 %v1793
  %v2566 = vunpack.c.l.b16 %v1794
  %v2567 = vunpack.c.l.b16 %v1795
  %v2568 = vunpack.c.l.b16 %v1796
  %v2569 = vunpack.c.l.b16 %v1797
  %v2570 = vunpack.c.l.b16 %v1798
  %v2571 = vunpack.c.l.b16 %v1799
  %v2572 = vunpack.c.l.b16 %v1800
  %v2573 = vunpack.c.l.b16 %v1801
  %v2574 = vunpack.c.l.b16 %v1802
  %v2575 = vunpack.c.l.b16 %v1803
  %v2576 = vunpack.c.l.b16 %v1804
  %v2577 = vunpack.c.l.b16 %v1805
  %v2578 = vunpack.c.l.b16 %v1806
  %v2579 = vunpack.c.l.b16 %v1807
  %v2580 = vunpack.c.l.b16 %v1808
  %v2581 = vunpack.c.l.b16 %v1809
  %v2582 = vunpack.c.l.b16 %v1810
  %v2583 = vunpack.c.l.b16 %v1811
  %v2584 = vunpack.c.l.b16 %v1812
  %v2585 = vunpack.c.l.b16 %v1813
  %v2586 = vunpack.c.l.b16 %v1814
  %v2587 = vunpack.c.l.b16 %v1815
  %v2588 = vunpack.c.l.b16 %v1816
  %v2589 = vunpack.c.l.b16 %v1817
  %v2590 = vunpack.c.l.b16 %v1818
  %v2591 = vunpack.c.l.b16 %v1819
  %v2592 = vunpack.c.l.b16 %v1820
  %v2593 = vunpack.c.l.b16 %v1821
  %v2594 = vunpack.c.l.b16 %v1822
  %v2595 = vunpack.c.l.b16 %v1823
  %v2596 = vunpack.c.l.b16 %v1824
  %v2597 = vunpack.c.l.b16 %v1825
  %v2598 = vunpack.c.l.b16 %v1826
  %v2599 = vunpack.c.l.b16 %v1827
  %v2600 = vunpack.c.l.b16 %v1828
  %v2601 = vunpack.c.l.b16 %v1829
  %v2602 = vunpack.c.l.b16 %v1830
  %v2603 = vunpack.c.l.b16 %v1831
  %v2604 = vunpack.c.l.b16 %v1832
  %v2605 = vunpack.c.l.b16 %v1833
  %v2606 = vunpack.c.l.b16 %v1834
  %v2607 = vunpack.c.l.b16 %v1835
  %v2608 = vunpack.c.l.b16 %v1836
  %v2609 = vunpack.c.l.b16 %v1837
  %v2610 = vunpack.c.l.b16 %v1838
  %v2611 = vunpack.c.l.b16 %v1839
  %v2612 = vunpack.c.l.b16 %v1840
  %v2613 = vunpack.c.l.b16 %v1841
  %v2614 = vunpack.c.l.b16 %v1842
  %v2615 = vunpack.c.l.b16 %v1843
  %v2616 = vunpack.c.l.b16 %v1844
  %v2617 = vunpack.c.l.b16 %v1845
  %v2618 = vunpack.c.l.b16 %v1846
  %v2619 = vunpack.c.l.b16 %v1847
  %v2620 = vunpack.c.l.b16 %v1848
  %v2621 = vunpack.c.l.b16 %v1849
  %v2622 = vunpack.c.l.b16 %v1850
  %v2623 = vunpack.c.l.b16 %v1851
  %v2624 = vunpack.c.l.b16 %v1852
  %v2625 = vunpack.c.l.b16 %v1853
  %v2626 = vunpack.c.l.b16 %v1854
  %v2627 = vunpack.c.l.b16 %v1855
  %v2628 = vunpack.c.l.b16 %v1856
  %v2629 = vunpack.c.l.b16 %v1857
  %v2630 = vunpack.c.l.b16 %v1858
  %v2631 = vunpack.c.l.b16 %v1859
  %v2632 = vunpack.c.l.b16 %v1860
  %v2633 = vunpack.c.l.b16 %v1861
  %v2634 = vunpack.c.l.b16 %v1862
  %vm2635 = vcmask 1041409
  %v2636 = vsel %vm2635, %v2467, %v2443
  %vm2637 = vcmask 1042434
  %v2638 = vsel %vm2637, %v2491, %v2636
  %vm2639 = vcmask 1043459
  %v2640 = vsel %vm2639, %v2515, %v2638
  %vm2641 = vcmask 1044484
  %v2642 = vsel %vm2641, %v2539, %v2640
  %vm2643 = vcmask 1045509
  %v2644 = vsel %vm2643, %v2563, %v2642
  %vm2645 = vcmask 1046534
  %v2646 = vsel %vm2645, %v2587, %v2644
  %vm2647 = vcmask 1047559
  %v2648 = vsel %vm2647, %v2611, %v2646
  %v2649 = vsel %vm2635, %v2468, %v2444
  %v2650 = vsel %vm2637, %v2492, %v2649
  %v2651 = vsel %vm2639, %v2516, %v2650
  %v2652 = vsel %vm2641, %v2540, %v2651
  %v2653 = vsel %vm2643, %v2564, %v2652
  %v2654 = vsel %vm2645, %v2588, %v2653
  %v2655 = vsel %vm2647, %v2612, %v2654
  %v2656 = vsel %vm2635, %v2469, %v2445
  %v2657 = vsel %vm2637, %v2493, %v2656
  %v2658 = vsel %vm2639, %v2517, %v2657
  %v2659 = vsel %vm2641, %v2541, %v2658
  %v2660 = vsel %vm2643, %v2565, %v2659
  %v2661 = vsel %vm2645, %v2589, %v2660
  %v2662 = vsel %vm2647, %v2613, %v2661
  %v2663 = vsel %vm2635, %v2470, %v2446
  %v2664 = vsel %vm2637, %v2494, %v2663
  %v2665 = vsel %vm2639, %v2518, %v2664
  %v2666 = vsel %vm2641, %v2542, %v2665
  %v2667 = vsel %vm2643, %v2566, %v2666
  %v2668 = vsel %vm2645, %v2590, %v2667
  %v2669 = vsel %vm2647, %v2614, %v2668
  %v2670 = vsel %vm2635, %v2471, %v2447
  %v2671 = vsel %vm2637, %v2495, %v2670
  %v2672 = vsel %vm2639, %v2519, %v2671
  %v2673 = vsel %vm2641, %v2543, %v2672
  %v2674 = vsel %vm2643, %v2567, %v2673
  %v2675 = vsel %vm2645, %v2591, %v2674
  %v2676 = vsel %vm2647, %v2615, %v2675
  %v2677 = vsel %vm2635, %v2472, %v2448
  %v2678 = vsel %vm2637, %v2496, %v2677
  %v2679 = vsel %vm2639, %v2520, %v2678
  %v2680 = vsel %vm2641, %v2544, %v2679
  %v2681 = vsel %vm2643, %v2568, %v2680
  %v2682 = vsel %vm2645, %v2592, %v2681
  %v2683 = vsel %vm2647, %v2616, %v2682
  %v2684 = vsel %vm2635, %v2473, %v2449
  %v2685 = vsel %vm2637, %v2497, %v2684
  %v2686 = vsel %vm2639, %v2521, %v2685
  %v2687 = vsel %vm2641, %v2545, %v2686
  %v2688 = vsel %vm2643, %v2569, %v2687
  %v2689 = vsel %vm2645, %v2593, %v2688
  %v2690 = vsel %vm2647, %v2617, %v2689
  %v2691 = vsel %vm2635, %v2474, %v2450
  %v2692 = vsel %vm2637, %v2498, %v2691
  %v2693 = vsel %vm2639, %v2522, %v2692
  %v2694 = vsel %vm2641, %v2546, %v2693
  %v2695 = vsel %vm2643, %v2570, %v2694
  %v2696 = vsel %vm2645, %v2594, %v2695
  %v2697 = vsel %vm2647, %v2618, %v2696
  %v2698 = vsel %vm2635, %v2475, %v2451
  %v2699 = vsel %vm2637, %v2499, %v2698
  %v2700 = vsel %vm2639, %v2523, %v2699
  %v2701 = vsel %vm2641, %v2547, %v2700
  %v2702 = vsel %vm2643, %v2571, %v2701
  %v2703 = vsel %vm2645, %v2595, %v2702
  %v2704 = vsel %vm2647, %v2619, %v2703
  %v2705 = vsel %vm2635, %v2476, %v2452
  %v2706 = vsel %vm2637, %v2500, %v2705
  %v2707 = vsel %vm2639, %v2524, %v2706
  %v2708 = vsel %vm2641, %v2548, %v2707
  %v2709 = vsel %vm2643, %v2572, %v2708
  %v2710 = vsel %vm2645, %v2596, %v2709
  %v2711 = vsel %vm2647, %v2620, %v2710
  %v2712 = vsel %vm2635, %v2477, %v2453
  %v2713 = vsel %vm2637, %v2501, %v2712
  %v2714 = vsel %vm2639, %v2525, %v2713
  %v2715 = vsel %vm2641, %v2549, %v2714
  %v2716 = vsel %vm2643, %v2573, %v2715
  %v2717 = vsel %vm2645, %v2597, %v2716
  %v2718 = vsel %vm2647, %v2621, %v2717
  %v2719 = vsel %vm2635, %v2478, %v2454
  %v2720 = vsel %vm2637, %v2502, %v2719
  %v2721 = vsel %vm2639, %v2526, %v2720
  %v2722 = vsel %vm2641, %v2550, %v2721
  %v2723 = vsel %vm2643, %v2574, %v2722
  %v2724 = vsel %vm2645, %v2598, %v2723
  %v2725 = vsel %vm2647, %v2622, %v2724
  %v2726 = vsel %vm2635, %v2479, %v2455
  %v2727 = vsel %vm2637, %v2503, %v2726
  %v2728 = vsel %vm2639, %v2527, %v2727
  %v2729 = vsel %vm2641, %v2551, %v2728
  %v2730 = vsel %vm2643, %v2575, %v2729
  %v2731 = vsel %vm2645, %v2599, %v2730
  %v2732 = vsel %vm2647, %v2623, %v2731
  %v2733 = vsel %vm2635, %v2480, %v2456
  %v2734 = vsel %vm2637, %v2504, %v2733
  %v2735 = vsel %vm2639, %v2528, %v2734
  %v2736 = vsel %vm2641, %v2552, %v2735
  %v2737 = vsel %vm2643, %v2576, %v2736
  %v2738 = vsel %vm2645, %v2600, %v2737
  %v2739 = vsel %vm2647, %v2624, %v2738
  %v2740 = vsel %vm2635, %v2481, %v2457
  %v2741 = vsel %vm2637, %v2505, %v2740
  %v2742 = vsel %vm2639, %v2529, %v2741
  %v2743 = vsel %vm2641, %v2553, %v2742
  %v2744 = vsel %vm2643, %v2577, %v2743
  %v2745 = vsel %vm2645, %v2601, %v2744
  %v2746 = vsel %vm2647, %v2625, %v2745
  %v2747 = vsel %vm2635, %v2482, %v2458
  %v2748 = vsel %vm2637, %v2506, %v2747
  %v2749 = vsel %vm2639, %v2530, %v2748
  %v2750 = vsel %vm2641, %v2554, %v2749
  %v2751 = vsel %vm2643, %v2578, %v2750
  %v2752 = vsel %vm2645, %v2602, %v2751
  %v2753 = vsel %vm2647, %v2626, %v2752
  %v2754 = vsel %vm2635, %v2483, %v2459
  %v2755 = vsel %vm2637, %v2507, %v2754
  %v2756 = vsel %vm2639, %v2531, %v2755
  %v2757 = vsel %vm2641, %v2555, %v2756
  %v2758 = vsel %vm2643, %v2579, %v2757
  %v2759 = vsel %vm2645, %v2603, %v2758
  %v2760 = vsel %vm2647, %v2627, %v2759
  %v2761 = vsel %vm2635, %v2484, %v2460
  %v2762 = vsel %vm2637, %v2508, %v2761
  %v2763 = vsel %vm2639, %v2532, %v2762
  %v2764 = vsel %vm2641, %v2556, %v2763
  %v2765 = vsel %vm2643, %v2580, %v2764
  %v2766 = vsel %vm2645, %v2604, %v2765
  %v2767 = vsel %vm2647, %v2628, %v2766
  %v2768 = vsel %vm2635, %v2485, %v2461
  %v2769 = vsel %vm2637, %v2509, %v2768
  %v2770 = vsel %vm2639, %v2533, %v2769
  %v2771 = vsel %vm2641, %v2557, %v2770
  %v2772 = vsel %vm2643, %v2581, %v2771
  %v2773 = vsel %vm2645, %v2605, %v2772
  %v2774 = vsel %vm2647, %v2629, %v2773
  %v2775 = vsel %vm2635, %v2486, %v2462
  %v2776 = vsel %vm2637, %v2510, %v2775
  %v2777 = vsel %vm2639, %v2534, %v2776
  %v2778 = vsel %vm2641, %v2558, %v2777
  %v2779 = vsel %vm2643, %v2582, %v2778
  %v2780 = vsel %vm2645, %v2606, %v2779
  %v2781 = vsel %vm2647, %v2630, %v2780
  %v2782 = vsel %vm2635, %v2487, %v2463
  %v2783 = vsel %vm2637, %v2511, %v2782
  %v2784 = vsel %vm2639, %v2535, %v2783
  %v2785 = vsel %vm2641, %v2559, %v2784
  %v2786 = vsel %vm2643, %v2583, %v2785
  %v2787 = vsel %vm2645, %v2607, %v2786
  %v2788 = vsel %vm2647, %v2631, %v2787
  %v2789 = vsel %vm2635, %v2488, %v2464
  %v2790 = vsel %vm2637, %v2512, %v2789
  %v2791 = vsel %vm2639, %v2536, %v2790
  %v2792 = vsel %vm2641, %v2560, %v2791
  %v2793 = vsel %vm2643, %v2584, %v2792
  %v2794 = vsel %vm2645, %v2608, %v2793
  %v2795 = vsel %vm2647, %v2632, %v2794
  %v2796 = vsel %vm2635, %v2489, %v2465
  %v2797 = vsel %vm2637, %v2513, %v2796
  %v2798 = vsel %vm2639, %v2537, %v2797
  %v2799 = vsel %vm2641, %v2561, %v2798
  %v2800 = vsel %vm2643, %v2585, %v2799
  %v2801 = vsel %vm2645, %v2609, %v2800
  %v2802 = vsel %vm2647, %v2633, %v2801
  %v2803 = vsel %vm2635, %v2490, %v2466
  %v2804 = vsel %vm2637, %v2514, %v2803
  %v2805 = vsel %vm2639, %v2538, %v2804
  %v2806 = vsel %vm2641, %v2562, %v2805
  %v2807 = vsel %vm2643, %v2586, %v2806
  %v2808 = vsel %vm2645, %v2610, %v2807
  %v2809 = vsel %vm2647, %v2634, %v2808
  %v2810 = vpack.c.b16 %v2648, %v2648
  %v2811 = vpack.c.b16 %v2655, %v2655
  %v2812 = vpack.c.b16 %v2662, %v2662
  %v2813 = vpack.c.b16 %v2669, %v2669
  %v2814 = vpack.c.b16 %v2676, %v2676
  %v2815 = vpack.c.b16 %v2683, %v2683
  %v2816 = vpack.c.b16 %v2690, %v2690
  %v2817 = vpack.c.b16 %v2697, %v2697
  %v2818 = vpack.c.b16 %v2704, %v2704
  %v2819 = vpack.c.b16 %v2711, %v2711
  %v2820 = vpack.c.b16 %v2718, %v2718
  %v2821 = vpack.c.b16 %v2725, %v2725
  %v2822 = vpack.c.b16 %v2732, %v2732
  %v2823 = vpack.c.b16 %v2739, %v2739
  %v2824 = vpack.c.b16 %v2746, %v2746
  %v2825 = vpack.c.b16 %v2753, %v2753
  %v2826 = vpack.c.b16 %v2760, %v2760
  %v2827 = vpack.c.b16 %v2767, %v2767
  %v2828 = vpack.c.b16 %v2774, %v2774
  %v2829 = vpack.c.b16 %v2781, %v2781
  %v2830 = vpack.c.b16 %v2788, %v2788
  %v2831 = vpack.c.b16 %v2795, %v2795
  %v2832 = vpack.c.b16 %v2802, %v2802
  %v2833 = vpack.c.b16 %v2809, %v2809
  %v3242 = vunpack.c.l.b16 %v1863
  %v3243 = vunpack.c.l.b16 %v1864
  %v3244 = vunpack.c.l.b16 %v1865
  %v3245 = vunpack.c.l.b16 %v1866
  %v3246 = vunpack.c.l.b16 %v1867
  %v3247 = vunpack.c.l.b16 %v1868
  %v3248 = vunpack.c.l.b16 %v1869
  %v3249 = vunpack.c.l.b16 %v1870
  %v3250 = vunpack.c.l.b16 %v1871
  %v3251 = vunpack.c.l.b16 %v1872
  %v3252 = vunpack.c.l.b16 %v1873
  %v3253 = vunpack.c.l.b16 %v1874
  %v3254 = vunpack.c.l.b16 %v1875
  %v3255 = vunpack.c.l.b16 %v1876
  %v3256 = vunpack.c.l.b16 %v1877
  %v3257 = vunpack.c.l.b16 %v1878
  %v3258 = vunpack.c.l.b16 %v1879
  %v3259 = vunpack.c.l.b16 %v1880
  %v3260 = vunpack.c.l.b16 %v1881
  %v3261 = vunpack.c.l.b16 %v1882
  %v3262 = vunpack.c.l.b16 %v1883
  %v3263 = vunpack.c.l.b16 %v1884
  %v3264 = vunpack.c.l.b16 %v1885
  %v3265 = vunpack.c.l.b16 %v1886
  %v3266 = vunpack.c.l.b16 %v1887
  %v3267 = vunpack.c.l.b16 %v1888
  %v3268 = vunpack.c.l.b16 %v1889
  %v3269 = vunpack.c.l.b16 %v1890
  %v3270 = vunpack.c.l.b16 %v1891
  %v3271 = vunpack.c.l.b16 %v1892
  %v3272 = vunpack.c.l.b16 %v1893
  %v3273 = vunpack.c.l.b16 %v1894
  %v3274 = vunpack.c.l.b16 %v1895
  %v3275 = vunpack.c.l.b16 %v1896
  %v3276 = vunpack.c.l.b16 %v1897
  %v3277 = vunpack.c.l.b16 %v1898
  %v3278 = vunpack.c.l.b16 %v1899
  %v3279 = vunpack.c.l.b16 %v1900
  %v3280 = vunpack.c.l.b16 %v1901
  %v3281 = vunpack.c.l.b16 %v1902
  %v3282 = vunpack.c.l.b16 %v1903
  %v3283 = vunpack.c.l.b16 %v1904
  %v3284 = vunpack.c.l.b16 %v1905
  %v3285 = vunpack.c.l.b16 %v1906
  %v3286 = vunpack.c.l.b16 %v1907
  %v3287 = vunpack.c.l.b16 %v1908
  %v3288 = vunpack.c.l.b16 %v1909
  %v3289 = vunpack.c.l.b16 %v1910
  %v3290 = vunpack.c.l.b16 %v1911
  %v3291 = vunpack.c.l.b16 %v1912
  %v3292 = vunpack.c.l.b16 %v1913
  %v3293 = vunpack.c.l.b16 %v1914
  %v3294 = vunpack.c.l.b16 %v1915
  %v3295 = vunpack.c.l.b16 %v1916
  %v3296 = vunpack.c.l.b16 %v1917
  %v3297 = vunpack.c.l.b16 %v1918
  %v3298 = vunpack.c.l.b16 %v1919
  %v3299 = vunpack.c.l.b16 %v1920
  %v3300 = vunpack.c.l.b16 %v1921
  %v3301 = vunpack.c.l.b16 %v1922
  %v3302 = vunpack.c.l.b16 %v1923
  %v3303 = vunpack.c.l.b16 %v1924
  %v3304 = vunpack.c.l.b16 %v1925
  %v3305 = vunpack.c.l.b16 %v1926
  %v3306 = vunpack.c.l.b16 %v1927
  %v3307 = vunpack.c.l.b16 %v1928
  %v3308 = vunpack.c.l.b16 %v1929
  %v3309 = vunpack.c.l.b16 %v1930
  %v3310 = vunpack.c.l.b16 %v1931
  %v3311 = vunpack.c.l.b16 %v1932
  %v3312 = vunpack.c.l.b16 %v1933
  %v3313 = vunpack.c.l.b16 %v1934
  %v3314 = vunpack.c.l.b16 %v1935
  %v3315 = vunpack.c.l.b16 %v1936
  %v3316 = vunpack.c.l.b16 %v1937
  %v3317 = vunpack.c.l.b16 %v1938
  %v3318 = vunpack.c.l.b16 %v1939
  %v3319 = vunpack.c.l.b16 %v1940
  %v3320 = vunpack.c.l.b16 %v1941
  %v3321 = vunpack.c.l.b16 %v1942
  %v3322 = vunpack.c.l.b16 %v1943
  %v3323 = vunpack.c.l.b16 %v1944
  %v3324 = vunpack.c.l.b16 %v1945
  %v3325 = vunpack.c.l.b16 %v1946
  %v3326 = vunpack.c.l.b16 %v1947
  %v3327 = vunpack.c.l.b16 %v1948
  %v3328 = vunpack.c.l.b16 %v1949
  %v3329 = vunpack.c.l.b16 %v1950
  %v3330 = vunpack.c.l.b16 %v1951
  %v3331 = vunpack.c.l.b16 %v1952
  %v3332 = vunpack.c.l.b16 %v1953
  %v3333 = vunpack.c.l.b16 %v1954
  %v3334 = vunpack.c.l.b16 %v1955
  %v3335 = vunpack.c.l.b16 %v1956
  %v3336 = vunpack.c.l.b16 %v1957
  %v3337 = vunpack.c.l.b16 %v1958
  %v3338 = vunpack.c.l.b16 %v1959
  %v3339 = vunpack.c.l.b16 %v1960
  %v3340 = vunpack.c.l.b16 %v1961
  %v3341 = vunpack.c.l.b16 %v1962
  %v3342 = vunpack.c.l.b16 %v1963
  %v3343 = vunpack.c.l.b16 %v1964
  %v3344 = vunpack.c.l.b16 %v1965
  %v3345 = vunpack.c.l.b16 %v1966
  %v3346 = vunpack.c.l.b16 %v1967
  %v3347 = vunpack.c.l.b16 %v1968
  %v3348 = vunpack.c.l.b16 %v1969
  %v3349 = vunpack.c.l.b16 %v1970
  %v3350 = vunpack.c.l.b16 %v1971
  %v3351 = vunpack.c.l.b16 %v1972
  %v3352 = vunpack.c.l.b16 %v1973
  %v3353 = vunpack.c.l.b16 %v1974
  %v3354 = vunpack.c.l.b16 %v1975
  %v3355 = vunpack.c.l.b16 %v1976
  %v3356 = vunpack.c.l.b16 %v1977
  %v3357 = vunpack.c.l.b16 %v1978
  %v3358 = vunpack.c.l.b16 %v1979
  %v3359 = vunpack.c.l.b16 %v1980
  %v3360 = vunpack.c.l.b16 %v1981
  %v3361 = vunpack.c.l.b16 %v1982
  %v3362 = vunpack.c.l.b16 %v1983
  %v3363 = vunpack.c.l.b16 %v1984
  %v3364 = vunpack.c.l.b16 %v1985
  %v3365 = vunpack.c.l.b16 %v1986
  %v3366 = vunpack.c.l.b16 %v1987
  %v3367 = vunpack.c.l.b16 %v1988
  %v3368 = vunpack.c.l.b16 %v1989
  %v3369 = vunpack.c.l.b16 %v1990
  %v3370 = vunpack.c.l.b16 %v1991
  %v3371 = vunpack.c.l.b16 %v1992
  %v3372 = vunpack.c.l.b16 %v1993
  %v3373 = vunpack.c.l.b16 %v1994
  %v3374 = vunpack.c.l.b16 %v1995
  %v3375 = vunpack.c.l.b16 %v1996
  %v3376 = vunpack.c.l.b16 %v1997
  %v3377 = vunpack.c.l.b16 %v1998
  %v3378 = vunpack.c.l.b16 %v1999
  %v3379 = vunpack.c.l.b16 %v2000
  %v3380 = vunpack.c.l.b16 %v2001
  %v3381 = vunpack.c.l.b16 %v2002
  %v3382 = vunpack.c.l.b16 %v2003
  %v3383 = vunpack.c.l.b16 %v2004
  %v3384 = vunpack.c.l.b16 %v2005
  %v3385 = vunpack.c.l.b16 %v2006
  %v3386 = vunpack.c.l.b16 %v2007
  %v3387 = vunpack.c.l.b16 %v2008
  %v3388 = vunpack.c.l.b16 %v2009
  %v3389 = vunpack.c.l.b16 %v2010
  %v3390 = vunpack.c.l.b16 %v2011
  %v3391 = vunpack.c.l.b16 %v2012
  %v3392 = vunpack.c.l.b16 %v2013
  %v3393 = vunpack.c.l.b16 %v2014
  %v3394 = vunpack.c.l.b16 %v2015
  %v3395 = vunpack.c.l.b16 %v2016
  %v3396 = vunpack.c.l.b16 %v2017
  %v3397 = vunpack.c.l.b16 %v2018
  %v3398 = vunpack.c.l.b16 %v2019
  %v3399 = vunpack.c.l.b16 %v2020
  %v3400 = vunpack.c.l.b16 %v2021
  %v3401 = vunpack.c.l.b16 %v2022
  %v3402 = vunpack.c.l.b16 %v2023
  %v3403 = vunpack.c.l.b16 %v2024
  %v3404 = vunpack.c.l.b16 %v2025
  %v3405 = vunpack.c.l.b16 %v2026
  %v3406 = vunpack.c.l.b16 %v2027
  %v3407 = vunpack.c.l.b16 %v2028
  %v3408 = vunpack.c.l.b16 %v2029
  %v3409 = vunpack.c.l.b16 %v2030
  %v3410 = vunpack.c.l.b16 %v2031
  %v3411 = vunpack.c.l.b16 %v2032
  %v3412 = vunpack.c.l.b16 %v2033
  %v3413 = vunpack.c.l.b16 %v2034
  %v3414 = vunpack.c.l.b16 %v2035
  %v3415 = vunpack.c.l.b16 %v2036
  %v3416 = vunpack.c.l.b16 %v2037
  %v3417 = vunpack.c.l.b16 %v2038
  %v3418 = vunpack.c.l.b16 %v2039
  %v3419 = vunpack.c.l.b16 %v2040
  %v3420 = vunpack.c.l.b16 %v2041
  %v3421 = vunpack.c.l.b16 %v2042
  %v3422 = vunpack.c.l.b16 %v2043
  %v3423 = vunpack.c.l.b16 %v2044
  %v3424 = vunpack.c.l.b16 %v2045
  %v3425 = vunpack.c.l.b16 %v2046
  %v3426 = vunpack.c.l.b16 %v2047
  %v3427 = vunpack.c.l.b16 %v2048
  %v3428 = vunpack.c.l.b16 %v2049
  %v3429 = vunpack.c.l.b16 %v2050
  %v3430 = vunpack.c.l.b16 %v2051
  %v3431 = vunpack.c.l.b16 %v2052
  %v3432 = vunpack.c.l.b16 %v2053
  %v3433 = vunpack.c.l.b16 %v2054
  %v3434 = vunpack.c.l.b16 %v2055
  %v3435 = vunpack.c.l.b16 %v2056
  %v3436 = vunpack.c.l.b16 %v2057
  %v3437 = vunpack.c.l.b16 %v2058
  %v3438 = vunpack.c.l.b16 %v2059
  %v3439 = vunpack.c.l.b16 %v2060
  %v3440 = vunpack.c.l.b16 %v2061
  %v3441 = vunpack.c.l.b16 %v2062
  %v3442 = vunpack.c.l.b16 %v2063
  %v3443 = vunpack.c.l.b16 %v2064
  %v3444 = vunpack.c.l.b16 %v2065
  %v3445 = vunpack.c.l.b16 %v2066
  %v3446 = vunpack.c.l.b16 %v2067
  %v3447 = vunpack.c.l.b16 %v2068
  %v3448 = vunpack.c.l.b16 %v2069
  %v3449 = vunpack.c.l.b16 %v2070
  %v3450 = vunpack.c.l.b16 %v2071
  %v3451 = vunpack.c.l.b16 %v2072
  %v3452 = vunpack.c.l.b16 %v2073
  %v3453 = vunpack.c.l.b16 %v2074
  %v3454 = vunpack.c.l.b16 %v2075
  %v3455 = vunpack.c.l.b16 %v2076
  %v3456 = vunpack.c.l.b16 %v2077
  %v3457 = vunpack.c.l.b16 %v2078
  %v3458 = vunpack.c.l.b16 %v2079
  %v3459 = vunpack.c.l.b16 %v2080
  %v3460 = vunpack.c.l.b16 %v2081
  %v3461 = vunpack.c.l.b16 %v2082
  %v3462 = vunpack.c.l.b16 %v2083
  %v3463 = vunpack.c.l.b16 %v2084
  %v3464 = vunpack.c.l.b16 %v2085
  %v3465 = vunpack.c.l.b16 %v2086
  %v3466 = vunpack.c.l.b16 %v2087
  %v3467 = vunpack.c.l.b16 %v2088
  %v3468 = vunpack.c.l.b16 %v2089
  %v3469 = vunpack.c.l.b16 %v2090
  %v3470 = vunpack.c.l.b16 %v2091
  %v3471 = vunpack.c.l.b16 %v2092
  %v3472 = vunpack.c.l.b16 %v2093
  %v3473 = vunpack.c.l.b16 %v2094
  %v3474 = vunpack.c.l.b16 %v2095
  %v3475 = vunpack.c.l.b16 %v2096
  %v3476 = vunpack.c.l.b16 %v2097
  %v3477 = vunpack.c.l.b16 %v2098
  %v3478 = vunpack.c.l.b16 %v2099
  %v3479 = vunpack.c.l.b16 %v2100
  %v3480 = vunpack.c.l.b16 %v2101
  %v3481 = vunpack.c.l.b16 %v2102
  %v3482 = vunpack.c.l.b16 %v2103
  %v3483 = vunpack.c.l.b16 %v2104
  %v3484 = vunpack.c.l.b16 %v2105
  %v3485 = vunpack.c.l.b16 %v2106
  %v3486 = vunpack.c.l.b16 %v2107
  %v3487 = vunpack.c.l.b16 %v2108
  %v3488 = vunpack.c.l.b16 %v2109
  %v3489 = vunpack.c.l.b16 %v2110
  %v3490 = vunpack.c.l.b16 %v2111
  %v3491 = vunpack.c.l.b16 %v2112
  %v3492 = vunpack.c.l.b16 %v2113
  %v3493 = vunpack.c.l.b16 %v2114
  %v3494 = vunpack.c.l.b16 %v2115
  %v3495 = vunpack.c.l.b16 %v2116
  %v3496 = vunpack.c.l.b16 %v2117
  %v3497 = vunpack.c.l.b16 %v2118
  %v3498 = vunpack.c.l.b16 %v2119
  %v3499 = vunpack.c.l.b16 %v2120
  %v3500 = vunpack.c.l.b16 %v2121
  %v3501 = vunpack.c.l.b16 %v2122
  %v3502 = vunpack.c.l.b16 %v2123
  %v3503 = vunpack.c.l.b16 %v2124
  %v3504 = vunpack.c.l.b16 %v2125
  %v3505 = vunpack.c.l.b16 %v2126
  %v3506 = vunpack.c.l.b16 %v2127
  %v3507 = vunpack.c.l.b16 %v2128
  %v3508 = vunpack.c.l.b16 %v2129
  %v3509 = vunpack.c.l.b16 %v2130
  %v3510 = vunpack.c.l.b16 %v2131
  %v3511 = vunpack.c.l.b16 %v2132
  %v3512 = vunpack.c.l.b16 %v2133
  %v3513 = vunpack.c.l.b16 %v2134
  %v3514 = vunpack.c.l.b16 %v2135
  %v3515 = vunpack.c.l.b16 %v2136
  %v3516 = vunpack.c.l.b16 %v2137
  %v3517 = vunpack.c.l.b16 %v2138
  %v3518 = vunpack.c.l.b16 %v2139
  %v3519 = vunpack.c.l.b16 %v2140
  %v3520 = vunpack.c.l.b16 %v2141
  %v3521 = vunpack.c.l.b16 %v2142
  %v3522 = vunpack.c.l.b16 %v2143
  %v3523 = vunpack.c.l.b16 %v2144
  %v3524 = vunpack.c.l.b16 %v2145
  %v3525 = vunpack.c.l.b16 %v2146
  %v3526 = vunpack.c.l.b16 %v2147
  %v3527 = vunpack.c.l.b16 %v2148
  %v3528 = vunpack.c.l.b16 %v2149
  %v3529 = vunpack.c.l.b16 %v2150
  %v3530 = vunpack.c.l.b16 %v2151
  %v3531 = vunpack.c.l.b16 %v2152
  %v3532 = vunpack.c.l.b16 %v2153
  %v3533 = vunpack.c.l.b16 %v2154
  %v3534 = vunpack.c.l.b16 %v2155
  %v3535 = vunpack.c.l.b16 %v2156
  %v3536 = vunpack.c.l.b16 %v2157
  %v3537 = vunpack.c.l.b16 %v2158
  %v3538 = vunpack.c.l.b16 %v2159
  %v3539 = vunpack.c.l.b16 %v2160
  %v3540 = vunpack.c.l.b16 %v2161
  %v3541 = vunpack.c.l.b16 %v2162
  %v3542 = vunpack.c.l.b16 %v2163
  %v3543 = vunpack.c.l.b16 %v2164
  %v3544 = vunpack.c.l.b16 %v2165
  %v3545 = vunpack.c.l.b16 %v2166
  %v3546 = vunpack.c.l.b16 %v2167
  %v3547 = vunpack.c.l.b16 %v2168
  %v3548 = vunpack.c.l.b16 %v2169
  %v3549 = vunpack.c.l.b16 %v2170
  %v3550 = vunpack.c.l.b16 %v2171
  %v3551 = vunpack.c.l.b16 %v2172
  %v3552 = vunpack.c.l.b16 %v2173
  %v3553 = vunpack.c.l.b16 %v2174
  %v3554 = vunpack.c.l.b16 %v2175
  %v3555 = vunpack.c.l.b16 %v2176
  %v3556 = vunpack.c.l.b16 %v2177
  %v3557 = vunpack.c.l.b16 %v2178
  %v3558 = vunpack.c.l.b16 %v2179
  %v3559 = vunpack.c.l.b16 %v2180
  %v3560 = vunpack.c.l.b16 %v2181
  %v3561 = vunpack.c.l.b16 %v2182
  %v3562 = vunpack.c.l.b16 %v2183
  %v3563 = vunpack.c.l.b16 %v2184
  %v3564 = vunpack.c.l.b16 %v2185
  %v3565 = vunpack.c.l.b16 %v2186
  %v3566 = vunpack.c.l.b16 %v2187
  %v3567 = vunpack.c.l.b16 %v2188
  %v3568 = vunpack.c.l.b16 %v2189
  %v3569 = vunpack.c.l.b16 %v2190
  %v3570 = vunpack.c.l.b16 %v2191
  %v3571 = vunpack.c.l.b16 %v2192
  %v3572 = vunpack.c.l.b16 %v2193
  %v3573 = vunpack.c.l.b16 %v2194
  %v3574 = vunpack.c.l.b16 %v2195
  %v3575 = vunpack.c.l.b16 %v2196
  %v3576 = vunpack.c.l.b16 %v2197
  %v3577 = vunpack.c.l.b16 %v2198
  %v3578 = vunpack.c.l.b16 %v2199
  %v3579 = vunpack.c.l.b16 %v2200
  %v3580 = vunpack.c.l.b16 %v2201
  %v3581 = vunpack.c.l.b16 %v2202
  %v3582 = vunpack.c.l.b16 %v2203
  %v3583 = vunpack.c.l.b16 %v2204
  %v3584 = vunpack.c.l.b16 %v2205
  %v3585 = vunpack.c.l.b16 %v2206
  %v3586 = vunpack.c.l.b16 %v2207
  %v3587 = vunpack.c.l.b16 %v2208
  %v3588 = vunpack.c.l.b16 %v2209
  %v3589 = vunpack.c.l.b16 %v2210
  %v3590 = vunpack.c.l.b16 %v2211
  %v3591 = vunpack.c.l.b16 %v2212
  %v3592 = vunpack.c.l.b16 %v2213
  %v3593 = vunpack.c.l.b16 %v2214
  %v3594 = vunpack.c.l.b16 %v2215
  %v3595 = vunpack.c.l.b16 %v2216
  %v3596 = vunpack.c.l.b16 %v2217
  %v3597 = vunpack.c.l.b16 %v2218
  %v3598 = vunpack.c.l.b16 %v2219
  %v3599 = vunpack.c.l.b16 %v2220
  %v3600 = vunpack.c.l.b16 %v2221
  %v3601 = vunpack.c.l.b16 %v2222
  %v3602 = vunpack.c.l.b16 %v2223
  %v3603 = vunpack.c.l.b16 %v2224
  %v3604 = vunpack.c.l.b16 %v2225
  %v3605 = vunpack.c.l.b16 %v2226
  %v3606 = vunpack.c.l.b16 %v2227
  %v3607 = vunpack.c.l.b16 %v2228
  %v3608 = vunpack.c.l.b16 %v2229
  %v3609 = vunpack.c.l.b16 %v2230
  %v3610 = vunpack.c.l.b16 %v2231
  %v3611 = vunpack.c.l.b16 %v2232
  %v3612 = vunpack.c.l.b16 %v2233
  %v3613 = vunpack.c.l.b16 %v2234
  %v3614 = vunpack.c.l.b16 %v2235
  %v3615 = vunpack.c.l.b16 %v2236
  %v3616 = vunpack.c.l.b16 %v2237
  %v3617 = vunpack.c.l.b16 %v2238
  %v3618 = vunpack.c.l.b16 %v2239
  %v3619 = vunpack.c.l.b16 %v2240
  %v3620 = vunpack.c.l.b16 %v2241
  %v3621 = vunpack.c.l.b16 %v2242
  %v3622 = vunpack.c.l.b16 %v2243
  %v3623 = vunpack.c.l.b16 %v2244
  %v3624 = vunpack.c.l.b16 %v2245
  %v3625 = vunpack.c.l.b16 %v2246
  %v3626 = vpack.c.b16 %v3243, %v3242
  %v3627 = vpack.c.b16 %v3245, %v3244
  %v3628 = vpack.c.b16 %v3247, %v3246
  %v3629 = vpack.c.b16 %v3249, %v3248
  %v3630 = vpack.c.b16 %v3251, %v3250
  %v3631 = vpack.c.b16 %v3253, %v3252
  %v3632 = vpack.c.b16 %v3255, %v3254
  %v3633 = vpack.c.b16 %v3257, %v3256
  %v3634 = vpack.c.b16 %v3259, %v3258
  %v3635 = vpack.c.b16 %v3261, %v3260
  %v3636 = vpack.c.b16 %v3263, %v3262
  %v3637 = vpack.c.b16 %v3265, %v3264
  %v3638 = vpack.c.b16 %v3267, %v3266
  %v3639 = vpack.c.b16 %v3269, %v3268
  %v3640 = vpack.c.b16 %v3271, %v3270
  %v3641 = vpack.c.b16 %v3273, %v3272
  %v3642 = vpack.c.b16 %v3275, %v3274
  %v3643 = vpack.c.b16 %v3277, %v3276
  %v3644 = vpack.c.b16 %v3279, %v3278
  %v3645 = vpack.c.b16 %v3281, %v3280
  %v3646 = vpack.c.b16 %v3283, %v3282
  %v3647 = vpack.c.b16 %v3285, %v3284
  %v3648 = vpack.c.b16 %v3287, %v3286
  %v3649 = vpack.c.b16 %v3289, %v3288
  %v3650 = vpack.c.b16 %v3291, %v3290
  %v3651 = vpack.c.b16 %v3293, %v3292
  %v3652 = vpack.c.b16 %v3295, %v3294
  %v3653 = vpack.c.b16 %v3297, %v3296
  %v3654 = vpack.c.b16 %v3299, %v3298
  %v3655 = vpack.c.b16 %v3301, %v3300
  %v3656 = vpack.c.b16 %v3303, %v3302
  %v3657 = vpack.c.b16 %v3305, %v3304
  %v3658 = vpack.c.b16 %v3307, %v3306
  %v3659 = vpack.c.b16 %v3309, %v3308
  %v3660 = vpack.c.b16 %v3311, %v3310
  %v3661 = vpack.c.b16 %v3313, %v3312
  %v3662 = vpack.c.b16 %v3315, %v3314
  %v3663 = vpack.c.b16 %v3317, %v3316
  %v3664 = vpack.c.b16 %v3319, %v3318
  %v3665 = vpack.c.b16 %v3321, %v3320
  %v3666 = vpack.c.b16 %v3323, %v3322
  %v3667 = vpack.c.b16 %v3325, %v3324
  %v3668 = vpack.c.b16 %v3327, %v3326
  %v3669 = vpack.c.b16 %v3329, %v3328
  %v3670 = vpack.c.b16 %v3331, %v3330
  %v3671 = vpack.c.b16 %v3333, %v3332
  %v3672 = vpack.c.b16 %v3335, %v3334
  %v3673 = vpack.c.b16 %v3337, %v3336
  %v3674 = vpack.c.b16 %v3339, %v3338
  %v3675 = vpack.c.b16 %v3341, %v3340
  %v3676 = vpack.c.b16 %v3343, %v3342
  %v3677 = vpack.c.b16 %v3345, %v3344
  %v3678 = vpack.c.b16 %v3347, %v3346
  %v3679 = vpack.c.b16 %v3349, %v3348
  %v3680 = vpack.c.b16 %v3351, %v3350
  %v3681 = vpack.c.b16 %v3353, %v3352
  %v3682 = vpack.c.b16 %v3355, %v3354
  %v3683 = vpack.c.b16 %v3357, %v3356
  %v3684 = vpack.c.b16 %v3359, %v3358
  %v3685 = vpack.c.b16 %v3361, %v3360
  %v3686 = vpack.c.b16 %v3363, %v3362
  %v3687 = vpack.c.b16 %v3365, %v3364
  %v3688 = vpack.c.b16 %v3367, %v3366
  %v3689 = vpack.c.b16 %v3369, %v3368
  %v3690 = vpack.c.b16 %v3371, %v3370
  %v3691 = vpack.c.b16 %v3373, %v3372
  %v3692 = vpack.c.b16 %v3375, %v3374
  %v3693 = vpack.c.b16 %v3377, %v3376
  %v3694 = vpack.c.b16 %v3379, %v3378
  %v3695 = vpack.c.b16 %v3381, %v3380
  %v3696 = vpack.c.b16 %v3383, %v3382
  %v3697 = vpack.c.b16 %v3385, %v3384
  %v3698 = vpack.c.b16 %v3387, %v3386
  %v3699 = vpack.c.b16 %v3389, %v3388
  %v3700 = vpack.c.b16 %v3391, %v3390
  %v3701 = vpack.c.b16 %v3393, %v3392
  %v3702 = vpack.c.b16 %v3395, %v3394
  %v3703 = vpack.c.b16 %v3397, %v3396
  %v3704 = vpack.c.b16 %v3399, %v3398
  %v3705 = vpack.c.b16 %v3401, %v3400
  %v3706 = vpack.c.b16 %v3403, %v3402
  %v3707 = vpack.c.b16 %v3405, %v3404
  %v3708 = vpack.c.b16 %v3407, %v3406
  %v3709 = vpack.c.b16 %v3409, %v3408
  %v3710 = vpack.c.b16 %v3411, %v3410
  %v3711 = vpack.c.b16 %v3413, %v3412
  %v3712 = vpack.c.b16 %v3415, %v3414
  %v3713 = vpack.c.b16 %v3417, %v3416
  %v3714 = vpack.c.b16 %v3419, %v3418
  %v3715 = vpack.c.b16 %v3421, %v3420
  %v3716 = vpack.c.b16 %v3423, %v3422
  %v3717 = vpack.c.b16 %v3425, %v3424
  %v3718 = vpack.c.b16 %v3427, %v3426
  %v3719 = vpack.c.b16 %v3429, %v3428
  %v3720 = vpack.c.b16 %v3431, %v3430
  %v3721 = vpack.c.b16 %v3433, %v3432
  %v3722 = vpack.c.b16 %v3435, %v3434
  %v3723 = vpack.c.b16 %v3437, %v3436
  %v3724 = vpack.c.b16 %v3439, %v3438
  %v3725 = vpack.c.b16 %v3441, %v3440
  %v3726 = vpack.c.b16 %v3443, %v3442
  %v3727 = vpack.c.b16 %v3445, %v3444
  %v3728 = vpack.c.b16 %v3447, %v3446
  %v3729 = vpack.c.b16 %v3449, %v3448
  %v3730 = vpack.c.b16 %v3451, %v3450
  %v3731 = vpack.c.b16 %v3453, %v3452
  %v3732 = vpack.c.b16 %v3455, %v3454
  %v3733 = vpack.c.b16 %v3457, %v3456
  %v3734 = vpack.c.b16 %v3459, %v3458
  %v3735 = vpack.c.b16 %v3461, %v3460
  %v3736 = vpack.c.b16 %v3463, %v3462
  %v3737 = vpack.c.b16 %v3465, %v3464
  %v3738 = vpack.c.b16 %v3467, %v3466
  %v3739 = vpack.c.b16 %v3469, %v3468
  %v3740 = vpack.c.b16 %v3471, %v3470
  %v3741 = vpack.c.b16 %v3473, %v3472
  %v3742 = vpack.c.b16 %v3475, %v3474
  %v3743 = vpack.c.b16 %v3477, %v3476
  %v3744 = vpack.c.b16 %v3479, %v3478
  %v3745 = vpack.c.b16 %v3481, %v3480
  %v3746 = vpack.c.b16 %v3483, %v3482
  %v3747 = vpack.c.b16 %v3485, %v3484
  %v3748 = vpack.c.b16 %v3487, %v3486
  %v3749 = vpack.c.b16 %v3489, %v3488
  %v3750 = vpack.c.b16 %v3491, %v3490
  %v3751 = vpack.c.b16 %v3493, %v3492
  %v3752 = vpack.c.b16 %v3495, %v3494
  %v3753 = vpack.c.b16 %v3497, %v3496
  %v3754 = vpack.c.b16 %v3499, %v3498
  %v3755 = vpack.c.b16 %v3501, %v3500
  %v3756 = vpack.c.b16 %v3503, %v3502
  %v3757 = vpack.c.b16 %v3505, %v3504
  %v3758 = vpack.c.b16 %v3507, %v3506
  %v3759 = vpack.c.b16 %v3509, %v3508
  %v3760 = vpack.c.b16 %v3511, %v3510
  %v3761 = vpack.c.b16 %v3513, %v3512
  %v3762 = vpack.c.b16 %v3515, %v3514
  %v3763 = vpack.c.b16 %v3517, %v3516
  %v3764 = vpack.c.b16 %v3519, %v3518
  %v3765 = vpack.c.b16 %v3521, %v3520
  %v3766 = vpack.c.b16 %v3523, %v3522
  %v3767 = vpack.c.b16 %v3525, %v3524
  %v3768 = vpack.c.b16 %v3527, %v3526
  %v3769 = vpack.c.b16 %v3529, %v3528
  %v3770 = vpack.c.b16 %v3531, %v3530
  %v3771 = vpack.c.b16 %v3533, %v3532
  %v3772 = vpack.c.b16 %v3535, %v3534
  %v3773 = vpack.c.b16 %v3537, %v3536
  %v3774 = vpack.c.b16 %v3539, %v3538
  %v3775 = vpack.c.b16 %v3541, %v3540
  %v3776 = vpack.c.b16 %v3543, %v3542
  %v3777 = vpack.c.b16 %v3545, %v3544
  %v3778 = vpack.c.b16 %v3547, %v3546
  %v3779 = vpack.c.b16 %v3549, %v3548
  %v3780 = vpack.c.b16 %v3551, %v3550
  %v3781 = vpack.c.b16 %v3553, %v3552
  %v3782 = vpack.c.b16 %v3555, %v3554
  %v3783 = vpack.c.b16 %v3557, %v3556
  %v3784 = vpack.c.b16 %v3559, %v3558
  %v3785 = vpack.c.b16 %v3561, %v3560
  %v3786 = vpack.c.b16 %v3563, %v3562
  %v3787 = vpack.c.b16 %v3565, %v3564
  %v3788 = vpack.c.b16 %v3567, %v3566
  %v3789 = vpack.c.b16 %v3569, %v3568
  %v3790 = vpack.c.b16 %v3571, %v3570
  %v3791 = vpack.c.b16 %v3573, %v3572
  %v3792 = vpack.c.b16 %v3575, %v3574
  %v3793 = vpack.c.b16 %v3577, %v3576
  %v3794 = vpack.c.b16 %v3579, %v3578
  %v3795 = vpack.c.b16 %v3581, %v3580
  %v3796 = vpack.c.b16 %v3583, %v3582
  %v3797 = vpack.c.b16 %v3585, %v3584
  %v3798 = vpack.c.b16 %v3587, %v3586
  %v3799 = vpack.c.b16 %v3589, %v3588
  %v3800 = vpack.c.b16 %v3591, %v3590
  %v3801 = vpack.c.b16 %v3593, %v3592
  %v3802 = vpack.c.b16 %v3595, %v3594
  %v3803 = vpack.c.b16 %v3597, %v3596
  %v3804 = vpack.c.b16 %v3599, %v3598
  %v3805 = vpack.c.b16 %v3601, %v3600
  %v3806 = vpack.c.b16 %v3603, %v3602
  %v3807 = vpack.c.b16 %v3605, %v3604
  %v3808 = vpack.c.b16 %v3607, %v3606
  %v3809 = vpack.c.b16 %v3609, %v3608
  %v3810 = vpack.c.b16 %v3611, %v3610
  %v3811 = vpack.c.b16 %v3613, %v3612
  %v3812 = vpack.c.b16 %v3615, %v3614
  %v3813 = vpack.c.b16 %v3617, %v3616
  %v3814 = vpack.c.b16 %v3619, %v3618
  %v3815 = vpack.c.b16 %v3621, %v3620
  %v3816 = vpack.c.b16 %v3623, %v3622
  %v3817 = vpack.c.b16 %v3625, %v3624
  %4010 = vmatpush.bf16.msra.mxu0 %v3633
  %4011 = vmatpush.bf16.msra.mxu0 %v3632
  %4012 = vmatpush.bf16.msra.mxu0 %v3631
  %4013 = vmatpush.bf16.msra.mxu0 %v3630
  %4014 = vmatpush.bf16.msra.mxu0 %v3629
  %4015 = vmatpush.bf16.msra.mxu0 %v3628
  %4016 = vmatpush.bf16.msra.mxu0 %v3627
  %4017 = vmatpush.bf16.msra.mxu0 %v3626
  %4018 = vmatmul.bf16.gmra.mxu0 %v2810
  %v4019 = vpop.f32.mrf.mxu0
  %v4020 = vadd.f32 %v2249, %v4019
  %v4021 = vpop.f32.mrf.mxu0
  %4022 = vdwg.mxu0
  %4023 = vmatpush.bf16.msra.mxu0 %v3641
  %4024 = vmatpush.bf16.msra.mxu0 %v3640
  %4025 = vmatpush.bf16.msra.mxu0 %v3639
  %4026 = vmatpush.bf16.msra.mxu0 %v3638
  %4027 = vmatpush.bf16.msra.mxu0 %v3637
  %4028 = vmatpush.bf16.msra.mxu0 %v3636
  %4029 = vmatpush.bf16.msra.mxu0 %v3635
  %4030 = vmatpush.bf16.msra.mxu0 %v3634
  %4031 = vmatmul.bf16.gmra.mxu0 %v2811
  %v4032 = vpop.f32.mrf.mxu0
  %v4033 = vadd.f32 %v4020, %v4032
  %v4034 = vpop.f32.mrf.mxu0
  %4035 = vdwg.mxu0
  %4036 = vmatpush.bf16.msra.mxu0 %v3649
  %4037 = vmatpush.bf16.msra.mxu0 %v3648
  %4038 = vmatpush.bf16.msra.mxu0 %v3647
  %4039 = vmatpush.bf16.msra.mxu0 %v3646
  %4040 = vmatpush.bf16.msra.mxu0 %v3645
  %4041 = vmatpush.bf16.msra.mxu0 %v3644
  %4042 = vmatpush.bf16.msra.mxu0 %v3643
  %4043 = vmatpush.bf16.msra.mxu0 %v3642
  %4044 = vmatmul.bf16.gmra.mxu0 %v2812
  %v4045 = vpop.f32.mrf.mxu0
  %v4046 = vadd.f32 %v4033, %v4045
  %v4047 = vpop.f32.mrf.mxu0
  %4048 = vdwg.mxu0
  %4049 = vmatpush.bf16.msra.mxu0 %v3657
  %4050 = vmatpush.bf16.msra.mxu0 %v3656
  %4051 = vmatpush.bf16.msra.mxu0 %v3655
  %4052 = vmatpush.bf16.msra.mxu0 %v3654
  %4053 = vmatpush.bf16.msra.mxu0 %v3653
  %4054 = vmatpush.bf16.msra.mxu0 %v3652
  %4055 = vmatpush.bf16.msra.mxu0 %v3651
  %4056 = vmatpush.bf16.msra.mxu0 %v3650
  %4057 = vmatmul.bf16.gmra.mxu0 %v2813
  %v4058 = vpop.f32.mrf.mxu0
  %v4059 = vadd.f32 %v4046, %v4058
  %v4060 = vpop.f32.mrf.mxu0
  %4061 = vdwg.mxu0
  %4062 = vmatpush.bf16.msra.mxu0 %v3665
  %4063 = vmatpush.bf16.msra.mxu0 %v3664
  %4064 = vmatpush.bf16.msra.mxu0 %v3663
  %4065 = vmatpush.bf16.msra.mxu0 %v3662
  %4066 = vmatpush.bf16.msra.mxu0 %v3661
  %4067 = vmatpush.bf16.msra.mxu0 %v3660
  %4068 = vmatpush.bf16.msra.mxu0 %v3659
  %4069 = vmatpush.bf16.msra.mxu0 %v3658
  %4070 = vmatmul.bf16.gmra.mxu0 %v2814
  %v4071 = vpop.f32.mrf.mxu0
  %v4072 = vadd.f32 %v4059, %v4071
  %v4073 = vpop.f32.mrf.mxu0
  %4074 = vdwg.mxu0
  %4075 = vmatpush.bf16.msra.mxu0 %v3673
  %4076 = vmatpush.bf16.msra.mxu0 %v3672
  %4077 = vmatpush.bf16.msra.mxu0 %v3671
  %4078 = vmatpush.bf16.msra.mxu0 %v3670
  %4079 = vmatpush.bf16.msra.mxu0 %v3669
  %4080 = vmatpush.bf16.msra.mxu0 %v3668
  %4081 = vmatpush.bf16.msra.mxu0 %v3667
  %4082 = vmatpush.bf16.msra.mxu0 %v3666
  %4083 = vmatmul.bf16.gmra.mxu0 %v2815
  %v4084 = vpop.f32.mrf.mxu0
  %v4085 = vadd.f32 %v4072, %v4084
  %v4086 = vpop.f32.mrf.mxu0
  %4087 = vdwg.mxu0
  %4088 = vmatpush.bf16.msra.mxu0 %v3681
  %4089 = vmatpush.bf16.msra.mxu0 %v3680
  %4090 = vmatpush.bf16.msra.mxu0 %v3679
  %4091 = vmatpush.bf16.msra.mxu0 %v3678
  %4092 = vmatpush.bf16.msra.mxu0 %v3677
  %4093 = vmatpush.bf16.msra.mxu0 %v3676
  %4094 = vmatpush.bf16.msra.mxu0 %v3675
  %4095 = vmatpush.bf16.msra.mxu0 %v3674
  %4096 = vmatmul.bf16.gmra.mxu0 %v2816
  %v4097 = vpop.f32.mrf.mxu0
  %v4098 = vadd.f32 %v4085, %v4097
  %v4099 = vpop.f32.mrf.mxu0
  %4100 = vdwg.mxu0
  %4101 = vmatpush.bf16.msra.mxu0 %v3689
  %4102 = vmatpush.bf16.msra.mxu0 %v3688
  %4103 = vmatpush.bf16.msra.mxu0 %v3687
  %4104 = vmatpush.bf16.msra.mxu0 %v3686
  %4105 = vmatpush.bf16.msra.mxu0 %v3685
  %4106 = vmatpush.bf16.msra.mxu0 %v3684
  %4107 = vmatpush.bf16.msra.mxu0 %v3683
  %4108 = vmatpush.bf16.msra.mxu0 %v3682
  %4109 = vmatmul.bf16.gmra.mxu0 %v2817
  %v4110 = vpop.f32.mrf.mxu0
  %v4111 = vadd.f32 %v4098, %v4110
  %v4112 = vpop.f32.mrf.mxu0
  %4113 = vdwg.mxu0
  %4114 = vmatpush.bf16.msra.mxu0 %v3697
  %4115 = vmatpush.bf16.msra.mxu0 %v3696
  %4116 = vmatpush.bf16.msra.mxu0 %v3695
  %4117 = vmatpush.bf16.msra.mxu0 %v3694
  %4118 = vmatpush.bf16.msra.mxu0 %v3693
  %4119 = vmatpush.bf16.msra.mxu0 %v3692
  %4120 = vmatpush.bf16.msra.mxu0 %v3691
  %4121 = vmatpush.bf16.msra.mxu0 %v3690
  %4122 = vmatmul.bf16.gmra.mxu0 %v2818
  %v4123 = vpop.f32.mrf.mxu0
  %v4124 = vadd.f32 %v4111, %v4123
  %v4125 = vpop.f32.mrf.mxu0
  %4126 = vdwg.mxu0
  %4127 = vmatpush.bf16.msra.mxu0 %v3705
  %4128 = vmatpush.bf16.msra.mxu0 %v3704
  %4129 = vmatpush.bf16.msra.mxu0 %v3703
  %4130 = vmatpush.bf16.msra.mxu0 %v3702
  %4131 = vmatpush.bf16.msra.mxu0 %v3701
  %4132 = vmatpush.bf16.msra.mxu0 %v3700
  %4133 = vmatpush.bf16.msra.mxu0 %v3699
  %4134 = vmatpush.bf16.msra.mxu0 %v3698
  %4135 = vmatmul.bf16.gmra.mxu0 %v2819
  %v4136 = vpop.f32.mrf.mxu0
  %v4137 = vadd.f32 %v4124, %v4136
  %v4138 = vpop.f32.mrf.mxu0
  %4139 = vdwg.mxu0
  %4140 = vmatpush.bf16.msra.mxu0 %v3713
  %4141 = vmatpush.bf16.msra.mxu0 %v3712
  %4142 = vmatpush.bf16.msra.mxu0 %v3711
  %4143 = vmatpush.bf16.msra.mxu0 %v3710
  %4144 = vmatpush.bf16.msra.mxu0 %v3709
  %4145 = vmatpush.bf16.msra.mxu0 %v3708
  %4146 = vmatpush.bf16.msra.mxu0 %v3707
  %4147 = vmatpush.bf16.msra.mxu0 %v3706
  %4148 = vmatmul.bf16.gmra.mxu0 %v2820
  %v4149 = vpop.f32.mrf.mxu0
  %v4150 = vadd.f32 %v4137, %v4149
  %v4151 = vpop.f32.mrf.mxu0
  %4152 = vdwg.mxu0
  %4153 = vmatpush.bf16.msra.mxu0 %v3721
  %4154 = vmatpush.bf16.msra.mxu0 %v3720
  %4155 = vmatpush.bf16.msra.mxu0 %v3719
  %4156 = vmatpush.bf16.msra.mxu0 %v3718
  %4157 = vmatpush.bf16.msra.mxu0 %v3717
  %4158 = vmatpush.bf16.msra.mxu0 %v3716
  %4159 = vmatpush.bf16.msra.mxu0 %v3715
  %4160 = vmatpush.bf16.msra.mxu0 %v3714
  %4161 = vmatmul.bf16.gmra.mxu0 %v2821
  %v4162 = vpop.f32.mrf.mxu0
  %v4163 = vadd.f32 %v4150, %v4162
  %v4164 = vpop.f32.mrf.mxu0
  %4165 = vdwg.mxu0
  %4166 = vmatpush.bf16.msra.mxu0 %v3729
  %4167 = vmatpush.bf16.msra.mxu0 %v3728
  %4168 = vmatpush.bf16.msra.mxu0 %v3727
  %4169 = vmatpush.bf16.msra.mxu0 %v3726
  %4170 = vmatpush.bf16.msra.mxu0 %v3725
  %4171 = vmatpush.bf16.msra.mxu0 %v3724
  %4172 = vmatpush.bf16.msra.mxu0 %v3723
  %4173 = vmatpush.bf16.msra.mxu0 %v3722
  %4174 = vmatmul.bf16.gmra.mxu0 %v2822
  %v4175 = vpop.f32.mrf.mxu0
  %v4176 = vadd.f32 %v4163, %v4175
  %v4177 = vpop.f32.mrf.mxu0
  %4178 = vdwg.mxu0
  %4179 = vmatpush.bf16.msra.mxu0 %v3737
  %4180 = vmatpush.bf16.msra.mxu0 %v3736
  %4181 = vmatpush.bf16.msra.mxu0 %v3735
  %4182 = vmatpush.bf16.msra.mxu0 %v3734
  %4183 = vmatpush.bf16.msra.mxu0 %v3733
  %4184 = vmatpush.bf16.msra.mxu0 %v3732
  %4185 = vmatpush.bf16.msra.mxu0 %v3731
  %4186 = vmatpush.bf16.msra.mxu0 %v3730
  %4187 = vmatmul.bf16.gmra.mxu0 %v2823
  %v4188 = vpop.f32.mrf.mxu0
  %v4189 = vadd.f32 %v4176, %v4188
  %v4190 = vpop.f32.mrf.mxu0
  %4191 = vdwg.mxu0
  %4192 = vmatpush.bf16.msra.mxu0 %v3745
  %4193 = vmatpush.bf16.msra.mxu0 %v3744
  %4194 = vmatpush.bf16.msra.mxu0 %v3743
  %4195 = vmatpush.bf16.msra.mxu0 %v3742
  %4196 = vmatpush.bf16.msra.mxu0 %v3741
  %4197 = vmatpush.bf16.msra.mxu0 %v3740
  %4198 = vmatpush.bf16.msra.mxu0 %v3739
  %4199 = vmatpush.bf16.msra.mxu0 %v3738
  %4200 = vmatmul.bf16.gmra.mxu0 %v2824
  %v4201 = vpop.f32.mrf.mxu0
  %v4202 = vadd.f32 %v4189, %v4201
  %v4203 = vpop.f32.mrf.mxu0
  %4204 = vdwg.mxu0
  %4205 = vmatpush.bf16.msra.mxu0 %v3753
  %4206 = vmatpush.bf16.msra.mxu0 %v3752
  %4207 = vmatpush.bf16.msra.mxu0 %v3751
  %4208 = vmatpush.bf16.msra.mxu0 %v3750
  %4209 = vmatpush.bf16.msra.mxu0 %v3749
  %4210 = vmatpush.bf16.msra.mxu0 %v3748
  %4211 = vmatpush.bf16.msra.mxu0 %v3747
  %4212 = vmatpush.bf16.msra.mxu0 %v3746
  %4213 = vmatmul.bf16.gmra.mxu0 %v2825
  %v4214 = vpop.f32.mrf.mxu0
  %v4215 = vadd.f32 %v4202, %v4214
  %v4216 = vpop.f32.mrf.mxu0
  %4217 = vdwg.mxu0
  %4218 = vmatpush.bf16.msra.mxu0 %v3761
  %4219 = vmatpush.bf16.msra.mxu0 %v3760
  %4220 = vmatpush.bf16.msra.mxu0 %v3759
  %4221 = vmatpush.bf16.msra.mxu0 %v3758
  %4222 = vmatpush.bf16.msra.mxu0 %v3757
  %4223 = vmatpush.bf16.msra.mxu0 %v3756
  %4224 = vmatpush.bf16.msra.mxu0 %v3755
  %4225 = vmatpush.bf16.msra.mxu0 %v3754
  %4226 = vmatmul.bf16.gmra.mxu0 %v2826
  %v4227 = vpop.f32.mrf.mxu0
  %v4228 = vadd.f32 %v4215, %v4227
  %v4229 = vpop.f32.mrf.mxu0
  %4230 = vdwg.mxu0
  %4231 = vmatpush.bf16.msra.mxu0 %v3769
  %4232 = vmatpush.bf16.msra.mxu0 %v3768
  %4233 = vmatpush.bf16.msra.mxu0 %v3767
  %4234 = vmatpush.bf16.msra.mxu0 %v3766
  %4235 = vmatpush.bf16.msra.mxu0 %v3765
  %4236 = vmatpush.bf16.msra.mxu0 %v3764
  %4237 = vmatpush.bf16.msra.mxu0 %v3763
  %4238 = vmatpush.bf16.msra.mxu0 %v3762
  %4239 = vmatmul.bf16.gmra.mxu0 %v2827
  %v4240 = vpop.f32.mrf.mxu0
  %v4241 = vadd.f32 %v4228, %v4240
  %v4242 = vpop.f32.mrf.mxu0
  %4243 = vdwg.mxu0
  %4244 = vmatpush.bf16.msra.mxu0 %v3777
  %4245 = vmatpush.bf16.msra.mxu0 %v3776
  %4246 = vmatpush.bf16.msra.mxu0 %v3775
  %4247 = vmatpush.bf16.msra.mxu0 %v3774
  %4248 = vmatpush.bf16.msra.mxu0 %v3773
  %4249 = vmatpush.bf16.msra.mxu0 %v3772
  %4250 = vmatpush.bf16.msra.mxu0 %v3771
  %4251 = vmatpush.bf16.msra.mxu0 %v3770
  %4252 = vmatmul.bf16.gmra.mxu0 %v2828
  %v4253 = vpop.f32.mrf.mxu0
  %v4254 = vadd.f32 %v4241, %v4253
  %v4255 = vpop.f32.mrf.mxu0
  %4256 = vdwg.mxu0
  %4257 = vmatpush.bf16.msra.mxu0 %v3785
  %4258 = vmatpush.bf16.msra.mxu0 %v3784
  %4259 = vmatpush.bf16.msra.mxu0 %v3783
  %4260 = vmatpush.bf16.msra.mxu0 %v3782
  %4261 = vmatpush.bf16.msra.mxu0 %v3781
  %4262 = vmatpush.bf16.msra.mxu0 %v3780
  %4263 = vmatpush.bf16.msra.mxu0 %v3779
  %4264 = vmatpush.bf16.msra.mxu0 %v3778
  %4265 = vmatmul.bf16.gmra.mxu0 %v2829
  %v4266 = vpop.f32.mrf.mxu0
  %v4267 = vadd.f32 %v4254, %v4266
  %v4268 = vpop.f32.mrf.mxu0
  %4269 = vdwg.mxu0
  %4270 = vmatpush.bf16.msra.mxu0 %v3793
  %4271 = vmatpush.bf16.msra.mxu0 %v3792
  %4272 = vmatpush.bf16.msra.mxu0 %v3791
  %4273 = vmatpush.bf16.msra.mxu0 %v3790
  %4274 = vmatpush.bf16.msra.mxu0 %v3789
  %4275 = vmatpush.bf16.msra.mxu0 %v3788
  %4276 = vmatpush.bf16.msra.mxu0 %v3787
  %4277 = vmatpush.bf16.msra.mxu0 %v3786
  %4278 = vmatmul.bf16.gmra.mxu0 %v2830
  %v4279 = vpop.f32.mrf.mxu0
  %v4280 = vadd.f32 %v4267, %v4279
  %v4281 = vpop.f32.mrf.mxu0
  %4282 = vdwg.mxu0
  %4283 = vmatpush.bf16.msra.mxu0 %v3801
  %4284 = vmatpush.bf16.msra.mxu0 %v3800
  %4285 = vmatpush.bf16.msra.mxu0 %v3799
  %4286 = vmatpush.bf16.msra.mxu0 %v3798
  %4287 = vmatpush.bf16.msra.mxu0 %v3797
  %4288 = vmatpush.bf16.msra.mxu0 %v3796
  %4289 = vmatpush.bf16.msra.mxu0 %v3795
  %4290 = vmatpush.bf16.msra.mxu0 %v3794
  %4291 = vmatmul.bf16.gmra.mxu0 %v2831
  %v4292 = vpop.f32.mrf.mxu0
  %v4293 = vadd.f32 %v4280, %v4292
  %v4294 = vpop.f32.mrf.mxu0
  %4295 = vdwg.mxu0
  %4296 = vmatpush.bf16.msra.mxu0 %v3809
  %4297 = vmatpush.bf16.msra.mxu0 %v3808
  %4298 = vmatpush.bf16.msra.mxu0 %v3807
  %4299 = vmatpush.bf16.msra.mxu0 %v3806
  %4300 = vmatpush.bf16.msra.mxu0 %v3805
  %4301 = vmatpush.bf16.msra.mxu0 %v3804
  %4302 = vmatpush.bf16.msra.mxu0 %v3803
  %4303 = vmatpush.bf16.msra.mxu0 %v3802
  %4304 = vmatmul.bf16.gmra.mxu0 %v2832
  %v4305 = vpop.f32.mrf.mxu0
  %v4306 = vadd.f32 %v4293, %v4305
  %v4307 = vpop.f32.mrf.mxu0
  %4308 = vdwg.mxu0
  %4309 = vmatpush.bf16.msra.mxu0 %v3817
  %4310 = vmatpush.bf16.msra.mxu0 %v3816
  %4311 = vmatpush.bf16.msra.mxu0 %v3815
  %4312 = vmatpush.bf16.msra.mxu0 %v3814
  %4313 = vmatpush.bf16.msra.mxu0 %v3813
  %4314 = vmatpush.bf16.msra.mxu0 %v3812
  %4315 = vmatpush.bf16.msra.mxu0 %v3811
  %4316 = vmatpush.bf16.msra.mxu0 %v3810
  %4317 = vmatmul.bf16.gmra.mxu0 %v2833
  %v4318 = vpop.f32.mrf.mxu0
  %v4319 = vadd.f32 %v4306, %v4318
  %v4320 = vpop.f32.mrf.mxu0
  %4321 = vdwg.mxu0
  %v4322 = vld [vmem:[%s3] sm:$0xff]
  %v4323 = vld [vmem:[%s3 + $0x8] sm:$0xff]
  %v4324 = vld [vmem:[%s3 + $0x10] sm:$0xff]
  %v4325 = vld [vmem:[%s3 + $0x18] sm:$0xff]
  %v4326 = vld [vmem:[%s3 + $0x20] sm:$0xff]
  %v4327 = vld [vmem:[%s3 + $0x28] sm:$0xff]
  %v4328 = vld [vmem:[%s3 + $0x30] sm:$0xff]
  %v4329 = vld [vmem:[%s3 + $0x38] sm:$0xff]
  %v4330 = vld [vmem:[%s4] sm:$0x1]
  %v4332 = vperm.slane %v4330, 0
  %vm4334 = vcmask 523264
  %v4336 = vsel %vm4334, %v4319, 0
  %4338 = vmatpush.msra.mxu0 0.0
  %4339 = vmatpush.msra.mxu0 0.0
  %4340 = vmatpush.msra.mxu0 0.0
  %4341 = vmatpush.msra.mxu0 0.0
  %4342 = vmatpush.msra.mxu0 0.0
  %4343 = vmatpush.msra.mxu0 0.0
  %4344 = vmatpush.msra.mxu0 0.0
  %4345 = vmatpush.msra.mxu0 0.0
  %4346 = vmatpush.msra.mxu0 %v4329
  %4347 = vmatpush.msra.mxu0 %v4328
  %4348 = vmatpush.msra.mxu0 %v4327
  %4349 = vmatpush.msra.mxu0 %v4326
  %4350 = vmatpush.msra.mxu0 %v4325
  %4351 = vmatpush.msra.mxu0 %v4324
  %4352 = vmatpush.msra.mxu0 %v4323
  %4353 = vmatpush.msra.mxu0 %v4322
  %4354 = vmatmul.f32.gmra.mxu0 %v4336
  %v4355 = vpop.f32.mrf.mxu0
  %v4356 = vadd.f32 %v4332, %v4355
  %4357 = vdwg.mxu0
  %v4358 = vld [vmem:[%s5] sm:$0x1]
  %v4359 = vld [vmem:[%s6] sm:$0x1]
  %v4360 = vsel %vm4334, %v4356, 0.0
  %4361 = vadd.xlane.f32.xlu0 %v4360
  %v4362 = vpop.xlane.xlu0 %4361
  %v4363 = vrcp.pop 64.0
  %v4364 = vmul.f32 64.0, %v4363
  %v4365 = vsub.f32 1.0, %v4364
  %v4366 = vmul.f32 %v4363, %v4365
  %v4367 = vadd.f32 %v4363, %v4366
  %vm4368 = vweird.f32 %v4363
  %v4369 = vsel %vm4368, %v4363, %v4367
  %v4370 = vmul.f32 %v4362, %v4369
  %v4371 = vsub.f32 %v4356, %v4370
  %v4372 = vmul.f32 %v4371, %v4371
  %v4373 = vsel %vm4334, %v4372, 0.0
  %4374 = vadd.xlane.f32.xlu0 %v4373
  %v4375 = vpop.xlane.xlu0 %4374
  %v4376 = vmul.f32 %v4375, %v4369
  %v4377 = vadd.f32 %v4376, 1e-05
  %v4378 = vrsqrt.pop %v4377
  %v4379 = vmul.f32 %v4378, %v4377
  %v4380 = vmul.f32 %v4379, %v4378
  %v4381 = vmul.f32 0.5, %v4380
  %v4382 = vsub.f32 1.5, %v4381
  %v4383 = vmul.f32 %v4378, %v4382
  %vm4384 = vweird.f32 %v4377
  %vm4385 = vweird.f32 %v4378
  %vm4386 = vmor %vm4384, %vm4385
  %v4387 = vsel %vm4386, %v4378, %v4383
  %v4388 = vmul.f32 %v4371, %v4387
  %v4390 = vperm.slane %v4358, 0
  %v4392 = vmul.f32 %v4388, %v4390
  %v4394 = vperm.slane %v4359, 0
  %v4396 = vadd.f32 %v4392, %v4394
  %v4397 = vmul.f32 %v4396, 0.5
  %v4398 = vmul.f32 %v4396, 0.70710677
  %v4399 = vmul.f32 %v4398, %v4398
  %v4400 = vmin.f32 16.0, %v4399
  %v4401 = vmul.f32 %v4400, 2.1237322e-06
  %v4402 = vadd.f32 %v4401, 0.00028619796
  %v4403 = vmul.f32 %v4400, %v4402
  %v4404 = vadd.f32 %v4403, 0.0036580483
  %v4405 = vmul.f32 %v4400, %v4404
  %v4406 = vadd.f32 %v4405, 0.05243302
  %v4407 = vmul.f32 %v4400, %v4406
  %v4408 = vadd.f32 %v4407, 0.18741608
  %v4409 = vmul.f32 %v4400, %v4408
  %v4410 = vadd.f32 %v4409, 1.1283791
  %v4411 = vmul.f32 %v4398, %v4410
  %v4412 = vmul.f32 %v4400, 3.8918573e-05
  %v4413 = vadd.f32 %v4412, 0.001143296
  %v4414 = vmul.f32 %v4400, %v4413
  %v4415 = vadd.f32 %v4414, 0.014752088
  %v4416 = vmul.f32 %v4400, %v4415
  %v4417 = vadd.f32 %v4416, 0.112945676
  %v4418 = vmul.f32 %v4400, %v4417
  %v4419 = vadd.f32 %v4418, 0.4994258
  %v4420 = vmul.f32 %v4400, %v4419
  %v4421 = vadd.f32 %v4420, 1.0
  %v4422 = vrcp.pop %v4421
  %v4423 = vmul.f32 %v4421, %v4422
  %v4424 = vsub.f32 1.0, %v4423
  %v4425 = vmul.f32 %v4422, %v4424
  %v4426 = vadd.f32 %v4422, %v4425
  %vm4427 = vweird.f32 %v4421
  %vm4428 = vweird.f32 %v4422
  %vm4429 = vmor %vm4427, %vm4428
  %v4430 = vsel %vm4429, %v4422, %v4426
  %v4431 = vand.u32 2147483647, %v4421
  %vm4432 = vcmp.eq.f32.partialorder %v4431, 8.507059e+37
  %v4433 = vand.u32 %v4421, 2147483648
  %v4434 = vor.u32 1.1754944e-38, %v4433
  %v4435 = vsel %vm4432, %v4434, %v4430
  %v4436 = vmul.f32 %v4411, %v4435
  %v4437 = vmin.f32 %v4436, 1.0
  %v4438 = vmax.f32 %v4437, -1.0
  %v4439 = vadd.f32 %v4438, 1.0
  %v4440 = vmul.f32 %v4397, %v4439
  %v4441 = vld [vmem:[%s7] sm:$0x1]
  %v4443 = vperm.slane %v4441, 0
  %v4445 = vmul.f32 %v4440, %v4443
  %v4446 = vsel %vm4334, %v4445, 0.0
  %4447 = vadd.xlane.f32.xlu0 %v4446
  %v4448 = vpop.xlane.xlu0 %4447
  %s4449 = sld [smem:[#allocation2]]
  %v4450 = vstv %s4449
  %v4451 = vadd.f32 %v4448, %v4450
  %v4452 = vadd.f32 %v4451, %v4319
  %v4453 = vld [vmem:[%s9] sm:$0x1]
  %v4454 = vld [vmem:[%s10] sm:$0x1]
  %v4455 = vsel %vm4334, %v4452, 0.0
  %4456 = vadd.xlane.f32.xlu0 %v4455
  %v4457 = vpop.xlane.xlu0 %4456
  %v4458 = vmul.f32 %v4457, %v4369
  %v4459 = vsub.f32 %v4452, %v4458
  %v4460 = vmul.f32 %v4459, %v4459
  %v4461 = vsel %vm4334, %v4460, 0.0
  %4462 = vadd.xlane.f32.xlu0 %v4461
  %v4463 = vpop.xlane.xlu0 %4462
  %v4464 = vmul.f32 %v4463, %v4369
  %v4465 = vadd.f32 %v4464, 1e-05
  %v4466 = vrsqrt.pop %v4465
  %v4467 = vmul.f32 %v4466, %v4465
  %v4468 = vmul.f32 %v4467, %v4466
  %v4469 = vmul.f32 0.5, %v4468
  %v4470 = vsub.f32 1.5, %v4469
  %v4471 = vmul.f32 %v4466, %v4470
  %vm4472 = vweird.f32 %v4465
  %vm4473 = vweird.f32 %v4466
  %vm4474 = vmor %vm4472, %vm4473
  %v4475 = vsel %vm4474, %v4466, %v4471
  %v4476 = vmul.f32 %v4459, %v4475
  %v4478 = vperm.slane %v4453, 0
  %v4480 = vmul.f32 %v4476, %v4478
  %v4482 = vperm.slane %v4454, 0
  %v4484 = vadd.f32 %v4480, %v4482
  %4485 = vst.msk [vmem:[%s11] sm:$0xff] %vm4334, %v4484
  // Predicated region
  $region46: #{transformer_disc_head.1} parent=0 // pred_check
    _
  $region47: #{transformer_disc_head.1} parent=0 // pred_check_branch
    %4487 = sbr.rel (0) target = $region49
  $region48: #{transformer_disc_head.1} parent=0 // pred_region
    _
  $region49: #{transformer_disc_head.1} parent=0 // pred_fallthru
    _
  // Predicated region
  $region50: #{transformer_disc_head.1} parent=0 // pred_check
    _
  $region51: #{transformer_disc_head.1} parent=0 // pred_check_branch
    %4489 = sbr.rel (0) target = $region53
  $region52: #{transformer_disc_head.1} parent=0 // pred_region
    _
  $region53: #{transformer_disc_head.1} parent=0 // pred_fallthru
    _

</llo_original>
